<compile_context>
chip_gen: v6e
topology: v6e:2x2x1
jax: 0.10.0
libtpu: 0.0.40
codegen_flags: <defaults>
</compile_context>

<pallas_src>
import jax
import jax.numpy as jnp
from jax.experimental import pallas as pl
from jax.experimental.pallas import tpu as pltpu


# ----------------------------- fused Pallas kernel ------------------------------

def _net_kernel(p1_ref, w1_ref, b1_ref, w2_ref, b2_ref,
                wf1_ref, bf1_ref, wf2_ref, bf2_ref, o_ref):
    TB = o_ref.shape[0]

    # ---- conv1: one MXU matmul over the pre-ordered bf16 im2col patches -------
    p1 = p1_ref[...].reshape(TB * 768, 25)               # rows (b, pc, i, j16)
    y1 = jnp.dot(p1, w1_ref[...],
                 preferred_element_type=jnp.float32) + b1_ref[...]  # (TB*768, 10)

    # ---- maxpool(2x2) + relu: max over the 4 contiguous pool-candidate blocks -
    y1 = y1.reshape(TB, 4, 192, 10)
    a1 = jnp.maximum(jnp.maximum(y1[:, 0], y1[:, 1]),
                     jnp.maximum(y1[:, 2], y1[:, 3]))
    # (b, i, j16, c); columns j>=12 are pad (= relu(b1)) and are never read below.
    a1 = jnp.maximum(a1, 0.0).reshape(TB, 12, 16, 10)

    # ---- conv2 as ONE K=250 matmul (in-kernel im2col, lane-dense operand) -----
    # TODO(synk): nn.Dropout2d after conv2 is identity in eval mode (no train RNG).
    shifted = [a1[:, :, dj:dj + 8, :] for dj in range(5)]   # 5 sublane-shifted views
    pieces = [shifted[dj][:, di:di + 8].reshape(TB * 64, 10)
              for di in range(5) for dj in range(5)]        # K order (di, dj, cin)
    x2 = jnp.concatenate(pieces, axis=-1)                   # (TB*64, 250)
    y2 = jnp.dot(x2, w2_ref[...],
                 preferred_element_type=jnp.float32) + b2_ref[...]  # (TB*64, 20)

    # ---- maxpool(2x2) + relu + (channel-major flatten folded into wf1) + fc1 --
    y2 = y2.reshape(TB, 4, 2, 8, 20)                        # (b, i, ph, w, c)
    mh = jnp.maximum(y2[:, :, 0], y2[:, :, 1])              # pooled over h: (b, i, w, c)
    cols = [jnp.maximum(mh[:, i, 2 * j, :], mh[:, i, 2 * j + 1, :])
            for i in range(4) for j in range(4)]            # 16 x (TB, 20)
    flat = jnp.maximum(jnp.concatenate(cols, axis=-1), 0.0)  # (TB, 320) lane-dense
    h = jnp.maximum(jnp.dot(flat, wf1_ref[...],
                            preferred_element_type=jnp.float32) + bf1_ref[...], 0.0)
    # TODO(synk): F.dropout after fc1 is identity in eval mode (no train-mode RNG).

    # ---- fc2 -------------------------------------------------------------------
    o_ref[...] = jnp.dot(h, wf2_ref[...],
                         preferred_element_type=jnp.float32) + bf2_ref[...]


# --------------------------------- JAX glue ---------------------------------

def _conv1_patches(x):
    # x: (B, 1, 28, 28) -> (B, 768, 25) bf16 im2col patches for conv1.
    # Per-batch row order is (pc, i, j16) with pc = 2*pu+pv the 2x2-pool
    # candidate, (i, j) the pooled 12x12 position, and j zero-padded 12 -> 16 so
    # every in-kernel reshape keeps the minor dim and regroups rows in 8-aligned
    # chunks (layout-trivial).  Feature k = di*5+dj of the 5x5 conv1 patch.
    B = x.shape[0]
    img = x[:, 0]                                            # (B, 28, 28)
    cols = [img[:, di:di + 24, dj:dj + 24]
            for di in range(5) for dj in range(5)]
    p = jnp.stack(cols, axis=-1)                             # (B, 24, 24, 25)
    p = p.reshape(B, 12, 2, 12, 2, 25)                       # (b, i, pu, j, pv, k)
    p = p.transpose(0, 2, 4, 1, 3, 5)                        # (b, pu, pv, i, j, k)
    p = jnp.pad(p, ((0, 0),) * 4 + ((0, 4), (0, 0)))         # j 12 -> 16
    # TODO(synk): for very large batches, move this im2col into the kernel (DMA
    # the raw 28x28 images) to cut HBM traffic further; kept wrapper-side here.
    return p.reshape(B, 768, 25).astype(jnp.bfloat16)


def net_forward(x, params, block_batch=8):
    B = x.shape[0]
    TB = B if B <= block_batch else block_batch
    assert B % TB == 0, "batch must be a multiple of the batch tile"
    p1 = _conv1_patches(x)

    grid_spec = pltpu.PrefetchScalarGridSpec(
        num_scalar_prefetch=0,
        grid=(B // TB,),
        in_specs=[
            pl.BlockSpec((TB, 768, 25), lambda i: (i, 0, 0)),   # per-tile patches
            pl.BlockSpec((25, 10), lambda i: (0, 0)),           # w1 (bf16)
            pl.BlockSpec((1, 10), lambda i: (0, 0)),            # b1
            pl.BlockSpec((250, 20), lambda i: (0, 0)),          # w2
            pl.BlockSpec((1, 20), lambda i: (0, 0)),            # b2
            pl.BlockSpec((320, 50), lambda i: (0, 0)),          # wf1
            pl.BlockSpec((1, 50), lambda i: (0, 0)),            # bf1
            pl.BlockSpec((50, 10), lambda i: (0, 0)),           # wf2
            pl.BlockSpec((1, 10), lambda i: (0, 0)),            # bf2
        ],
        out_specs=pl.BlockSpec((TB, 10), lambda i: (i, 0)),
    )
    return pl.pallas_call(
        _net_kernel,
        out_shape=jax.ShapeDtypeStruct((B, 10), jnp.float32),
        grid_spec=grid_spec,
        compiler_params=pltpu.CompilerParams(
            dimension_semantics=("parallel",),       # second TC on v7x
            vmem_limit_bytes=32 * 1024 * 1024,       # explicit, large headroom
        ),
    )(p1, params["w1"], params["b1"], params["w2"], params["b2"],
      params["wf1"], params["bf1"], params["wf2"], params["bf2"])


def init_params(key):
    # Deterministic, PyTorch-default-style uniform(-1/sqrt(fan_in), 1/sqrt(fan_in))
    ks = jax.random.split(key, 8)

    def u(k, shape, fan_in):
        bound = 1.0 / jnp.sqrt(jnp.float32(fan_in))
        return jax.random.uniform(k, shape, jnp.float32, -bound, bound)

    conv1_w = u(ks[0], (10, 1, 5, 5), 25)
    conv1_b = u(ks[1], (10,), 25)
    conv2_w = u(ks[2], (20, 10, 5, 5), 250)
    conv2_b = u(ks[3], (20,), 250)
    fc1_w = u(ks[4], (50, 320), 320)
    fc1_b = u(ks[5], (50,), 320)
    fc2_w = u(ks[6], (10, 50), 50)
    fc2_b = u(ks[7], (10,), 50)
    return {
        # conv1: (Cout, Cin, kh, kw) -> (kh*kw, Cout), bf16 MXU operand
        "w1": conv1_w.reshape(10, 25).T.astype(jnp.bfloat16),          # (25, 10)
        "b1": conv1_b.reshape(1, 10),
        # conv2: -> (K = di*50 + dj*10 + cin, Cout) for the single K=250 matmul
        "w2": conv2_w.transpose(2, 3, 1, 0).reshape(250, 20),          # (250, 20)
        "b2": conv2_b.reshape(1, 20),
        # fc1: fold PyTorch's channel-major flatten (feat = c*16 + h*4 + w) into
        # the weight: row index = (h*4 + w)*20 + c.
        "wf1": fc1_w.reshape(50, 20, 4, 4).transpose(2, 3, 1, 0).reshape(320, 50),
        "bf1": fc1_b.reshape(1, 50),
        "wf2": fc2_w.T,                                                # (50, 10)
        "bf2": fc2_b.reshape(1, 10),
    }


if __name__ == "__main__":
    key = jax.random.PRNGKey(0)
    pkey, xkey = jax.random.split(key)
    params = init_params(pkey)
    # fc1 expects 320 = 20*4*4 features, which pins the input to 28x28 (MNIST).
    x = jax.random.normal(xkey, (2, 1, 28, 28), jnp.float32)
    out = jax.jit(net_forward)(x, params)
    jax.block_until_ready(out)
    assert out.shape == (2, 10) and out.dtype == jnp.float32
    print("KERNEL_OK")
</pallas_src>

<mosaic_0001>
module attributes {stable_mosaic.version = 11 : i64} {
  func.func @_net_kernel(%arg0: i32, %arg1: memref<2x768x25xbf16, #tpu.memory_space<vmem>>, %arg2: memref<25x10xbf16, #tpu.memory_space<vmem>>, %arg3: memref<1x10xf32, #tpu.memory_space<vmem>>, %arg4: memref<250x20xf32, #tpu.memory_space<vmem>>, %arg5: memref<1x20xf32, #tpu.memory_space<vmem>>, %arg6: memref<320x50xf32, #tpu.memory_space<vmem>>, %arg7: memref<1x50xf32, #tpu.memory_space<vmem>>, %arg8: memref<50x10xf32, #tpu.memory_space<vmem>>, %arg9: memref<1x10xf32, #tpu.memory_space<vmem>>, %arg10: memref<2x10xf32, #tpu.memory_space<vmem>>) attributes {dimension_semantics = [#tpu.dimension_semantics<parallel>], iteration_bounds = array<i64: 1>, scalar_prefetch = 0 : i64, scratch_operands = 0 : i64, tpu.core_type = #tpu.core_type<tc>, window_params = [{transform_indices = @transform_0, window_bounds = array<i64: 2, 768, 25>}, {pipeline_mode = #tpu.pipeline_mode<synchronous>, transform_indices = @transform_1, window_bounds = array<i64: 25, 10>}, {pipeline_mode = #tpu.pipeline_mode<synchronous>, transform_indices = @transform_2, window_bounds = array<i64: 1, 10>}, {pipeline_mode = #tpu.pipeline_mode<synchronous>, transform_indices = @transform_3, window_bounds = array<i64: 250, 20>}, {pipeline_mode = #tpu.pipeline_mode<synchronous>, transform_indices = @transform_4, window_bounds = array<i64: 1, 20>}, {pipeline_mode = #tpu.pipeline_mode<synchronous>, transform_indices = @transform_5, window_bounds = array<i64: 320, 50>}, {pipeline_mode = #tpu.pipeline_mode<synchronous>, transform_indices = @transform_6, window_bounds = array<i64: 1, 50>}, {pipeline_mode = #tpu.pipeline_mode<synchronous>, transform_indices = @transform_7, window_bounds = array<i64: 50, 10>}, {pipeline_mode = #tpu.pipeline_mode<synchronous>, transform_indices = @transform_8, window_bounds = array<i64: 1, 10>}, {transform_indices = @transform_9, window_bounds = array<i64: 2, 10>}]} {
    %c0 = arith.constant 0 : index
    %c0_0 = arith.constant 0 : index
    %c0_1 = arith.constant 0 : index
    %0 = vector.load %arg1[%c0, %c0_0, %c0_1] : memref<2x768x25xbf16, #tpu.memory_space<vmem>>, vector<2x768x25xbf16>
    %1 = vector.shape_cast %0 : vector<2x768x25xbf16> to vector<1536x25xbf16>
    %c0_2 = arith.constant 0 : index
    %c0_3 = arith.constant 0 : index
    %2 = vector.load %arg2[%c0_2, %c0_3] : memref<25x10xbf16, #tpu.memory_space<vmem>>, vector<25x10xbf16>
    %cst = arith.constant dense<0.000000e+00> : vector<1536x10xf32>
    %3 = tpu.matmul %1, %2, %cst {dimension_numbers = #tpu.dot_dimension_numbers<[1], [0], [0], [1], [0, 0, 1, 1], [], []>} : vector<1536x25xbf16>, vector<25x10xbf16>, vector<1536x10xf32> -> vector<1536x10xf32>
    %c0_4 = arith.constant 0 : index
    %c0_5 = arith.constant 0 : index
    %4 = vector.load %arg3[%c0_4, %c0_5] : memref<1x10xf32, #tpu.memory_space<vmem>>, vector<1x10xf32>
    %5 = vector.broadcast %4 : vector<1x10xf32> to vector<1536x10xf32>
    %6 = arith.addf %3, %5 : vector<1536x10xf32>
    %7 = vector.shape_cast %6 : vector<1536x10xf32> to vector<2x4x192x10xf32>
    %8 = vector.extract_strided_slice %7 {offsets = [0, 0, 0, 0], sizes = [2, 1, 192, 10], strides = [1, 1, 1, 1]} : vector<2x4x192x10xf32> to vector<2x1x192x10xf32>
    %9 = vector.shape_cast %8 : vector<2x1x192x10xf32> to vector<2x192x10xf32>
    %10 = vector.extract_strided_slice %7 {offsets = [0, 1, 0, 0], sizes = [2, 1, 192, 10], strides = [1, 1, 1, 1]} : vector<2x4x192x10xf32> to vector<2x1x192x10xf32>
    %11 = vector.shape_cast %10 : vector<2x1x192x10xf32> to vector<2x192x10xf32>
    %12 = arith.maximumf %9, %11 : vector<2x192x10xf32>
    %13 = vector.extract_strided_slice %7 {offsets = [0, 2, 0, 0], sizes = [2, 1, 192, 10], strides = [1, 1, 1, 1]} : vector<2x4x192x10xf32> to vector<2x1x192x10xf32>
    %14 = vector.shape_cast %13 : vector<2x1x192x10xf32> to vector<2x192x10xf32>
    %15 = vector.extract_strided_slice %7 {offsets = [0, 3, 0, 0], sizes = [2, 1, 192, 10], strides = [1, 1, 1, 1]} : vector<2x4x192x10xf32> to vector<2x1x192x10xf32>
    %16 = vector.shape_cast %15 : vector<2x1x192x10xf32> to vector<2x192x10xf32>
    %17 = arith.maximumf %14, %16 : vector<2x192x10xf32>
    %18 = arith.maximumf %12, %17 : vector<2x192x10xf32>
    %cst_6 = arith.constant 0.000000e+00 : f32
    %19 = vector.broadcast %cst_6 : f32 to vector<2x192x10xf32>
    %20 = arith.maximumf %18, %19 : vector<2x192x10xf32>
    %21 = vector.shape_cast %20 : vector<2x192x10xf32> to vector<2x12x16x10xf32>
    %22 = vector.extract_strided_slice %21 {offsets = [0, 0, 0, 0], sizes = [2, 12, 8, 10], strides = [1, 1, 1, 1]} : vector<2x12x16x10xf32> to vector<2x12x8x10xf32>
    %23 = vector.extract_strided_slice %21 {offsets = [0, 0, 1, 0], sizes = [2, 12, 8, 10], strides = [1, 1, 1, 1]} : vector<2x12x16x10xf32> to vector<2x12x8x10xf32>
    %24 = vector.extract_strided_slice %21 {offsets = [0, 0, 2, 0], sizes = [2, 12, 8, 10], strides = [1, 1, 1, 1]} : vector<2x12x16x10xf32> to vector<2x12x8x10xf32>
    %25 = vector.extract_strided_slice %21 {offsets = [0, 0, 3, 0], sizes = [2, 12, 8, 10], strides = [1, 1, 1, 1]} : vector<2x12x16x10xf32> to vector<2x12x8x10xf32>
    %26 = vector.extract_strided_slice %21 {offsets = [0, 0, 4, 0], sizes = [2, 12, 8, 10], strides = [1, 1, 1, 1]} : vector<2x12x16x10xf32> to vector<2x12x8x10xf32>
    %27 = vector.extract_strided_slice %22 {offsets = [0, 0, 0, 0], sizes = [2, 8, 8, 10], strides = [1, 1, 1, 1]} : vector<2x12x8x10xf32> to vector<2x8x8x10xf32>
    %28 = vector.shape_cast %27 : vector<2x8x8x10xf32> to vector<128x10xf32>
    %29 = vector.extract_strided_slice %23 {offsets = [0, 0, 0, 0], sizes = [2, 8, 8, 10], strides = [1, 1, 1, 1]} : vector<2x12x8x10xf32> to vector<2x8x8x10xf32>
    %30 = vector.shape_cast %29 : vector<2x8x8x10xf32> to vector<128x10xf32>
    %31 = vector.extract_strided_slice %24 {offsets = [0, 0, 0, 0], sizes = [2, 8, 8, 10], strides = [1, 1, 1, 1]} : vector<2x12x8x10xf32> to vector<2x8x8x10xf32>
    %32 = vector.shape_cast %31 : vector<2x8x8x10xf32> to vector<128x10xf32>
    %33 = vector.extract_strided_slice %25 {offsets = [0, 0, 0, 0], sizes = [2, 8, 8, 10], strides = [1, 1, 1, 1]} : vector<2x12x8x10xf32> to vector<2x8x8x10xf32>
    %34 = vector.shape_cast %33 : vector<2x8x8x10xf32> to vector<128x10xf32>
    %35 = vector.extract_strided_slice %26 {offsets = [0, 0, 0, 0], sizes = [2, 8, 8, 10], strides = [1, 1, 1, 1]} : vector<2x12x8x10xf32> to vector<2x8x8x10xf32>
    %36 = vector.shape_cast %35 : vector<2x8x8x10xf32> to vector<128x10xf32>
    %37 = vector.extract_strided_slice %22 {offsets = [0, 1, 0, 0], sizes = [2, 8, 8, 10], strides = [1, 1, 1, 1]} : vector<2x12x8x10xf32> to vector<2x8x8x10xf32>
    %38 = vector.shape_cast %37 : vector<2x8x8x10xf32> to vector<128x10xf32>
    %39 = vector.extract_strided_slice %23 {offsets = [0, 1, 0, 0], sizes = [2, 8, 8, 10], strides = [1, 1, 1, 1]} : vector<2x12x8x10xf32> to vector<2x8x8x10xf32>
    %40 = vector.shape_cast %39 : vector<2x8x8x10xf32> to vector<128x10xf32>
    %41 = vector.extract_strided_slice %24 {offsets = [0, 1, 0, 0], sizes = [2, 8, 8, 10], strides = [1, 1, 1, 1]} : vector<2x12x8x10xf32> to vector<2x8x8x10xf32>
    %42 = vector.shape_cast %41 : vector<2x8x8x10xf32> to vector<128x10xf32>
    %43 = vector.extract_strided_slice %25 {offsets = [0, 1, 0, 0], sizes = [2, 8, 8, 10], strides = [1, 1, 1, 1]} : vector<2x12x8x10xf32> to vector<2x8x8x10xf32>
    %44 = vector.shape_cast %43 : vector<2x8x8x10xf32> to vector<128x10xf32>
    %45 = vector.extract_strided_slice %26 {offsets = [0, 1, 0, 0], sizes = [2, 8, 8, 10], strides = [1, 1, 1, 1]} : vector<2x12x8x10xf32> to vector<2x8x8x10xf32>
    %46 = vector.shape_cast %45 : vector<2x8x8x10xf32> to vector<128x10xf32>
    %47 = vector.extract_strided_slice %22 {offsets = [0, 2, 0, 0], sizes = [2, 8, 8, 10], strides = [1, 1, 1, 1]} : vector<2x12x8x10xf32> to vector<2x8x8x10xf32>
    %48 = vector.shape_cast %47 : vector<2x8x8x10xf32> to vector<128x10xf32>
    %49 = vector.extract_strided_slice %23 {offsets = [0, 2, 0, 0], sizes = [2, 8, 8, 10], strides = [1, 1, 1, 1]} : vector<2x12x8x10xf32> to vector<2x8x8x10xf32>
    %50 = vector.shape_cast %49 : vector<2x8x8x10xf32> to vector<128x10xf32>
    %51 = vector.extract_strided_slice %24 {offsets = [0, 2, 0, 0], sizes = [2, 8, 8, 10], strides = [1, 1, 1, 1]} : vector<2x12x8x10xf32> to vector<2x8x8x10xf32>
    %52 = vector.shape_cast %51 : vector<2x8x8x10xf32> to vector<128x10xf32>
    %53 = vector.extract_strided_slice %25 {offsets = [0, 2, 0, 0], sizes = [2, 8, 8, 10], strides = [1, 1, 1, 1]} : vector<2x12x8x10xf32> to vector<2x8x8x10xf32>
    %54 = vector.shape_cast %53 : vector<2x8x8x10xf32> to vector<128x10xf32>
    %55 = vector.extract_strided_slice %26 {offsets = [0, 2, 0, 0], sizes = [2, 8, 8, 10], strides = [1, 1, 1, 1]} : vector<2x12x8x10xf32> to vector<2x8x8x10xf32>
    %56 = vector.shape_cast %55 : vector<2x8x8x10xf32> to vector<128x10xf32>
    %57 = vector.extract_strided_slice %22 {offsets = [0, 3, 0, 0], sizes = [2, 8, 8, 10], strides = [1, 1, 1, 1]} : vector<2x12x8x10xf32> to vector<2x8x8x10xf32>
    %58 = vector.shape_cast %57 : vector<2x8x8x10xf32> to vector<128x10xf32>
    %59 = vector.extract_strided_slice %23 {offsets = [0, 3, 0, 0], sizes = [2, 8, 8, 10], strides = [1, 1, 1, 1]} : vector<2x12x8x10xf32> to vector<2x8x8x10xf32>
    %60 = vector.shape_cast %59 : vector<2x8x8x10xf32> to vector<128x10xf32>
    %61 = vector.extract_strided_slice %24 {offsets = [0, 3, 0, 0], sizes = [2, 8, 8, 10], strides = [1, 1, 1, 1]} : vector<2x12x8x10xf32> to vector<2x8x8x10xf32>
    %62 = vector.shape_cast %61 : vector<2x8x8x10xf32> to vector<128x10xf32>
    %63 = vector.extract_strided_slice %25 {offsets = [0, 3, 0, 0], sizes = [2, 8, 8, 10], strides = [1, 1, 1, 1]} : vector<2x12x8x10xf32> to vector<2x8x8x10xf32>
    %64 = vector.shape_cast %63 : vector<2x8x8x10xf32> to vector<128x10xf32>
    %65 = vector.extract_strided_slice %26 {offsets = [0, 3, 0, 0], sizes = [2, 8, 8, 10], strides = [1, 1, 1, 1]} : vector<2x12x8x10xf32> to vector<2x8x8x10xf32>
    %66 = vector.shape_cast %65 : vector<2x8x8x10xf32> to vector<128x10xf32>
    %67 = vector.extract_strided_slice %22 {offsets = [0, 4, 0, 0], sizes = [2, 8, 8, 10], strides = [1, 1, 1, 1]} : vector<2x12x8x10xf32> to vector<2x8x8x10xf32>
    %68 = vector.shape_cast %67 : vector<2x8x8x10xf32> to vector<128x10xf32>
    %69 = vector.extract_strided_slice %23 {offsets = [0, 4, 0, 0], sizes = [2, 8, 8, 10], strides = [1, 1, 1, 1]} : vector<2x12x8x10xf32> to vector<2x8x8x10xf32>
    %70 = vector.shape_cast %69 : vector<2x8x8x10xf32> to vector<128x10xf32>
    %71 = vector.extract_strided_slice %24 {offsets = [0, 4, 0, 0], sizes = [2, 8, 8, 10], strides = [1, 1, 1, 1]} : vector<2x12x8x10xf32> to vector<2x8x8x10xf32>
    %72 = vector.shape_cast %71 : vector<2x8x8x10xf32> to vector<128x10xf32>
    %73 = vector.extract_strided_slice %25 {offsets = [0, 4, 0, 0], sizes = [2, 8, 8, 10], strides = [1, 1, 1, 1]} : vector<2x12x8x10xf32> to vector<2x8x8x10xf32>
    %74 = vector.shape_cast %73 : vector<2x8x8x10xf32> to vector<128x10xf32>
    %75 = vector.extract_strided_slice %26 {offsets = [0, 4, 0, 0], sizes = [2, 8, 8, 10], strides = [1, 1, 1, 1]} : vector<2x12x8x10xf32> to vector<2x8x8x10xf32>
    %76 = vector.shape_cast %75 : vector<2x8x8x10xf32> to vector<128x10xf32>
    %77 = tpu.concatenate %28, %30, %32, %34, %36, %38, %40, %42, %44, %46, %48, %50, %52, %54, %56, %58 in 1 : vector<128x10xf32>, vector<128x10xf32>, vector<128x10xf32>, vector<128x10xf32>, vector<128x10xf32>, vector<128x10xf32>, vector<128x10xf32>, vector<128x10xf32>, vector<128x10xf32>, vector<128x10xf32>, vector<128x10xf32>, vector<128x10xf32>, vector<128x10xf32>, vector<128x10xf32>, vector<128x10xf32>, vector<128x10xf32> -> vector<128x160xf32>
    %78 = tpu.concatenate %60, %62, %64, %66, %68, %70, %72, %74, %76 in 1 : vector<128x10xf32>, vector<128x10xf32>, vector<128x10xf32>, vector<128x10xf32>, vector<128x10xf32>, vector<128x10xf32>, vector<128x10xf32>, vector<128x10xf32>, vector<128x10xf32> -> vector<128x90xf32>
    %79 = tpu.concatenate %77, %78 in 1 : vector<128x160xf32>, vector<128x90xf32> -> vector<128x250xf32>
    %c0_7 = arith.constant 0 : index
    %c0_8 = arith.constant 0 : index
    %80 = vector.load %arg4[%c0_7, %c0_8] : memref<250x20xf32, #tpu.memory_space<vmem>>, vector<250x20xf32>
    %cst_9 = arith.constant dense<0.000000e+00> : vector<128x20xf32>
    %81 = tpu.matmul %79, %80, %cst_9 {dimension_numbers = #tpu.dot_dimension_numbers<[1], [0], [0], [1], [0, 0, 1, 1], [], []>} : vector<128x250xf32>, vector<250x20xf32>, vector<128x20xf32> -> vector<128x20xf32>
    %c0_10 = arith.constant 0 : index
    %c0_11 = arith.constant 0 : index
    %82 = vector.load %arg5[%c0_10, %c0_11] : memref<1x20xf32, #tpu.memory_space<vmem>>, vector<1x20xf32>
    %83 = vector.broadcast %82 : vector<1x20xf32> to vector<128x20xf32>
    %84 = arith.addf %81, %83 : vector<128x20xf32>
    %85 = vector.shape_cast %84 : vector<128x20xf32> to vector<2x4x2x8x20xf32>
    %86 = vector.extract_strided_slice %85 {offsets = [0, 0, 0, 0, 0], sizes = [2, 4, 1, 8, 20], strides = [1, 1, 1, 1, 1]} : vector<2x4x2x8x20xf32> to vector<2x4x1x8x20xf32>
    %87 = vector.shape_cast %86 : vector<2x4x1x8x20xf32> to vector<2x4x8x20xf32>
    %88 = vector.extract_strided_slice %85 {offsets = [0, 0, 1, 0, 0], sizes = [2, 4, 1, 8, 20], strides = [1, 1, 1, 1, 1]} : vector<2x4x2x8x20xf32> to vector<2x4x1x8x20xf32>
    %89 = vector.shape_cast %88 : vector<2x4x1x8x20xf32> to vector<2x4x8x20xf32>
    %90 = arith.maximumf %87, %89 : vector<2x4x8x20xf32>
    %91 = vector.extract_strided_slice %90 {offsets = [0, 0, 0, 0], sizes = [2, 1, 1, 20], strides = [1, 1, 1, 1]} : vector<2x4x8x20xf32> to vector<2x1x1x20xf32>
    %92 = vector.shape_cast %91 : vector<2x1x1x20xf32> to vector<2x20xf32>
    %93 = vector.extract_strided_slice %90 {offsets = [0, 0, 1, 0], sizes = [2, 1, 1, 20], strides = [1, 1, 1, 1]} : vector<2x4x8x20xf32> to vector<2x1x1x20xf32>
    %94 = vector.shape_cast %93 : vector<2x1x1x20xf32> to vector<2x20xf32>
    %95 = arith.maximumf %92, %94 : vector<2x20xf32>
    %96 = vector.extract_strided_slice %90 {offsets = [0, 0, 2, 0], sizes = [2, 1, 1, 20], strides = [1, 1, 1, 1]} : vector<2x4x8x20xf32> to vector<2x1x1x20xf32>
    %97 = vector.shape_cast %96 : vector<2x1x1x20xf32> to vector<2x20xf32>
    %98 = vector.extract_strided_slice %90 {offsets = [0, 0, 3, 0], sizes = [2, 1, 1, 20], strides = [1, 1, 1, 1]} : vector<2x4x8x20xf32> to vector<2x1x1x20xf32>
    %99 = vector.shape_cast %98 : vector<2x1x1x20xf32> to vector<2x20xf32>
    %100 = arith.maximumf %97, %99 : vector<2x20xf32>
    %101 = vector.extract_strided_slice %90 {offsets = [0, 0, 4, 0], sizes = [2, 1, 1, 20], strides = [1, 1, 1, 1]} : vector<2x4x8x20xf32> to vector<2x1x1x20xf32>
    %102 = vector.shape_cast %101 : vector<2x1x1x20xf32> to vector<2x20xf32>
    %103 = vector.extract_strided_slice %90 {offsets = [0, 0, 5, 0], sizes = [2, 1, 1, 20], strides = [1, 1, 1, 1]} : vector<2x4x8x20xf32> to vector<2x1x1x20xf32>
    %104 = vector.shape_cast %103 : vector<2x1x1x20xf32> to vector<2x20xf32>
    %105 = arith.maximumf %102, %104 : vector<2x20xf32>
    %106 = vector.extract_strided_slice %90 {offsets = [0, 0, 6, 0], sizes = [2, 1, 1, 20], strides = [1, 1, 1, 1]} : vector<2x4x8x20xf32> to vector<2x1x1x20xf32>
    %107 = vector.shape_cast %106 : vector<2x1x1x20xf32> to vector<2x20xf32>
    %108 = vector.extract_strided_slice %90 {offsets = [0, 0, 7, 0], sizes = [2, 1, 1, 20], strides = [1, 1, 1, 1]} : vector<2x4x8x20xf32> to vector<2x1x1x20xf32>
    %109 = vector.shape_cast %108 : vector<2x1x1x20xf32> to vector<2x20xf32>
    %110 = arith.maximumf %107, %109 : vector<2x20xf32>
    %111 = vector.extract_strided_slice %90 {offsets = [0, 1, 0, 0], sizes = [2, 1, 1, 20], strides = [1, 1, 1, 1]} : vector<2x4x8x20xf32> to vector<2x1x1x20xf32>
    %112 = vector.shape_cast %111 : vector<2x1x1x20xf32> to vector<2x20xf32>
    %113 = vector.extract_strided_slice %90 {offsets = [0, 1, 1, 0], sizes = [2, 1, 1, 20], strides = [1, 1, 1, 1]} : vector<2x4x8x20xf32> to vector<2x1x1x20xf32>
    %114 = vector.shape_cast %113 : vector<2x1x1x20xf32> to vector<2x20xf32>
    %115 = arith.maximumf %112, %114 : vector<2x20xf32>
    %116 = vector.extract_strided_slice %90 {offsets = [0, 1, 2, 0], sizes = [2, 1, 1, 20], strides = [1, 1, 1, 1]} : vector<2x4x8x20xf32> to vector<2x1x1x20xf32>
    %117 = vector.shape_cast %116 : vector<2x1x1x20xf32> to vector<2x20xf32>
    %118 = vector.extract_strided_slice %90 {offsets = [0, 1, 3, 0], sizes = [2, 1, 1, 20], strides = [1, 1, 1, 1]} : vector<2x4x8x20xf32> to vector<2x1x1x20xf32>
    %119 = vector.shape_cast %118 : vector<2x1x1x20xf32> to vector<2x20xf32>
    %120 = arith.maximumf %117, %119 : vector<2x20xf32>
    %121 = vector.extract_strided_slice %90 {offsets = [0, 1, 4, 0], sizes = [2, 1, 1, 20], strides = [1, 1, 1, 1]} : vector<2x4x8x20xf32> to vector<2x1x1x20xf32>
    %122 = vector.shape_cast %121 : vector<2x1x1x20xf32> to vector<2x20xf32>
    %123 = vector.extract_strided_slice %90 {offsets = [0, 1, 5, 0], sizes = [2, 1, 1, 20], strides = [1, 1, 1, 1]} : vector<2x4x8x20xf32> to vector<2x1x1x20xf32>
    %124 = vector.shape_cast %123 : vector<2x1x1x20xf32> to vector<2x20xf32>
    %125 = arith.maximumf %122, %124 : vector<2x20xf32>
    %126 = vector.extract_strided_slice %90 {offsets = [0, 1, 6, 0], sizes = [2, 1, 1, 20], strides = [1, 1, 1, 1]} : vector<2x4x8x20xf32> to vector<2x1x1x20xf32>
    %127 = vector.shape_cast %126 : vector<2x1x1x20xf32> to vector<2x20xf32>
    %128 = vector.extract_strided_slice %90 {offsets = [0, 1, 7, 0], sizes = [2, 1, 1, 20], strides = [1, 1, 1, 1]} : vector<2x4x8x20xf32> to vector<2x1x1x20xf32>
    %129 = vector.shape_cast %128 : vector<2x1x1x20xf32> to vector<2x20xf32>
    %130 = arith.maximumf %127, %129 : vector<2x20xf32>
    %131 = vector.extract_strided_slice %90 {offsets = [0, 2, 0, 0], sizes = [2, 1, 1, 20], strides = [1, 1, 1, 1]} : vector<2x4x8x20xf32> to vector<2x1x1x20xf32>
    %132 = vector.shape_cast %131 : vector<2x1x1x20xf32> to vector<2x20xf32>
    %133 = vector.extract_strided_slice %90 {offsets = [0, 2, 1, 0], sizes = [2, 1, 1, 20], strides = [1, 1, 1, 1]} : vector<2x4x8x20xf32> to vector<2x1x1x20xf32>
    %134 = vector.shape_cast %133 : vector<2x1x1x20xf32> to vector<2x20xf32>
    %135 = arith.maximumf %132, %134 : vector<2x20xf32>
    %136 = vector.extract_strided_slice %90 {offsets = [0, 2, 2, 0], sizes = [2, 1, 1, 20], strides = [1, 1, 1, 1]} : vector<2x4x8x20xf32> to vector<2x1x1x20xf32>
    %137 = vector.shape_cast %136 : vector<2x1x1x20xf32> to vector<2x20xf32>
    %138 = vector.extract_strided_slice %90 {offsets = [0, 2, 3, 0], sizes = [2, 1, 1, 20], strides = [1, 1, 1, 1]} : vector<2x4x8x20xf32> to vector<2x1x1x20xf32>
    %139 = vector.shape_cast %138 : vector<2x1x1x20xf32> to vector<2x20xf32>
    %140 = arith.maximumf %137, %139 : vector<2x20xf32>
    %141 = vector.extract_strided_slice %90 {offsets = [0, 2, 4, 0], sizes = [2, 1, 1, 20], strides = [1, 1, 1, 1]} : vector<2x4x8x20xf32> to vector<2x1x1x20xf32>
    %142 = vector.shape_cast %141 : vector<2x1x1x20xf32> to vector<2x20xf32>
    %143 = vector.extract_strided_slice %90 {offsets = [0, 2, 5, 0], sizes = [2, 1, 1, 20], strides = [1, 1, 1, 1]} : vector<2x4x8x20xf32> to vector<2x1x1x20xf32>
    %144 = vector.shape_cast %143 : vector<2x1x1x20xf32> to vector<2x20xf32>
    %145 = arith.maximumf %142, %144 : vector<2x20xf32>
    %146 = vector.extract_strided_slice %90 {offsets = [0, 2, 6, 0], sizes = [2, 1, 1, 20], strides = [1, 1, 1, 1]} : vector<2x4x8x20xf32> to vector<2x1x1x20xf32>
    %147 = vector.shape_cast %146 : vector<2x1x1x20xf32> to vector<2x20xf32>
    %148 = vector.extract_strided_slice %90 {offsets = [0, 2, 7, 0], sizes = [2, 1, 1, 20], strides = [1, 1, 1, 1]} : vector<2x4x8x20xf32> to vector<2x1x1x20xf32>
    %149 = vector.shape_cast %148 : vector<2x1x1x20xf32> to vector<2x20xf32>
    %150 = arith.maximumf %147, %149 : vector<2x20xf32>
    %151 = vector.extract_strided_slice %90 {offsets = [0, 3, 0, 0], sizes = [2, 1, 1, 20], strides = [1, 1, 1, 1]} : vector<2x4x8x20xf32> to vector<2x1x1x20xf32>
    %152 = vector.shape_cast %151 : vector<2x1x1x20xf32> to vector<2x20xf32>
    %153 = vector.extract_strided_slice %90 {offsets = [0, 3, 1, 0], sizes = [2, 1, 1, 20], strides = [1, 1, 1, 1]} : vector<2x4x8x20xf32> to vector<2x1x1x20xf32>
    %154 = vector.shape_cast %153 : vector<2x1x1x20xf32> to vector<2x20xf32>
    %155 = arith.maximumf %152, %154 : vector<2x20xf32>
    %156 = vector.extract_strided_slice %90 {offsets = [0, 3, 2, 0], sizes = [2, 1, 1, 20], strides = [1, 1, 1, 1]} : vector<2x4x8x20xf32> to vector<2x1x1x20xf32>
    %157 = vector.shape_cast %156 : vector<2x1x1x20xf32> to vector<2x20xf32>
    %158 = vector.extract_strided_slice %90 {offsets = [0, 3, 3, 0], sizes = [2, 1, 1, 20], strides = [1, 1, 1, 1]} : vector<2x4x8x20xf32> to vector<2x1x1x20xf32>
    %159 = vector.shape_cast %158 : vector<2x1x1x20xf32> to vector<2x20xf32>
    %160 = arith.maximumf %157, %159 : vector<2x20xf32>
    %161 = vector.extract_strided_slice %90 {offsets = [0, 3, 4, 0], sizes = [2, 1, 1, 20], strides = [1, 1, 1, 1]} : vector<2x4x8x20xf32> to vector<2x1x1x20xf32>
    %162 = vector.shape_cast %161 : vector<2x1x1x20xf32> to vector<2x20xf32>
    %163 = vector.extract_strided_slice %90 {offsets = [0, 3, 5, 0], sizes = [2, 1, 1, 20], strides = [1, 1, 1, 1]} : vector<2x4x8x20xf32> to vector<2x1x1x20xf32>
    %164 = vector.shape_cast %163 : vector<2x1x1x20xf32> to vector<2x20xf32>
    %165 = arith.maximumf %162, %164 : vector<2x20xf32>
    %166 = vector.extract_strided_slice %90 {offsets = [0, 3, 6, 0], sizes = [2, 1, 1, 20], strides = [1, 1, 1, 1]} : vector<2x4x8x20xf32> to vector<2x1x1x20xf32>
    %167 = vector.shape_cast %166 : vector<2x1x1x20xf32> to vector<2x20xf32>
    %168 = vector.extract_strided_slice %90 {offsets = [0, 3, 7, 0], sizes = [2, 1, 1, 20], strides = [1, 1, 1, 1]} : vector<2x4x8x20xf32> to vector<2x1x1x20xf32>
    %169 = vector.shape_cast %168 : vector<2x1x1x20xf32> to vector<2x20xf32>
    %170 = arith.maximumf %167, %169 : vector<2x20xf32>
    %171 = tpu.concatenate %95, %100, %105, %110, %115, %120, %125, %130, %135, %140, %145, %150, %155, %160, %165, %170 in 1 : vector<2x20xf32>, vector<2x20xf32>, vector<2x20xf32>, vector<2x20xf32>, vector<2x20xf32>, vector<2x20xf32>, vector<2x20xf32>, vector<2x20xf32>, vector<2x20xf32>, vector<2x20xf32>, vector<2x20xf32>, vector<2x20xf32>, vector<2x20xf32>, vector<2x20xf32>, vector<2x20xf32>, vector<2x20xf32> -> vector<2x320xf32>
    %cst_12 = arith.constant 0.000000e+00 : f32
    %172 = vector.broadcast %cst_12 : f32 to vector<2x320xf32>
    %173 = arith.maximumf %171, %172 : vector<2x320xf32>
    %c0_13 = arith.constant 0 : index
    %c0_14 = arith.constant 0 : index
    %174 = vector.load %arg6[%c0_13, %c0_14] : memref<320x50xf32, #tpu.memory_space<vmem>>, vector<320x50xf32>
    %cst_15 = arith.constant dense<0.000000e+00> : vector<2x50xf32>
    %175 = tpu.matmul %173, %174, %cst_15 {dimension_numbers = #tpu.dot_dimension_numbers<[1], [0], [0], [1], [0, 0, 1, 1], [], []>} : vector<2x320xf32>, vector<320x50xf32>, vector<2x50xf32> -> vector<2x50xf32>
    %c0_16 = arith.constant 0 : index
    %c0_17 = arith.constant 0 : index
    %176 = vector.load %arg7[%c0_16, %c0_17] : memref<1x50xf32, #tpu.memory_space<vmem>>, vector<1x50xf32>
    %177 = vector.broadcast %176 : vector<1x50xf32> to vector<2x50xf32>
    %178 = arith.addf %175, %177 : vector<2x50xf32>
    %cst_18 = arith.constant 0.000000e+00 : f32
    %179 = vector.broadcast %cst_18 : f32 to vector<2x50xf32>
    %180 = arith.maximumf %178, %179 : vector<2x50xf32>
    %c0_19 = arith.constant 0 : index
    %c0_20 = arith.constant 0 : index
    %181 = vector.load %arg8[%c0_19, %c0_20] : memref<50x10xf32, #tpu.memory_space<vmem>>, vector<50x10xf32>
    %cst_21 = arith.constant dense<0.000000e+00> : vector<2x10xf32>
    %182 = tpu.matmul %180, %181, %cst_21 {dimension_numbers = #tpu.dot_dimension_numbers<[1], [0], [0], [1], [0, 0, 1, 1], [], []>} : vector<2x50xf32>, vector<50x10xf32>, vector<2x10xf32> -> vector<2x10xf32>
    %c0_22 = arith.constant 0 : index
    %c0_23 = arith.constant 0 : index
    %183 = vector.load %arg9[%c0_22, %c0_23] : memref<1x10xf32, #tpu.memory_space<vmem>>, vector<1x10xf32>
    %184 = vector.broadcast %183 : vector<1x10xf32> to vector<2x10xf32>
    %185 = arith.addf %182, %184 : vector<2x10xf32>
    %c0_24 = arith.constant 0 : index
    %c0_25 = arith.constant 0 : index
    %186 = vector.load %arg10[%c0_24, %c0_25] : memref<2x10xf32, #tpu.memory_space<vmem>>, vector<2x10xf32>
    tpu.vector_store %arg10[%c0_24, %c0_25], %185 {strides = array<i32>} : memref<2x10xf32, #tpu.memory_space<vmem>>, vector<2x10xf32>,
    return
  }
  func.func @transform_0(%arg0: i32) -> (i32, i32, i32) {
    %c0_i32 = arith.constant 0 : i32
    %c0_i32_0 = arith.constant 0 : i32
    %c0_i32_1 = arith.constant 0 : i32
    return %arg0, %c0_i32, %c0_i32_0 : i32, i32, i32
  }
  func.func @transform_1(%arg0: i32) -> (i32, i32) {
    %c0_i32 = arith.constant 0 : i32
    %c0_i32_0 = arith.constant 0 : i32
    %c0_i32_1 = arith.constant 0 : i32
    return %c0_i32, %c0_i32_0 : i32, i32
  }
  func.func @transform_2(%arg0: i32) -> (i32, i32) {
    %c0_i32 = arith.constant 0 : i32
    %c0_i32_0 = arith.constant 0 : i32
    %c0_i32_1 = arith.constant 0 : i32
    return %c0_i32, %c0_i32_0 : i32, i32
  }
  func.func @transform_3(%arg0: i32) -> (i32, i32) {
    %c0_i32 = arith.constant 0 : i32
    %c0_i32_0 = arith.constant 0 : i32
    %c0_i32_1 = arith.constant 0 : i32
    return %c0_i32, %c0_i32_0 : i32, i32
  }
  func.func @transform_4(%arg0: i32) -> (i32, i32) {
    %c0_i32 = arith.constant 0 : i32
    %c0_i32_0 = arith.constant 0 : i32
    %c0_i32_1 = arith.constant 0 : i32
    return %c0_i32, %c0_i32_0 : i32, i32
  }
  func.func @transform_5(%arg0: i32) -> (i32, i32) {
    %c0_i32 = arith.constant 0 : i32
    %c0_i32_0 = arith.constant 0 : i32
    %c0_i32_1 = arith.constant 0 : i32
    return %c0_i32, %c0_i32_0 : i32, i32
  }
  func.func @transform_6(%arg0: i32) -> (i32, i32) {
    %c0_i32 = arith.constant 0 : i32
    %c0_i32_0 = arith.constant 0 : i32
    %c0_i32_1 = arith.constant 0 : i32
    return %c0_i32, %c0_i32_0 : i32, i32
  }
  func.func @transform_7(%arg0: i32) -> (i32, i32) {
    %c0_i32 = arith.constant 0 : i32
    %c0_i32_0 = arith.constant 0 : i32
    %c0_i32_1 = arith.constant 0 : i32
    return %c0_i32, %c0_i32_0 : i32, i32
  }
  func.func @transform_8(%arg0: i32) -> (i32, i32) {
    %c0_i32 = arith.constant 0 : i32
    %c0_i32_0 = arith.constant 0 : i32
    %c0_i32_1 = arith.constant 0 : i32
    return %c0_i32, %c0_i32_0 : i32, i32
  }
  func.func @transform_9(%arg0: i32) -> (i32, i32) {
    %c0_i32 = arith.constant 0 : i32
    %c0_i32_0 = arith.constant 0 : i32
    return %arg0, %c0_i32 : i32, i32
  }
}

</mosaic_0001>

<llo_original>
// kernel: net_forward.1
$region0: #{net_forward.1}
  #allocation0 [shape = 'u32[]', space=smem, size = 0x4, offset = 0x4, fixed_abs, tag = 'smem constant byte address 0x4 - core index']
  #allocation1 [shape = 'u32[144,128]{1,0:T(1,128)}', space=vmem, size = 0x12000, scoped, tag = 'internal scratch']
  %s0 = inlined_call_operand.vmem [shape: bf16[2,768,25], index: 0, kind: input, shape index: {}]
  %s1 = inlined_call_operand.vmem [shape: bf16[25,10], index: 1, kind: input, shape index: {}]
  %s2 = inlined_call_operand.vmem [shape: f32[1,10], index: 2, kind: input, shape index: {}]
  %s3 = inlined_call_operand.vmem [shape: f32[250,20], index: 3, kind: input, shape index: {}]
  %s4 = inlined_call_operand.vmem [shape: f32[1,20], index: 4, kind: input, shape index: {}]
  %s5 = inlined_call_operand.vmem [shape: f32[320,50], index: 5, kind: input, shape index: {}]
  %s6 = inlined_call_operand.vmem [shape: f32[1,50], index: 6, kind: input, shape index: {}]
  %s7 = inlined_call_operand.vmem [shape: f32[50,10], index: 7, kind: input, shape index: {}]
  %s8 = inlined_call_operand.vmem [shape: f32[1,10], index: 8, kind: input, shape index: {}]
  %s9 = inlined_call_operand.hbm [shape: f32[2,10], index: 9, kind: output, shape index: {}]
  %s10 = sld [smem:[#allocation0]]
  $region46: #{net_forward.1} parent=0
    _
  %s12 = ssub.s32 1, %s10
  %s13 = scalar_select 0, %s12, %s10
  $region1: #{net_forward.1} parent=0
    #allocation2 [shape = 'u8[1024]{0}', space=vmem, size = 0x400, scoped, tag = 'output window, operand 0, single buffered']
    #allocation3 [shape = 's32[1]{0}', space=sflag, size = 0x4, scoped, tag = 'scoped memory for net_forward.1']
    %14 = vsyncpa [#allocation3], 0
    // Predicated region
    $region2: #{net_forward.1} parent=1 // pred_check
      _
    $region3: #{net_forward.1} parent=1 // pred_check_branch
      %16 = sbr.rel (0) target = $region5
    $region4: #{net_forward.1} parent=1 // pred_region
      _
    $region5: #{net_forward.1} parent=1 // pred_fallthru
      _
    // Predicated region
    $region6: #{net_forward.1} parent=1 // pred_check
      _
    $region7: #{net_forward.1} parent=1 // pred_check_branch
      %18 = sbr.rel (0) target = $region9
    $region8: #{net_forward.1} parent=1 // pred_region
      _
    $region9: #{net_forward.1} parent=1 // pred_fallthru
      _
    // Predicated region
    $region10: #{net_forward.1} parent=1 // pred_check
      _
    $region11: #{net_forward.1} parent=1 // pred_check_branch
      %20 = sbr.rel (0) target = $region13
    $region12: #{net_forward.1} parent=1 // pred_region
      _
    $region13: #{net_forward.1} parent=1 // pred_fallthru
      _
    // Predicated region
    $region14: #{net_forward.1} parent=1 // pred_check
      _
    $region15: #{net_forward.1} parent=1 // pred_check_branch
      %22 = sbr.rel (0) target = $region17
    $region16: #{net_forward.1} parent=1 // pred_region
      _
    $region17: #{net_forward.1} parent=1 // pred_fallthru
      _
    // Predicated region
    $region18: #{net_forward.1} parent=1 // pred_check
      _
    $region19: #{net_forward.1} parent=1 // pred_check_branch
      %24 = sbr.rel (0) target = $region21
    $region20: #{net_forward.1} parent=1 // pred_region
      _
    $region21: #{net_forward.1} parent=1 // pred_fallthru
      _
    // Predicated region
    $region22: #{net_forward.1} parent=1 // pred_check
      _
    $region23: #{net_forward.1} parent=1 // pred_check_branch
      %26 = sbr.rel (0) target = $region25
    $region24: #{net_forward.1} parent=1 // pred_region
      _
    $region25: #{net_forward.1} parent=1 // pred_fallthru
      _
    // Predicated region
    $region26: #{net_forward.1} parent=1 // pred_check
      _
    $region27: #{net_forward.1} parent=1 // pred_check_branch
      %28 = sbr.rel (0) target = $region29
    $region28: #{net_forward.1} parent=1 // pred_region
      _
    $region29: #{net_forward.1} parent=1 // pred_fallthru
      _
    // Predicated region
    $region30: #{net_forward.1} parent=1 // pred_check
      _
    $region31: #{net_forward.1} parent=1 // pred_check_branch
      %30 = sbr.rel (0) target = $region33
    $region32: #{net_forward.1} parent=1 // pred_region
      _
    $region33: #{net_forward.1} parent=1 // pred_fallthru
      _
    // Predicated region
    $region34: #{net_forward.1} parent=1 // pred_check
      _
    $region35: #{net_forward.1} parent=1 // pred_check_branch
      %32 = sbr.rel (0) target = $region37
    $region36: #{net_forward.1} parent=1 // pred_region
      _
    $region37: #{net_forward.1} parent=1 // pred_fallthru
      _
    %v34 = vld [vmem:[%s0] sm:$0xf]
    %v35 = vld [vmem:[%s0 + $0x4] sm:$0xf]
    %v36 = vld [vmem:[%s0 + $0x8] sm:$0xf]
    %v37 = vld [vmem:[%s0 + $0xc] sm:$0xf]
    %v38 = vld [vmem:[%s0 + $0x10] sm:$0xf]
    %v39 = vld [vmem:[%s0 + $0x14] sm:$0xf]
    %v40 = vld [vmem:[%s0 + $0x18] sm:$0xf]
    %v41 = vld [vmem:[%s0 + $0x1c] sm:$0xf]
    %v42 = vld [vmem:[%s0 + $0x20] sm:$0xf]
    %v43 = vld [vmem:[%s0 + $0x24] sm:$0xf]
    %v44 = vld [vmem:[%s0 + $0x28] sm:$0xf]
    %v45 = vld [vmem:[%s0 + $0x2c] sm:$0xf]
    %v46 = vld [vmem:[%s0 + $0x30] sm:$0xf]
    %v47 = vld [vmem:[%s0 + $0x34] sm:$0xf]
    %v48 = vld [vmem:[%s0 + $0x38] sm:$0xf]
    %v49 = vld [vmem:[%s0 + $0x3c] sm:$0xf]
    %v50 = vld [vmem:[%s0 + $0x40] sm:$0xf]
    %v51 = vld [vmem:[%s0 + $0x44] sm:$0xf]
    %v52 = vld [vmem:[%s0 + $0x48] sm:$0xf]
    %v53 = vld [vmem:[%s0 + $0x4c] sm:$0xf]
    %v54 = vld [vmem:[%s0 + $0x50] sm:$0xf]
    %v55 = vld [vmem:[%s0 + $0x54] sm:$0xf]
    %v56 = vld [vmem:[%s0 + $0x58] sm:$0xf]
    %v57 = vld [vmem:[%s0 + $0x5c] sm:$0xf]
    %v58 = vld [vmem:[%s0 + $0x60] sm:$0xf]
    %v59 = vld [vmem:[%s0 + $0x64] sm:$0xf]
    %v60 = vld [vmem:[%s0 + $0x68] sm:$0xf]
    %v61 = vld [vmem:[%s0 + $0x6c] sm:$0xf]
    %v62 = vld [vmem:[%s0 + $0x70] sm:$0xf]
    %v63 = vld [vmem:[%s0 + $0x74] sm:$0xf]
    %v64 = vld [vmem:[%s0 + $0x78] sm:$0xf]
    %v65 = vld [vmem:[%s0 + $0x7c] sm:$0xf]
    %v66 = vld [vmem:[%s0 + $0x80] sm:$0xf]
    %v67 = vld [vmem:[%s0 + $0x84] sm:$0xf]
    %v68 = vld [vmem:[%s0 + $0x88] sm:$0xf]
    %v69 = vld [vmem:[%s0 + $0x8c] sm:$0xf]
    %v70 = vld [vmem:[%s0 + $0x90] sm:$0xf]
    %v71 = vld [vmem:[%s0 + $0x94] sm:$0xf]
    %v72 = vld [vmem:[%s0 + $0x98] sm:$0xf]
    %v73 = vld [vmem:[%s0 + $0x9c] sm:$0xf]
    %v74 = vld [vmem:[%s0 + $0xa0] sm:$0xf]
    %v75 = vld [vmem:[%s0 + $0xa4] sm:$0xf]
    %v76 = vld [vmem:[%s0 + $0xa8] sm:$0xf]
    %v77 = vld [vmem:[%s0 + $0xac] sm:$0xf]
    %v78 = vld [vmem:[%s0 + $0xb0] sm:$0xf]
    %v79 = vld [vmem:[%s0 + $0xb4] sm:$0xf]
    %v80 = vld [vmem:[%s0 + $0xb8] sm:$0xf]
    %v81 = vld [vmem:[%s0 + $0xbc] sm:$0xf]
    %v82 = vld [vmem:[%s0 + $0xc0] sm:$0xf]
    %v83 = vld [vmem:[%s0 + $0xc4] sm:$0xf]
    %v84 = vld [vmem:[%s0 + $0xc8] sm:$0xf]
    %v85 = vld [vmem:[%s0 + $0xcc] sm:$0xf]
    %v86 = vld [vmem:[%s0 + $0xd0] sm:$0xf]
    %v87 = vld [vmem:[%s0 + $0xd4] sm:$0xf]
    %v88 = vld [vmem:[%s0 + $0xd8] sm:$0xf]
    %v89 = vld [vmem:[%s0 + $0xdc] sm:$0xf]
    %v90 = vld [vmem:[%s0 + $0xe0] sm:$0xf]
    %v91 = vld [vmem:[%s0 + $0xe4] sm:$0xf]
    %v92 = vld [vmem:[%s0 + $0xe8] sm:$0xf]
    %v93 = vld [vmem:[%s0 + $0xec] sm:$0xf]
    %v94 = vld [vmem:[%s0 + $0xf0] sm:$0xf]
    %v95 = vld [vmem:[%s0 + $0xf4] sm:$0xf]
    %v96 = vld [vmem:[%s0 + $0xf8] sm:$0xf]
    %v97 = vld [vmem:[%s0 + $0xfc] sm:$0xf]
    %v98 = vld [vmem:[%s0 + $0x100] sm:$0xf]
    %v99 = vld [vmem:[%s0 + $0x104] sm:$0xf]
    %v100 = vld [vmem:[%s0 + $0x108] sm:$0xf]
    %v101 = vld [vmem:[%s0 + $0x10c] sm:$0xf]
    %v102 = vld [vmem:[%s0 + $0x110] sm:$0xf]
    %v103 = vld [vmem:[%s0 + $0x114] sm:$0xf]
    %v104 = vld [vmem:[%s0 + $0x118] sm:$0xf]
    %v105 = vld [vmem:[%s0 + $0x11c] sm:$0xf]
    %v106 = vld [vmem:[%s0 + $0x120] sm:$0xf]
    %v107 = vld [vmem:[%s0 + $0x124] sm:$0xf]
    %v108 = vld [vmem:[%s0 + $0x128] sm:$0xf]
    %v109 = vld [vmem:[%s0 + $0x12c] sm:$0xf]
    %v110 = vld [vmem:[%s0 + $0x130] sm:$0xf]
    %v111 = vld [vmem:[%s0 + $0x134] sm:$0xf]
    %v112 = vld [vmem:[%s0 + $0x138] sm:$0xf]
    %v113 = vld [vmem:[%s0 + $0x13c] sm:$0xf]
    %v114 = vld [vmem:[%s0 + $0x140] sm:$0xf]
    %v115 = vld [vmem:[%s0 + $0x144] sm:$0xf]
    %v116 = vld [vmem:[%s0 + $0x148] sm:$0xf]
    %v117 = vld [vmem:[%s0 + $0x14c] sm:$0xf]
    %v118 = vld [vmem:[%s0 + $0x150] sm:$0xf]
    %v119 = vld [vmem:[%s0 + $0x154] sm:$0xf]
    %v120 = vld [vmem:[%s0 + $0x158] sm:$0xf]
    %v121 = vld [vmem:[%s0 + $0x15c] sm:$0xf]
    %v122 = vld [vmem:[%s0 + $0x160] sm:$0xf]
    %v123 = vld [vmem:[%s0 + $0x164] sm:$0xf]
    %v124 = vld [vmem:[%s0 + $0x168] sm:$0xf]
    %v125 = vld [vmem:[%s0 + $0x16c] sm:$0xf]
    %v126 = vld [vmem:[%s0 + $0x170] sm:$0xf]
    %v127 = vld [vmem:[%s0 + $0x174] sm:$0xf]
    %v128 = vld [vmem:[%s0 + $0x178] sm:$0xf]
    %v129 = vld [vmem:[%s0 + $0x17c] sm:$0xf]
    %v130 = vld [vmem:[%s0 + $0x180] sm:$0xf]
    %v131 = vld [vmem:[%s0 + $0x184] sm:$0xf]
    %v132 = vld [vmem:[%s0 + $0x188] sm:$0xf]
    %v133 = vld [vmem:[%s0 + $0x18c] sm:$0xf]
    %v134 = vld [vmem:[%s0 + $0x190] sm:$0xf]
    %v135 = vld [vmem:[%s0 + $0x194] sm:$0xf]
    %v136 = vld [vmem:[%s0 + $0x198] sm:$0xf]
    %v137 = vld [vmem:[%s0 + $0x19c] sm:$0xf]
    %v138 = vld [vmem:[%s0 + $0x1a0] sm:$0xf]
    %v139 = vld [vmem:[%s0 + $0x1a4] sm:$0xf]
    %v140 = vld [vmem:[%s0 + $0x1a8] sm:$0xf]
    %v141 = vld [vmem:[%s0 + $0x1ac] sm:$0xf]
    %v142 = vld [vmem:[%s0 + $0x1b0] sm:$0xf]
    %v143 = vld [vmem:[%s0 + $0x1b4] sm:$0xf]
    %v144 = vld [vmem:[%s0 + $0x1b8] sm:$0xf]
    %v145 = vld [vmem:[%s0 + $0x1bc] sm:$0xf]
    %v146 = vld [vmem:[%s0 + $0x1c0] sm:$0xf]
    %v147 = vld [vmem:[%s0 + $0x1c4] sm:$0xf]
    %v148 = vld [vmem:[%s0 + $0x1c8] sm:$0xf]
    %v149 = vld [vmem:[%s0 + $0x1cc] sm:$0xf]
    %v150 = vld [vmem:[%s0 + $0x1d0] sm:$0xf]
    %v151 = vld [vmem:[%s0 + $0x1d4] sm:$0xf]
    %v152 = vld [vmem:[%s0 + $0x1d8] sm:$0xf]
    %v153 = vld [vmem:[%s0 + $0x1dc] sm:$0xf]
    %v154 = vld [vmem:[%s0 + $0x1e0] sm:$0xf]
    %v155 = vld [vmem:[%s0 + $0x1e4] sm:$0xf]
    %v156 = vld [vmem:[%s0 + $0x1e8] sm:$0xf]
    %v157 = vld [vmem:[%s0 + $0x1ec] sm:$0xf]
    %v158 = vld [vmem:[%s0 + $0x1f0] sm:$0xf]
    %v159 = vld [vmem:[%s0 + $0x1f4] sm:$0xf]
    %v160 = vld [vmem:[%s0 + $0x1f8] sm:$0xf]
    %v161 = vld [vmem:[%s0 + $0x1fc] sm:$0xf]
    %v162 = vld [vmem:[%s0 + $0x200] sm:$0xf]
    %v163 = vld [vmem:[%s0 + $0x204] sm:$0xf]
    %v164 = vld [vmem:[%s0 + $0x208] sm:$0xf]
    %v165 = vld [vmem:[%s0 + $0x20c] sm:$0xf]
    %v166 = vld [vmem:[%s0 + $0x210] sm:$0xf]
    %v167 = vld [vmem:[%s0 + $0x214] sm:$0xf]
    %v168 = vld [vmem:[%s0 + $0x218] sm:$0xf]
    %v169 = vld [vmem:[%s0 + $0x21c] sm:$0xf]
    %v170 = vld [vmem:[%s0 + $0x220] sm:$0xf]
    %v171 = vld [vmem:[%s0 + $0x224] sm:$0xf]
    %v172 = vld [vmem:[%s0 + $0x228] sm:$0xf]
    %v173 = vld [vmem:[%s0 + $0x22c] sm:$0xf]
    %v174 = vld [vmem:[%s0 + $0x230] sm:$0xf]
    %v175 = vld [vmem:[%s0 + $0x234] sm:$0xf]
    %v176 = vld [vmem:[%s0 + $0x238] sm:$0xf]
    %v177 = vld [vmem:[%s0 + $0x23c] sm:$0xf]
    %v178 = vld [vmem:[%s0 + $0x240] sm:$0xf]
    %v179 = vld [vmem:[%s0 + $0x244] sm:$0xf]
    %v180 = vld [vmem:[%s0 + $0x248] sm:$0xf]
    %v181 = vld [vmem:[%s0 + $0x24c] sm:$0xf]
    %v182 = vld [vmem:[%s0 + $0x250] sm:$0xf]
    %v183 = vld [vmem:[%s0 + $0x254] sm:$0xf]
    %v184 = vld [vmem:[%s0 + $0x258] sm:$0xf]
    %v185 = vld [vmem:[%s0 + $0x25c] sm:$0xf]
    %v186 = vld [vmem:[%s0 + $0x260] sm:$0xf]
    %v187 = vld [vmem:[%s0 + $0x264] sm:$0xf]
    %v188 = vld [vmem:[%s0 + $0x268] sm:$0xf]
    %v189 = vld [vmem:[%s0 + $0x26c] sm:$0xf]
    %v190 = vld [vmem:[%s0 + $0x270] sm:$0xf]
    %v191 = vld [vmem:[%s0 + $0x274] sm:$0xf]
    %v192 = vld [vmem:[%s0 + $0x278] sm:$0xf]
    %v193 = vld [vmem:[%s0 + $0x27c] sm:$0xf]
    %v194 = vld [vmem:[%s0 + $0x280] sm:$0xf]
    %v195 = vld [vmem:[%s0 + $0x284] sm:$0xf]
    %v196 = vld [vmem:[%s0 + $0x288] sm:$0xf]
    %v197 = vld [vmem:[%s0 + $0x28c] sm:$0xf]
    %v198 = vld [vmem:[%s0 + $0x290] sm:$0xf]
    %v199 = vld [vmem:[%s0 + $0x294] sm:$0xf]
    %v200 = vld [vmem:[%s0 + $0x298] sm:$0xf]
    %v201 = vld [vmem:[%s0 + $0x29c] sm:$0xf]
    %v202 = vld [vmem:[%s0 + $0x2a0] sm:$0xf]
    %v203 = vld [vmem:[%s0 + $0x2a4] sm:$0xf]
    %v204 = vld [vmem:[%s0 + $0x2a8] sm:$0xf]
    %v205 = vld [vmem:[%s0 + $0x2ac] sm:$0xf]
    %v206 = vld [vmem:[%s0 + $0x2b0] sm:$0xf]
    %v207 = vld [vmem:[%s0 + $0x2b4] sm:$0xf]
    %v208 = vld [vmem:[%s0 + $0x2b8] sm:$0xf]
    %v209 = vld [vmem:[%s0 + $0x2bc] sm:$0xf]
    %v210 = vld [vmem:[%s0 + $0x2c0] sm:$0xf]
    %v211 = vld [vmem:[%s0 + $0x2c4] sm:$0xf]
    %v212 = vld [vmem:[%s0 + $0x2c8] sm:$0xf]
    %v213 = vld [vmem:[%s0 + $0x2cc] sm:$0xf]
    %v214 = vld [vmem:[%s0 + $0x2d0] sm:$0xf]
    %v215 = vld [vmem:[%s0 + $0x2d4] sm:$0xf]
    %v216 = vld [vmem:[%s0 + $0x2d8] sm:$0xf]
    %v217 = vld [vmem:[%s0 + $0x2dc] sm:$0xf]
    %v218 = vld [vmem:[%s0 + $0x2e0] sm:$0xf]
    %v219 = vld [vmem:[%s0 + $0x2e4] sm:$0xf]
    %v220 = vld [vmem:[%s0 + $0x2e8] sm:$0xf]
    %v221 = vld [vmem:[%s0 + $0x2ec] sm:$0xf]
    %v222 = vld [vmem:[%s0 + $0x2f0] sm:$0xf]
    %v223 = vld [vmem:[%s0 + $0x2f4] sm:$0xf]
    %v224 = vld [vmem:[%s0 + $0x2f8] sm:$0xf]
    %v225 = vld [vmem:[%s0 + $0x2fc] sm:$0xf]
    %v226 = vld [vmem:[%s1] sm:$0xf]
    %v227 = vld [vmem:[%s1 + $0x4] sm:$0xf]
    %v228 = vld [vmem:[%s1 + $0x8] sm:$0xf]
    %v229 = vld [vmem:[%s1 + $0xc] sm:$0x1]
    %v230 = vld [vmem:[%s2] sm:$0x1]
    %v232 = vlaneseq
    %v233 = vshrl.u32 %v232, 7
    %v234 = vsub.s32 0, %v233
    %v235 = vrot.slane %v230, %v234
    %v429 = vunpack.c.l.b16 %v34
    %v430 = vunpack.c.l.b16 %v35
    %v431 = vunpack.c.l.b16 %v36
    %v432 = vunpack.c.l.b16 %v37
    %v433 = vunpack.c.l.b16 %v38
    %v434 = vunpack.c.l.b16 %v39
    %v435 = vunpack.c.l.b16 %v40
    %v436 = vunpack.c.l.b16 %v41
    %v437 = vunpack.c.l.b16 %v42
    %v438 = vunpack.c.l.b16 %v43
    %v439 = vunpack.c.l.b16 %v44
    %v440 = vunpack.c.l.b16 %v45
    %v441 = vunpack.c.l.b16 %v46
    %v442 = vunpack.c.l.b16 %v47
    %v443 = vunpack.c.l.b16 %v48
    %v444 = vunpack.c.l.b16 %v49
    %v445 = vunpack.c.l.b16 %v50
    %v446 = vunpack.c.l.b16 %v51
    %v447 = vunpack.c.l.b16 %v52
    %v448 = vunpack.c.l.b16 %v53
    %v449 = vunpack.c.l.b16 %v54
    %v450 = vunpack.c.l.b16 %v55
    %v451 = vunpack.c.l.b16 %v56
    %v452 = vunpack.c.l.b16 %v57
    %v453 = vunpack.c.l.b16 %v58
    %v454 = vunpack.c.l.b16 %v59
    %v455 = vunpack.c.l.b16 %v60
    %v456 = vunpack.c.l.b16 %v61
    %v457 = vunpack.c.l.b16 %v62
    %v458 = vunpack.c.l.b16 %v63
    %v459 = vunpack.c.l.b16 %v64
    %v460 = vunpack.c.l.b16 %v65
    %v461 = vunpack.c.l.b16 %v66
    %v462 = vunpack.c.l.b16 %v67
    %v463 = vunpack.c.l.b16 %v68
    %v464 = vunpack.c.l.b16 %v69
    %v465 = vunpack.c.l.b16 %v70
    %v466 = vunpack.c.l.b16 %v71
    %v467 = vunpack.c.l.b16 %v72
    %v468 = vunpack.c.l.b16 %v73
    %v469 = vunpack.c.l.b16 %v74
    %v470 = vunpack.c.l.b16 %v75
    %v471 = vunpack.c.l.b16 %v76
    %v472 = vunpack.c.l.b16 %v77
    %v473 = vunpack.c.l.b16 %v78
    %v474 = vunpack.c.l.b16 %v79
    %v475 = vunpack.c.l.b16 %v80
    %v476 = vunpack.c.l.b16 %v81
    %v477 = vunpack.c.l.b16 %v82
    %v478 = vunpack.c.l.b16 %v83
    %v479 = vunpack.c.l.b16 %v84
    %v480 = vunpack.c.l.b16 %v85
    %v481 = vunpack.c.l.b16 %v86
    %v482 = vunpack.c.l.b16 %v87
    %v483 = vunpack.c.l.b16 %v88
    %v484 = vunpack.c.l.b16 %v89
    %v485 = vunpack.c.l.b16 %v90
    %v486 = vunpack.c.l.b16 %v91
    %v487 = vunpack.c.l.b16 %v92
    %v488 = vunpack.c.l.b16 %v93
    %v489 = vunpack.c.l.b16 %v94
    %v490 = vunpack.c.l.b16 %v95
    %v491 = vunpack.c.l.b16 %v96
    %v492 = vunpack.c.l.b16 %v97
    %v493 = vunpack.c.l.b16 %v98
    %v494 = vunpack.c.l.b16 %v99
    %v495 = vunpack.c.l.b16 %v100
    %v496 = vunpack.c.l.b16 %v101
    %v497 = vunpack.c.l.b16 %v102
    %v498 = vunpack.c.l.b16 %v103
    %v499 = vunpack.c.l.b16 %v104
    %v500 = vunpack.c.l.b16 %v105
    %v501 = vunpack.c.l.b16 %v106
    %v502 = vunpack.c.l.b16 %v107
    %v503 = vunpack.c.l.b16 %v108
    %v504 = vunpack.c.l.b16 %v109
    %v505 = vunpack.c.l.b16 %v110
    %v506 = vunpack.c.l.b16 %v111
    %v507 = vunpack.c.l.b16 %v112
    %v508 = vunpack.c.l.b16 %v113
    %v509 = vunpack.c.l.b16 %v114
    %v510 = vunpack.c.l.b16 %v115
    %v511 = vunpack.c.l.b16 %v116
    %v512 = vunpack.c.l.b16 %v117
    %v513 = vunpack.c.l.b16 %v118
    %v514 = vunpack.c.l.b16 %v119
    %v515 = vunpack.c.l.b16 %v120
    %v516 = vunpack.c.l.b16 %v121
    %v517 = vunpack.c.l.b16 %v122
    %v518 = vunpack.c.l.b16 %v123
    %v519 = vunpack.c.l.b16 %v124
    %v520 = vunpack.c.l.b16 %v125
    %v521 = vunpack.c.l.b16 %v126
    %v522 = vunpack.c.l.b16 %v127
    %v523 = vunpack.c.l.b16 %v128
    %v524 = vunpack.c.l.b16 %v129
    %v525 = vunpack.c.l.b16 %v130
    %v526 = vunpack.c.l.b16 %v131
    %v527 = vunpack.c.l.b16 %v132
    %v528 = vunpack.c.l.b16 %v133
    %v529 = vunpack.c.l.b16 %v134
    %v530 = vunpack.c.l.b16 %v135
    %v531 = vunpack.c.l.b16 %v136
    %v532 = vunpack.c.l.b16 %v137
    %v533 = vunpack.c.l.b16 %v138
    %v534 = vunpack.c.l.b16 %v139
    %v535 = vunpack.c.l.b16 %v140
    %v536 = vunpack.c.l.b16 %v141
    %v537 = vunpack.c.l.b16 %v142
    %v538 = vunpack.c.l.b16 %v143
    %v539 = vunpack.c.l.b16 %v144
    %v540 = vunpack.c.l.b16 %v145
    %v541 = vunpack.c.l.b16 %v146
    %v542 = vunpack.c.l.b16 %v147
    %v543 = vunpack.c.l.b16 %v148
    %v544 = vunpack.c.l.b16 %v149
    %v545 = vunpack.c.l.b16 %v150
    %v546 = vunpack.c.l.b16 %v151
    %v547 = vunpack.c.l.b16 %v152
    %v548 = vunpack.c.l.b16 %v153
    %v549 = vunpack.c.l.b16 %v154
    %v550 = vunpack.c.l.b16 %v155
    %v551 = vunpack.c.l.b16 %v156
    %v552 = vunpack.c.l.b16 %v157
    %v553 = vunpack.c.l.b16 %v158
    %v554 = vunpack.c.l.b16 %v159
    %v555 = vunpack.c.l.b16 %v160
    %v556 = vunpack.c.l.b16 %v161
    %v557 = vunpack.c.l.b16 %v162
    %v558 = vunpack.c.l.b16 %v163
    %v559 = vunpack.c.l.b16 %v164
    %v560 = vunpack.c.l.b16 %v165
    %v561 = vunpack.c.l.b16 %v166
    %v562 = vunpack.c.l.b16 %v167
    %v563 = vunpack.c.l.b16 %v168
    %v564 = vunpack.c.l.b16 %v169
    %v565 = vunpack.c.l.b16 %v170
    %v566 = vunpack.c.l.b16 %v171
    %v567 = vunpack.c.l.b16 %v172
    %v568 = vunpack.c.l.b16 %v173
    %v569 = vunpack.c.l.b16 %v174
    %v570 = vunpack.c.l.b16 %v175
    %v571 = vunpack.c.l.b16 %v176
    %v572 = vunpack.c.l.b16 %v177
    %v573 = vunpack.c.l.b16 %v178
    %v574 = vunpack.c.l.b16 %v179
    %v575 = vunpack.c.l.b16 %v180
    %v576 = vunpack.c.l.b16 %v181
    %v577 = vunpack.c.l.b16 %v182
    %v578 = vunpack.c.l.b16 %v183
    %v579 = vunpack.c.l.b16 %v184
    %v580 = vunpack.c.l.b16 %v185
    %v581 = vunpack.c.l.b16 %v186
    %v582 = vunpack.c.l.b16 %v187
    %v583 = vunpack.c.l.b16 %v188
    %v584 = vunpack.c.l.b16 %v189
    %v585 = vunpack.c.l.b16 %v190
    %v586 = vunpack.c.l.b16 %v191
    %v587 = vunpack.c.l.b16 %v192
    %v588 = vunpack.c.l.b16 %v193
    %v589 = vunpack.c.l.b16 %v194
    %v590 = vunpack.c.l.b16 %v195
    %v591 = vunpack.c.l.b16 %v196
    %v592 = vunpack.c.l.b16 %v197
    %v593 = vunpack.c.l.b16 %v198
    %v594 = vunpack.c.l.b16 %v199
    %v595 = vunpack.c.l.b16 %v200
    %v596 = vunpack.c.l.b16 %v201
    %v597 = vunpack.c.l.b16 %v202
    %v598 = vunpack.c.l.b16 %v203
    %v599 = vunpack.c.l.b16 %v204
    %v600 = vunpack.c.l.b16 %v205
    %v601 = vunpack.c.l.b16 %v206
    %v602 = vunpack.c.l.b16 %v207
    %v603 = vunpack.c.l.b16 %v208
    %v604 = vunpack.c.l.b16 %v209
    %v605 = vunpack.c.l.b16 %v210
    %v606 = vunpack.c.l.b16 %v211
    %v607 = vunpack.c.l.b16 %v212
    %v608 = vunpack.c.l.b16 %v213
    %v609 = vunpack.c.l.b16 %v214
    %v610 = vunpack.c.l.b16 %v215
    %v611 = vunpack.c.l.b16 %v216
    %v612 = vunpack.c.l.b16 %v217
    %v613 = vunpack.c.l.b16 %v218
    %v614 = vunpack.c.l.b16 %v219
    %v615 = vunpack.c.l.b16 %v220
    %v616 = vunpack.c.l.b16 %v221
    %v617 = vunpack.c.l.b16 %v222
    %v618 = vunpack.c.l.b16 %v223
    %v619 = vunpack.c.l.b16 %v224
    %v620 = vunpack.c.l.b16 %v225
    %v621 = vpack.c.b16 %v430, %v429
    %v622 = vpack.c.b16 %v432, %v431
    %v623 = vpack.c.b16 %v434, %v433
    %v624 = vpack.c.b16 %v436, %v435
    %v625 = vpack.c.b16 %v438, %v437
    %v626 = vpack.c.b16 %v440, %v439
    %v627 = vpack.c.b16 %v442, %v441
    %v628 = vpack.c.b16 %v444, %v443
    %v629 = vpack.c.b16 %v446, %v445
    %v630 = vpack.c.b16 %v448, %v447
    %v631 = vpack.c.b16 %v450, %v449
    %v632 = vpack.c.b16 %v452, %v451
    %v633 = vpack.c.b16 %v454, %v453
    %v634 = vpack.c.b16 %v456, %v455
    %v635 = vpack.c.b16 %v458, %v457
    %v636 = vpack.c.b16 %v460, %v459
    %v637 = vpack.c.b16 %v462, %v461
    %v638 = vpack.c.b16 %v464, %v463
    %v639 = vpack.c.b16 %v466, %v465
    %v640 = vpack.c.b16 %v468, %v467
    %v641 = vpack.c.b16 %v470, %v469
    %v642 = vpack.c.b16 %v472, %v471
    %v643 = vpack.c.b16 %v474, %v473
    %v644 = vpack.c.b16 %v476, %v475
    %v645 = vpack.c.b16 %v478, %v477
    %v646 = vpack.c.b16 %v480, %v479
    %v647 = vpack.c.b16 %v482, %v481
    %v648 = vpack.c.b16 %v484, %v483
    %v649 = vpack.c.b16 %v486, %v485
    %v650 = vpack.c.b16 %v488, %v487
    %v651 = vpack.c.b16 %v490, %v489
    %v652 = vpack.c.b16 %v492, %v491
    %v653 = vpack.c.b16 %v494, %v493
    %v654 = vpack.c.b16 %v496, %v495
    %v655 = vpack.c.b16 %v498, %v497
    %v656 = vpack.c.b16 %v500, %v499
    %v657 = vpack.c.b16 %v502, %v501
    %v658 = vpack.c.b16 %v504, %v503
    %v659 = vpack.c.b16 %v506, %v505
    %v660 = vpack.c.b16 %v508, %v507
    %v661 = vpack.c.b16 %v510, %v509
    %v662 = vpack.c.b16 %v512, %v511
    %v663 = vpack.c.b16 %v514, %v513
    %v664 = vpack.c.b16 %v516, %v515
    %v665 = vpack.c.b16 %v518, %v517
    %v666 = vpack.c.b16 %v520, %v519
    %v667 = vpack.c.b16 %v522, %v521
    %v668 = vpack.c.b16 %v524, %v523
    %v669 = vpack.c.b16 %v526, %v525
    %v670 = vpack.c.b16 %v528, %v527
    %v671 = vpack.c.b16 %v530, %v529
    %v672 = vpack.c.b16 %v532, %v531
    %v673 = vpack.c.b16 %v534, %v533
    %v674 = vpack.c.b16 %v536, %v535
    %v675 = vpack.c.b16 %v538, %v537
    %v676 = vpack.c.b16 %v540, %v539
    %v677 = vpack.c.b16 %v542, %v541
    %v678 = vpack.c.b16 %v544, %v543
    %v679 = vpack.c.b16 %v546, %v545
    %v680 = vpack.c.b16 %v548, %v547
    %v681 = vpack.c.b16 %v550, %v549
    %v682 = vpack.c.b16 %v552, %v551
    %v683 = vpack.c.b16 %v554, %v553
    %v684 = vpack.c.b16 %v556, %v555
    %v685 = vpack.c.b16 %v558, %v557
    %v686 = vpack.c.b16 %v560, %v559
    %v687 = vpack.c.b16 %v562, %v561
    %v688 = vpack.c.b16 %v564, %v563
    %v689 = vpack.c.b16 %v566, %v565
    %v690 = vpack.c.b16 %v568, %v567
    %v691 = vpack.c.b16 %v570, %v569
    %v692 = vpack.c.b16 %v572, %v571
    %v693 = vpack.c.b16 %v574, %v573
    %v694 = vpack.c.b16 %v576, %v575
    %v695 = vpack.c.b16 %v578, %v577
    %v696 = vpack.c.b16 %v580, %v579
    %v697 = vpack.c.b16 %v582, %v581
    %v698 = vpack.c.b16 %v584, %v583
    %v699 = vpack.c.b16 %v586, %v585
    %v700 = vpack.c.b16 %v588, %v587
    %v701 = vpack.c.b16 %v590, %v589
    %v702 = vpack.c.b16 %v592, %v591
    %v703 = vpack.c.b16 %v594, %v593
    %v704 = vpack.c.b16 %v596, %v595
    %v705 = vpack.c.b16 %v598, %v597
    %v706 = vpack.c.b16 %v600, %v599
    %v707 = vpack.c.b16 %v602, %v601
    %v708 = vpack.c.b16 %v604, %v603
    %v709 = vpack.c.b16 %v606, %v605
    %v710 = vpack.c.b16 %v608, %v607
    %v711 = vpack.c.b16 %v610, %v609
    %v712 = vpack.c.b16 %v612, %v611
    %v713 = vpack.c.b16 %v614, %v613
    %v714 = vpack.c.b16 %v616, %v615
    %v715 = vpack.c.b16 %v618, %v617
    %v716 = vpack.c.b16 %v620, %v619
    %v721 = vunpack.c.l.b16 %v226
    %v722 = vunpack.c.l.b16 %v227
    %v723 = vunpack.c.l.b16 %v228
    %v724 = vunpack.c.l.b16 %v229
    %v725 = vpack.c.b16 %v722, %v721
    %v726 = vpack.c.b16 %v724, %v723
    %vm728 = vcmask 203776
    %v730 = vsel %vm728, %v621, 0
    %v733 = vsel %vm728, %v622, 0
    %v736 = vsel %vm728, %v623, 0
    %v739 = vsel %vm728, %v624, 0
    %v742 = vsel %vm728, %v625, 0
    %v745 = vsel %vm728, %v626, 0
    %v748 = vsel %vm728, %v627, 0
    %v751 = vsel %vm728, %v628, 0
    %v754 = vsel %vm728, %v629, 0
    %v757 = vsel %vm728, %v630, 0
    %v760 = vsel %vm728, %v631, 0
    %v763 = vsel %vm728, %v632, 0
    %v766 = vsel %vm728, %v633, 0
    %v769 = vsel %vm728, %v634, 0
    %v772 = vsel %vm728, %v635, 0
    %v775 = vsel %vm728, %v636, 0
    %v778 = vsel %vm728, %v637, 0
    %v781 = vsel %vm728, %v638, 0
    %v784 = vsel %vm728, %v639, 0
    %v787 = vsel %vm728, %v640, 0
    %v790 = vsel %vm728, %v641, 0
    %v793 = vsel %vm728, %v642, 0
    %v796 = vsel %vm728, %v643, 0
    %v799 = vsel %vm728, %v644, 0
    %v802 = vsel %vm728, %v645, 0
    %v805 = vsel %vm728, %v646, 0
    %v808 = vsel %vm728, %v647, 0
    %v811 = vsel %vm728, %v648, 0
    %v814 = vsel %vm728, %v649, 0
    %v817 = vsel %vm728, %v650, 0
    %v820 = vsel %vm728, %v651, 0
    %v823 = vsel %vm728, %v652, 0
    %v826 = vsel %vm728, %v653, 0
    %v829 = vsel %vm728, %v654, 0
    %v832 = vsel %vm728, %v655, 0
    %v835 = vsel %vm728, %v656, 0
    %v838 = vsel %vm728, %v657, 0
    %v841 = vsel %vm728, %v658, 0
    %v844 = vsel %vm728, %v659, 0
    %v847 = vsel %vm728, %v660, 0
    %v850 = vsel %vm728, %v661, 0
    %v853 = vsel %vm728, %v662, 0
    %v856 = vsel %vm728, %v663, 0
    %v859 = vsel %vm728, %v664, 0
    %v862 = vsel %vm728, %v665, 0
    %v865 = vsel %vm728, %v666, 0
    %v868 = vsel %vm728, %v667, 0
    %v871 = vsel %vm728, %v668, 0
    %v874 = vsel %vm728, %v669, 0
    %v877 = vsel %vm728, %v670, 0
    %v880 = vsel %vm728, %v671, 0
    %v883 = vsel %vm728, %v672, 0
    %v886 = vsel %vm728, %v673, 0
    %v889 = vsel %vm728, %v674, 0
    %v892 = vsel %vm728, %v675, 0
    %v895 = vsel %vm728, %v676, 0
    %v898 = vsel %vm728, %v677, 0
    %v901 = vsel %vm728, %v678, 0
    %v904 = vsel %vm728, %v679, 0
    %v907 = vsel %vm728, %v680, 0
    %v910 = vsel %vm728, %v681, 0
    %v913 = vsel %vm728, %v682, 0
    %v916 = vsel %vm728, %v683, 0
    %v919 = vsel %vm728, %v684, 0
    %v922 = vsel %vm728, %v685, 0
    %v925 = vsel %vm728, %v686, 0
    %v928 = vsel %vm728, %v687, 0
    %v931 = vsel %vm728, %v688, 0
    %v934 = vsel %vm728, %v689, 0
    %v937 = vsel %vm728, %v690, 0
    %v940 = vsel %vm728, %v691, 0
    %v943 = vsel %vm728, %v692, 0
    %v946 = vsel %vm728, %v693, 0
    %v949 = vsel %vm728, %v694, 0
    %v952 = vsel %vm728, %v695, 0
    %v955 = vsel %vm728, %v696, 0
    %v958 = vsel %vm728, %v697, 0
    %v961 = vsel %vm728, %v698, 0
    %v964 = vsel %vm728, %v699, 0
    %v967 = vsel %vm728, %v700, 0
    %v970 = vsel %vm728, %v701, 0
    %v973 = vsel %vm728, %v702, 0
    %v976 = vsel %vm728, %v703, 0
    %v979 = vsel %vm728, %v704, 0
    %v982 = vsel %vm728, %v705, 0
    %v985 = vsel %vm728, %v706, 0
    %v988 = vsel %vm728, %v707, 0
    %v991 = vsel %vm728, %v708, 0
    %v994 = vsel %vm728, %v709, 0
    %v997 = vsel %vm728, %v710, 0
    %v1000 = vsel %vm728, %v711, 0
    %v1003 = vsel %vm728, %v712, 0
    %v1006 = vsel %vm728, %v713, 0
    %v1009 = vsel %vm728, %v714, 0
    %v1012 = vsel %vm728, %v715, 0
    %v1015 = vsel %vm728, %v716, 0
    %vm1017 = vcmask 1043456
    %vm1018 = vcmask 1044480
    %v1019 = vsel %vm1017, 4294967295, 65535
    %v1020 = vsel %vm1018, %v1019, 0
    %v1022 = vand.u32 %v726, %v1020
    %1024 = vmatprep.subr.bf16.mxu0 0
    %1025 = vmatpush1.bf16.msra.mxu0 0
    %1026 = vmatprep.subr.bf16.mxu0 0
    %1027 = vmatpush1.bf16.msra.mxu0 0
    %1028 = vmatprep.subr.bf16.mxu0 0
    %1029 = vmatpush1.bf16.msra.mxu0 0
    %1030 = vmatprep.subr.bf16.mxu0 0
    %1031 = vmatpush1.bf16.msra.mxu0 0
    %1032 = vmatprep.subr.bf16.mxu0 0
    %1033 = vmatpush1.bf16.msra.mxu0 0
    %1034 = vmatprep.subr.bf16.mxu0 0
    %1035 = vmatpush1.bf16.msra.mxu0 0
    %1036 = vmatprep.subr.bf16.mxu0 0
    %1037 = vmatpush1.bf16.msra.mxu0 %v1022
    %1038 = vmatprep.subr.bf16.mxu0 0
    %1039 = vmatpush1.bf16.msra.mxu0 %v725
    %1040 = vmatprep.subr.bf16.mxu0 0
    %1041 = vmatpush2.bf16.msra.mxu0 0
    %1042 = vmatprep.subr.bf16.mxu0 0
    %1043 = vmatpush2.bf16.msra.mxu0 0
    %1044 = vmatprep.subr.bf16.mxu0 0
    %1045 = vmatpush2.bf16.msra.mxu0 0
    %1046 = vmatprep.subr.bf16.mxu0 0
    %1047 = vmatpush2.bf16.msra.mxu0 0
    %1048 = vmatprep.subr.bf16.mxu0 0
    %1049 = vmatpush2.bf16.msra.mxu0 0
    %1050 = vmatprep.subr.bf16.mxu0 0
    %1051 = vmatpush2.bf16.msra.mxu0 0
    %1052 = vmatprep.subr.bf16.mxu0 0
    %1053 = vmatpush2.bf16.msra.mxu0 0
    %1054 = vmatprep.subr.bf16.mxu0 0
    %1055 = vmatpush2.bf16.msra.mxu0 0
    %1056 = vmatprep.mubr.bf16.mxu0 0
    %1057 = vmatmul.mubr.bf16.gmra.mxu0 %v730
    %v1058 = vpop.f32.mrf.mxu0
    %v1059 = vadd.f32 %v235, %v1058
    %v1060 = vpop.f32.mrf.mxu0
    %v1061 = vpop.f32.mrf.mxu0
    %v1062 = vadd.f32 %v235, %v1061
    %v1063 = vpop.f32.mrf.mxu0
    %1064 = vmatprep.mubr.bf16.mxu0 0
    %1065 = vmatmul.mubr.bf16.gmra.mxu0 %v733
    %v1066 = vpop.f32.mrf.mxu0
    %v1067 = vadd.f32 %v235, %v1066
    %v1068 = vpop.f32.mrf.mxu0
    %v1069 = vpop.f32.mrf.mxu0
    %v1070 = vadd.f32 %v235, %v1069
    %v1071 = vpop.f32.mrf.mxu0
    %1072 = vmatprep.mubr.bf16.mxu0 0
    %1073 = vmatmul.mubr.bf16.gmra.mxu0 %v736
    %v1074 = vpop.f32.mrf.mxu0
    %v1075 = vadd.f32 %v235, %v1074
    %v1076 = vpop.f32.mrf.mxu0
    %v1077 = vpop.f32.mrf.mxu0
    %v1078 = vadd.f32 %v235, %v1077
    %v1079 = vpop.f32.mrf.mxu0
    %1080 = vmatprep.mubr.bf16.mxu0 0
    %1081 = vmatmul.mubr.bf16.gmra.mxu0 %v739
    %v1082 = vpop.f32.mrf.mxu0
    %v1083 = vadd.f32 %v235, %v1082
    %v1084 = vpop.f32.mrf.mxu0
    %v1085 = vpop.f32.mrf.mxu0
    %v1086 = vadd.f32 %v235, %v1085
    %v1087 = vpop.f32.mrf.mxu0
    %1088 = vmatprep.mubr.bf16.mxu0 0
    %1089 = vmatmul.mubr.bf16.gmra.mxu0 %v742
    %v1090 = vpop.f32.mrf.mxu0
    %v1091 = vadd.f32 %v235, %v1090
    %v1092 = vpop.f32.mrf.mxu0
    %v1093 = vpop.f32.mrf.mxu0
    %v1094 = vadd.f32 %v235, %v1093
    %v1095 = vpop.f32.mrf.mxu0
    %1096 = vmatprep.mubr.bf16.mxu0 0
    %1097 = vmatmul.mubr.bf16.gmra.mxu0 %v745
    %v1098 = vpop.f32.mrf.mxu0
    %v1099 = vadd.f32 %v235, %v1098
    %v1100 = vpop.f32.mrf.mxu0
    %v1101 = vpop.f32.mrf.mxu0
    %v1102 = vadd.f32 %v235, %v1101
    %v1103 = vpop.f32.mrf.mxu0
    %1104 = vmatprep.mubr.bf16.mxu0 0
    %1105 = vmatmul.mubr.bf16.gmra.mxu0 %v748
    %v1106 = vpop.f32.mrf.mxu0
    %v1107 = vadd.f32 %v235, %v1106
    %v1108 = vpop.f32.mrf.mxu0
    %v1109 = vpop.f32.mrf.mxu0
    %v1110 = vadd.f32 %v235, %v1109
    %v1111 = vpop.f32.mrf.mxu0
    %1112 = vmatprep.mubr.bf16.mxu0 0
    %1113 = vmatmul.mubr.bf16.gmra.mxu0 %v751
    %v1114 = vpop.f32.mrf.mxu0
    %v1115 = vadd.f32 %v235, %v1114
    %v1116 = vpop.f32.mrf.mxu0
    %v1117 = vpop.f32.mrf.mxu0
    %v1118 = vadd.f32 %v235, %v1117
    %v1119 = vpop.f32.mrf.mxu0
    %1120 = vmatprep.mubr.bf16.mxu0 0
    %1121 = vmatmul.mubr.bf16.gmra.mxu0 %v754
    %v1122 = vpop.f32.mrf.mxu0
    %v1123 = vadd.f32 %v235, %v1122
    %v1124 = vpop.f32.mrf.mxu0
    %v1125 = vpop.f32.mrf.mxu0
    %v1126 = vadd.f32 %v235, %v1125
    %v1127 = vpop.f32.mrf.mxu0
    %1128 = vmatprep.mubr.bf16.mxu0 0
    %1129 = vmatmul.mubr.bf16.gmra.mxu0 %v757
    %v1130 = vpop.f32.mrf.mxu0
    %v1131 = vadd.f32 %v235, %v1130
    %v1132 = vpop.f32.mrf.mxu0
    %v1133 = vpop.f32.mrf.mxu0
    %v1134 = vadd.f32 %v235, %v1133
    %v1135 = vpop.f32.mrf.mxu0
    %1136 = vmatprep.mubr.bf16.mxu0 0
    %1137 = vmatmul.mubr.bf16.gmra.mxu0 %v760
    %v1138 = vpop.f32.mrf.mxu0
    %v1139 = vadd.f32 %v235, %v1138
    %v1140 = vpop.f32.mrf.mxu0
    %v1141 = vpop.f32.mrf.mxu0
    %v1142 = vadd.f32 %v235, %v1141
    %v1143 = vpop.f32.mrf.mxu0
    %1144 = vmatprep.mubr.bf16.mxu0 0
    %1145 = vmatmul.mubr.bf16.gmra.mxu0 %v763
    %v1146 = vpop.f32.mrf.mxu0
    %v1147 = vadd.f32 %v235, %v1146
    %v1148 = vpop.f32.mrf.mxu0
    %v1149 = vpop.f32.mrf.mxu0
    %v1150 = vadd.f32 %v235, %v1149
    %v1151 = vpop.f32.mrf.mxu0
    %1152 = vmatprep.mubr.bf16.mxu0 0
    %1153 = vmatmul.mubr.bf16.gmra.mxu0 %v766
    %v1154 = vpop.f32.mrf.mxu0
    %v1155 = vadd.f32 %v235, %v1154
    %v1156 = vpop.f32.mrf.mxu0
    %v1157 = vpop.f32.mrf.mxu0
    %v1158 = vadd.f32 %v235, %v1157
    %v1159 = vpop.f32.mrf.mxu0
    %1160 = vmatprep.mubr.bf16.mxu0 0
    %1161 = vmatmul.mubr.bf16.gmra.mxu0 %v769
    %v1162 = vpop.f32.mrf.mxu0
    %v1163 = vadd.f32 %v235, %v1162
    %v1164 = vpop.f32.mrf.mxu0
    %v1165 = vpop.f32.mrf.mxu0
    %v1166 = vadd.f32 %v235, %v1165
    %v1167 = vpop.f32.mrf.mxu0
    %1168 = vmatprep.mubr.bf16.mxu0 0
    %1169 = vmatmul.mubr.bf16.gmra.mxu0 %v772
    %v1170 = vpop.f32.mrf.mxu0
    %v1171 = vadd.f32 %v235, %v1170
    %v1172 = vpop.f32.mrf.mxu0
    %v1173 = vpop.f32.mrf.mxu0
    %v1174 = vadd.f32 %v235, %v1173
    %v1175 = vpop.f32.mrf.mxu0
    %1176 = vmatprep.mubr.bf16.mxu0 0
    %1177 = vmatmul.mubr.bf16.gmra.mxu0 %v775
    %v1178 = vpop.f32.mrf.mxu0
    %v1179 = vadd.f32 %v235, %v1178
    %v1180 = vpop.f32.mrf.mxu0
    %v1181 = vpop.f32.mrf.mxu0
    %v1182 = vadd.f32 %v235, %v1181
    %v1183 = vpop.f32.mrf.mxu0
    %1184 = vmatprep.mubr.bf16.mxu0 0
    %1185 = vmatmul.mubr.bf16.gmra.mxu0 %v778
    %v1186 = vpop.f32.mrf.mxu0
    %v1187 = vadd.f32 %v235, %v1186
    %v1188 = vpop.f32.mrf.mxu0
    %v1189 = vpop.f32.mrf.mxu0
    %v1190 = vadd.f32 %v235, %v1189
    %v1191 = vpop.f32.mrf.mxu0
    %1192 = vmatprep.mubr.bf16.mxu0 0
    %1193 = vmatmul.mubr.bf16.gmra.mxu0 %v781
    %v1194 = vpop.f32.mrf.mxu0
    %v1195 = vadd.f32 %v235, %v1194
    %v1196 = vpop.f32.mrf.mxu0
    %v1197 = vpop.f32.mrf.mxu0
    %v1198 = vadd.f32 %v235, %v1197
    %v1199 = vpop.f32.mrf.mxu0
    %1200 = vmatprep.mubr.bf16.mxu0 0
    %1201 = vmatmul.mubr.bf16.gmra.mxu0 %v784
    %v1202 = vpop.f32.mrf.mxu0
    %v1203 = vadd.f32 %v235, %v1202
    %v1204 = vpop.f32.mrf.mxu0
    %v1205 = vpop.f32.mrf.mxu0
    %v1206 = vadd.f32 %v235, %v1205
    %v1207 = vpop.f32.mrf.mxu0
    %1208 = vmatprep.mubr.bf16.mxu0 0
    %1209 = vmatmul.mubr.bf16.gmra.mxu0 %v787
    %v1210 = vpop.f32.mrf.mxu0
    %v1211 = vadd.f32 %v235, %v1210
    %v1212 = vpop.f32.mrf.mxu0
    %v1213 = vpop.f32.mrf.mxu0
    %v1214 = vadd.f32 %v235, %v1213
    %v1215 = vpop.f32.mrf.mxu0
    %1216 = vmatprep.mubr.bf16.mxu0 0
    %1217 = vmatmul.mubr.bf16.gmra.mxu0 %v790
    %v1218 = vpop.f32.mrf.mxu0
    %v1219 = vadd.f32 %v235, %v1218
    %v1220 = vpop.f32.mrf.mxu0
    %v1221 = vpop.f32.mrf.mxu0
    %v1222 = vadd.f32 %v235, %v1221
    %v1223 = vpop.f32.mrf.mxu0
    %1224 = vmatprep.mubr.bf16.mxu0 0
    %1225 = vmatmul.mubr.bf16.gmra.mxu0 %v793
    %v1226 = vpop.f32.mrf.mxu0
    %v1227 = vadd.f32 %v235, %v1226
    %v1228 = vpop.f32.mrf.mxu0
    %v1229 = vpop.f32.mrf.mxu0
    %v1230 = vadd.f32 %v235, %v1229
    %v1231 = vpop.f32.mrf.mxu0
    %1232 = vmatprep.mubr.bf16.mxu0 0
    %1233 = vmatmul.mubr.bf16.gmra.mxu0 %v796
    %v1234 = vpop.f32.mrf.mxu0
    %v1235 = vadd.f32 %v235, %v1234
    %v1236 = vpop.f32.mrf.mxu0
    %v1237 = vpop.f32.mrf.mxu0
    %v1238 = vadd.f32 %v235, %v1237
    %v1239 = vpop.f32.mrf.mxu0
    %1240 = vmatprep.mubr.bf16.mxu0 0
    %1241 = vmatmul.mubr.bf16.gmra.mxu0 %v799
    %v1242 = vpop.f32.mrf.mxu0
    %v1243 = vadd.f32 %v235, %v1242
    %v1244 = vpop.f32.mrf.mxu0
    %v1245 = vpop.f32.mrf.mxu0
    %v1246 = vadd.f32 %v235, %v1245
    %v1247 = vpop.f32.mrf.mxu0
    %1248 = vmatprep.mubr.bf16.mxu0 0
    %1249 = vmatmul.mubr.bf16.gmra.mxu0 %v802
    %v1250 = vpop.f32.mrf.mxu0
    %v1251 = vadd.f32 %v235, %v1250
    %v1252 = vpop.f32.mrf.mxu0
    %v1253 = vpop.f32.mrf.mxu0
    %v1254 = vadd.f32 %v235, %v1253
    %v1255 = vpop.f32.mrf.mxu0
    %1256 = vmatprep.mubr.bf16.mxu0 0
    %1257 = vmatmul.mubr.bf16.gmra.mxu0 %v805
    %v1258 = vpop.f32.mrf.mxu0
    %v1259 = vadd.f32 %v235, %v1258
    %v1260 = vpop.f32.mrf.mxu0
    %v1261 = vpop.f32.mrf.mxu0
    %v1262 = vadd.f32 %v235, %v1261
    %v1263 = vpop.f32.mrf.mxu0
    %1264 = vmatprep.mubr.bf16.mxu0 0
    %1265 = vmatmul.mubr.bf16.gmra.mxu0 %v808
    %v1266 = vpop.f32.mrf.mxu0
    %v1267 = vadd.f32 %v235, %v1266
    %v1268 = vpop.f32.mrf.mxu0
    %v1269 = vpop.f32.mrf.mxu0
    %v1270 = vadd.f32 %v235, %v1269
    %v1271 = vpop.f32.mrf.mxu0
    %1272 = vmatprep.mubr.bf16.mxu0 0
    %1273 = vmatmul.mubr.bf16.gmra.mxu0 %v811
    %v1274 = vpop.f32.mrf.mxu0
    %v1275 = vadd.f32 %v235, %v1274
    %v1276 = vpop.f32.mrf.mxu0
    %v1277 = vpop.f32.mrf.mxu0
    %v1278 = vadd.f32 %v235, %v1277
    %v1279 = vpop.f32.mrf.mxu0
    %1280 = vmatprep.mubr.bf16.mxu0 0
    %1281 = vmatmul.mubr.bf16.gmra.mxu0 %v814
    %v1282 = vpop.f32.mrf.mxu0
    %v1283 = vadd.f32 %v235, %v1282
    %v1284 = vpop.f32.mrf.mxu0
    %v1285 = vpop.f32.mrf.mxu0
    %v1286 = vadd.f32 %v235, %v1285
    %v1287 = vpop.f32.mrf.mxu0
    %1288 = vmatprep.mubr.bf16.mxu0 0
    %1289 = vmatmul.mubr.bf16.gmra.mxu0 %v817
    %v1290 = vpop.f32.mrf.mxu0
    %v1291 = vadd.f32 %v235, %v1290
    %v1292 = vpop.f32.mrf.mxu0
    %v1293 = vpop.f32.mrf.mxu0
    %v1294 = vadd.f32 %v235, %v1293
    %v1295 = vpop.f32.mrf.mxu0
    %1296 = vmatprep.mubr.bf16.mxu0 0
    %1297 = vmatmul.mubr.bf16.gmra.mxu0 %v820
    %v1298 = vpop.f32.mrf.mxu0
    %v1299 = vadd.f32 %v235, %v1298
    %v1300 = vpop.f32.mrf.mxu0
    %v1301 = vpop.f32.mrf.mxu0
    %v1302 = vadd.f32 %v235, %v1301
    %v1303 = vpop.f32.mrf.mxu0
    %1304 = vmatprep.mubr.bf16.mxu0 0
    %1305 = vmatmul.mubr.bf16.gmra.mxu0 %v823
    %v1306 = vpop.f32.mrf.mxu0
    %v1307 = vadd.f32 %v235, %v1306
    %v1308 = vpop.f32.mrf.mxu0
    %v1309 = vpop.f32.mrf.mxu0
    %v1310 = vadd.f32 %v235, %v1309
    %v1311 = vpop.f32.mrf.mxu0
    %1312 = vmatprep.mubr.bf16.mxu0 0
    %1313 = vmatmul.mubr.bf16.gmra.mxu0 %v826
    %v1314 = vpop.f32.mrf.mxu0
    %v1315 = vadd.f32 %v235, %v1314
    %v1316 = vpop.f32.mrf.mxu0
    %v1317 = vpop.f32.mrf.mxu0
    %v1318 = vadd.f32 %v235, %v1317
    %v1319 = vpop.f32.mrf.mxu0
    %1320 = vmatprep.mubr.bf16.mxu0 0
    %1321 = vmatmul.mubr.bf16.gmra.mxu0 %v829
    %v1322 = vpop.f32.mrf.mxu0
    %v1323 = vadd.f32 %v235, %v1322
    %v1324 = vpop.f32.mrf.mxu0
    %v1325 = vpop.f32.mrf.mxu0
    %v1326 = vadd.f32 %v235, %v1325
    %v1327 = vpop.f32.mrf.mxu0
    %1328 = vmatprep.mubr.bf16.mxu0 0
    %1329 = vmatmul.mubr.bf16.gmra.mxu0 %v832
    %v1330 = vpop.f32.mrf.mxu0
    %v1331 = vadd.f32 %v235, %v1330
    %v1332 = vpop.f32.mrf.mxu0
    %v1333 = vpop.f32.mrf.mxu0
    %v1334 = vadd.f32 %v235, %v1333
    %v1335 = vpop.f32.mrf.mxu0
    %1336 = vmatprep.mubr.bf16.mxu0 0
    %1337 = vmatmul.mubr.bf16.gmra.mxu0 %v835
    %v1338 = vpop.f32.mrf.mxu0
    %v1339 = vadd.f32 %v235, %v1338
    %v1340 = vpop.f32.mrf.mxu0
    %v1341 = vpop.f32.mrf.mxu0
    %v1342 = vadd.f32 %v235, %v1341
    %v1343 = vpop.f32.mrf.mxu0
    %1344 = vmatprep.mubr.bf16.mxu0 0
    %1345 = vmatmul.mubr.bf16.gmra.mxu0 %v838
    %v1346 = vpop.f32.mrf.mxu0
    %v1347 = vadd.f32 %v235, %v1346
    %v1348 = vpop.f32.mrf.mxu0
    %v1349 = vpop.f32.mrf.mxu0
    %v1350 = vadd.f32 %v235, %v1349
    %v1351 = vpop.f32.mrf.mxu0
    %1352 = vmatprep.mubr.bf16.mxu0 0
    %1353 = vmatmul.mubr.bf16.gmra.mxu0 %v841
    %v1354 = vpop.f32.mrf.mxu0
    %v1355 = vadd.f32 %v235, %v1354
    %v1356 = vpop.f32.mrf.mxu0
    %v1357 = vpop.f32.mrf.mxu0
    %v1358 = vadd.f32 %v235, %v1357
    %v1359 = vpop.f32.mrf.mxu0
    %1360 = vmatprep.mubr.bf16.mxu0 0
    %1361 = vmatmul.mubr.bf16.gmra.mxu0 %v844
    %v1362 = vpop.f32.mrf.mxu0
    %v1363 = vadd.f32 %v235, %v1362
    %v1364 = vpop.f32.mrf.mxu0
    %v1365 = vpop.f32.mrf.mxu0
    %v1366 = vadd.f32 %v235, %v1365
    %v1367 = vpop.f32.mrf.mxu0
    %1368 = vmatprep.mubr.bf16.mxu0 0
    %1369 = vmatmul.mubr.bf16.gmra.mxu0 %v847
    %v1370 = vpop.f32.mrf.mxu0
    %v1371 = vadd.f32 %v235, %v1370
    %v1372 = vpop.f32.mrf.mxu0
    %v1373 = vpop.f32.mrf.mxu0
    %v1374 = vadd.f32 %v235, %v1373
    %v1375 = vpop.f32.mrf.mxu0
    %1376 = vmatprep.mubr.bf16.mxu0 0
    %1377 = vmatmul.mubr.bf16.gmra.mxu0 %v850
    %v1378 = vpop.f32.mrf.mxu0
    %v1379 = vadd.f32 %v235, %v1378
    %v1380 = vpop.f32.mrf.mxu0
    %v1381 = vpop.f32.mrf.mxu0
    %v1382 = vadd.f32 %v235, %v1381
    %v1383 = vpop.f32.mrf.mxu0
    %1384 = vmatprep.mubr.bf16.mxu0 0
    %1385 = vmatmul.mubr.bf16.gmra.mxu0 %v853
    %v1386 = vpop.f32.mrf.mxu0
    %v1387 = vadd.f32 %v235, %v1386
    %v1388 = vpop.f32.mrf.mxu0
    %v1389 = vpop.f32.mrf.mxu0
    %v1390 = vadd.f32 %v235, %v1389
    %v1391 = vpop.f32.mrf.mxu0
    %1392 = vmatprep.mubr.bf16.mxu0 0
    %1393 = vmatmul.mubr.bf16.gmra.mxu0 %v856
    %v1394 = vpop.f32.mrf.mxu0
    %v1395 = vadd.f32 %v235, %v1394
    %v1396 = vpop.f32.mrf.mxu0
    %v1397 = vpop.f32.mrf.mxu0
    %v1398 = vadd.f32 %v235, %v1397
    %v1399 = vpop.f32.mrf.mxu0
    %1400 = vmatprep.mubr.bf16.mxu0 0
    %1401 = vmatmul.mubr.bf16.gmra.mxu0 %v859
    %v1402 = vpop.f32.mrf.mxu0
    %v1403 = vadd.f32 %v235, %v1402
    %v1404 = vpop.f32.mrf.mxu0
    %v1405 = vpop.f32.mrf.mxu0
    %v1406 = vadd.f32 %v235, %v1405
    %v1407 = vpop.f32.mrf.mxu0
    %1408 = vmatprep.mubr.bf16.mxu0 0
    %1409 = vmatmul.mubr.bf16.gmra.mxu0 %v862
    %v1410 = vpop.f32.mrf.mxu0
    %v1411 = vadd.f32 %v235, %v1410
    %v1412 = vpop.f32.mrf.mxu0
    %v1413 = vpop.f32.mrf.mxu0
    %v1414 = vadd.f32 %v235, %v1413
    %v1415 = vpop.f32.mrf.mxu0
    %1416 = vmatprep.mubr.bf16.mxu0 0
    %1417 = vmatmul.mubr.bf16.gmra.mxu0 %v865
    %v1418 = vpop.f32.mrf.mxu0
    %v1419 = vadd.f32 %v235, %v1418
    %v1420 = vpop.f32.mrf.mxu0
    %v1421 = vpop.f32.mrf.mxu0
    %v1422 = vadd.f32 %v235, %v1421
    %v1423 = vpop.f32.mrf.mxu0
    %1424 = vmatprep.mubr.bf16.mxu0 0
    %1425 = vmatmul.mubr.bf16.gmra.mxu0 %v868
    %v1426 = vpop.f32.mrf.mxu0
    %v1427 = vadd.f32 %v235, %v1426
    %v1428 = vpop.f32.mrf.mxu0
    %v1429 = vpop.f32.mrf.mxu0
    %v1430 = vadd.f32 %v235, %v1429
    %v1431 = vpop.f32.mrf.mxu0
    %1432 = vmatprep.mubr.bf16.mxu0 0
    %1433 = vmatmul.mubr.bf16.gmra.mxu0 %v871
    %v1434 = vpop.f32.mrf.mxu0
    %v1435 = vadd.f32 %v235, %v1434
    %v1436 = vpop.f32.mrf.mxu0
    %v1437 = vpop.f32.mrf.mxu0
    %v1438 = vadd.f32 %v235, %v1437
    %v1439 = vpop.f32.mrf.mxu0
    %1440 = vmatprep.mubr.bf16.mxu0 0
    %1441 = vmatmul.mubr.bf16.gmra.mxu0 %v874
    %v1442 = vpop.f32.mrf.mxu0
    %v1443 = vadd.f32 %v235, %v1442
    %v1444 = vpop.f32.mrf.mxu0
    %v1445 = vpop.f32.mrf.mxu0
    %v1446 = vadd.f32 %v235, %v1445
    %v1447 = vpop.f32.mrf.mxu0
    %1448 = vmatprep.mubr.bf16.mxu0 0
    %1449 = vmatmul.mubr.bf16.gmra.mxu0 %v877
    %v1450 = vpop.f32.mrf.mxu0
    %v1451 = vadd.f32 %v235, %v1450
    %v1452 = vpop.f32.mrf.mxu0
    %v1453 = vpop.f32.mrf.mxu0
    %v1454 = vadd.f32 %v235, %v1453
    %v1455 = vpop.f32.mrf.mxu0
    %1456 = vmatprep.mubr.bf16.mxu0 0
    %1457 = vmatmul.mubr.bf16.gmra.mxu0 %v880
    %v1458 = vpop.f32.mrf.mxu0
    %v1459 = vadd.f32 %v235, %v1458
    %v1460 = vpop.f32.mrf.mxu0
    %v1461 = vpop.f32.mrf.mxu0
    %v1462 = vadd.f32 %v235, %v1461
    %v1463 = vpop.f32.mrf.mxu0
    %1464 = vmatprep.mubr.bf16.mxu0 0
    %1465 = vmatmul.mubr.bf16.gmra.mxu0 %v883
    %v1466 = vpop.f32.mrf.mxu0
    %v1467 = vadd.f32 %v235, %v1466
    %v1468 = vpop.f32.mrf.mxu0
    %v1469 = vpop.f32.mrf.mxu0
    %v1470 = vadd.f32 %v235, %v1469
    %v1471 = vpop.f32.mrf.mxu0
    %1472 = vmatprep.mubr.bf16.mxu0 0
    %1473 = vmatmul.mubr.bf16.gmra.mxu0 %v886
    %v1474 = vpop.f32.mrf.mxu0
    %v1475 = vadd.f32 %v235, %v1474
    %v1476 = vpop.f32.mrf.mxu0
    %v1477 = vpop.f32.mrf.mxu0
    %v1478 = vadd.f32 %v235, %v1477
    %v1479 = vpop.f32.mrf.mxu0
    %1480 = vmatprep.mubr.bf16.mxu0 0
    %1481 = vmatmul.mubr.bf16.gmra.mxu0 %v889
    %v1482 = vpop.f32.mrf.mxu0
    %v1483 = vadd.f32 %v235, %v1482
    %v1484 = vpop.f32.mrf.mxu0
    %v1485 = vpop.f32.mrf.mxu0
    %v1486 = vadd.f32 %v235, %v1485
    %v1487 = vpop.f32.mrf.mxu0
    %1488 = vmatprep.mubr.bf16.mxu0 0
    %1489 = vmatmul.mubr.bf16.gmra.mxu0 %v892
    %v1490 = vpop.f32.mrf.mxu0
    %v1491 = vadd.f32 %v235, %v1490
    %v1492 = vpop.f32.mrf.mxu0
    %v1493 = vpop.f32.mrf.mxu0
    %v1494 = vadd.f32 %v235, %v1493
    %v1495 = vpop.f32.mrf.mxu0
    %1496 = vmatprep.mubr.bf16.mxu0 0
    %1497 = vmatmul.mubr.bf16.gmra.mxu0 %v895
    %v1498 = vpop.f32.mrf.mxu0
    %v1499 = vadd.f32 %v235, %v1498
    %v1500 = vpop.f32.mrf.mxu0
    %v1501 = vpop.f32.mrf.mxu0
    %v1502 = vadd.f32 %v235, %v1501
    %v1503 = vpop.f32.mrf.mxu0
    %1504 = vmatprep.mubr.bf16.mxu0 0
    %1505 = vmatmul.mubr.bf16.gmra.mxu0 %v898
    %v1506 = vpop.f32.mrf.mxu0
    %v1507 = vadd.f32 %v235, %v1506
    %v1508 = vpop.f32.mrf.mxu0
    %v1509 = vpop.f32.mrf.mxu0
    %v1510 = vadd.f32 %v235, %v1509
    %v1511 = vpop.f32.mrf.mxu0
    %1512 = vmatprep.mubr.bf16.mxu0 0
    %1513 = vmatmul.mubr.bf16.gmra.mxu0 %v901
    %v1514 = vpop.f32.mrf.mxu0
    %v1515 = vadd.f32 %v235, %v1514
    %v1516 = vpop.f32.mrf.mxu0
    %v1517 = vpop.f32.mrf.mxu0
    %v1518 = vadd.f32 %v235, %v1517
    %v1519 = vpop.f32.mrf.mxu0
    %1520 = vmatprep.mubr.bf16.mxu0 0
    %1521 = vmatmul.mubr.bf16.gmra.mxu0 %v904
    %v1522 = vpop.f32.mrf.mxu0
    %v1523 = vadd.f32 %v235, %v1522
    %v1524 = vpop.f32.mrf.mxu0
    %v1525 = vpop.f32.mrf.mxu0
    %v1526 = vadd.f32 %v235, %v1525
    %v1527 = vpop.f32.mrf.mxu0
    %1528 = vmatprep.mubr.bf16.mxu0 0
    %1529 = vmatmul.mubr.bf16.gmra.mxu0 %v907
    %v1530 = vpop.f32.mrf.mxu0
    %v1531 = vadd.f32 %v235, %v1530
    %v1532 = vpop.f32.mrf.mxu0
    %v1533 = vpop.f32.mrf.mxu0
    %v1534 = vadd.f32 %v235, %v1533
    %v1535 = vpop.f32.mrf.mxu0
    %1536 = vmatprep.mubr.bf16.mxu0 0
    %1537 = vmatmul.mubr.bf16.gmra.mxu0 %v910
    %v1538 = vpop.f32.mrf.mxu0
    %v1539 = vadd.f32 %v235, %v1538
    %v1540 = vpop.f32.mrf.mxu0
    %v1541 = vpop.f32.mrf.mxu0
    %v1542 = vadd.f32 %v235, %v1541
    %v1543 = vpop.f32.mrf.mxu0
    %1544 = vmatprep.mubr.bf16.mxu0 0
    %1545 = vmatmul.mubr.bf16.gmra.mxu0 %v913
    %v1546 = vpop.f32.mrf.mxu0
    %v1547 = vadd.f32 %v235, %v1546
    %v1548 = vpop.f32.mrf.mxu0
    %v1549 = vpop.f32.mrf.mxu0
    %v1550 = vadd.f32 %v235, %v1549
    %v1551 = vpop.f32.mrf.mxu0
    %1552 = vmatprep.mubr.bf16.mxu0 0
    %1553 = vmatmul.mubr.bf16.gmra.mxu0 %v916
    %v1554 = vpop.f32.mrf.mxu0
    %v1555 = vadd.f32 %v235, %v1554
    %v1556 = vpop.f32.mrf.mxu0
    %v1557 = vpop.f32.mrf.mxu0
    %v1558 = vadd.f32 %v235, %v1557
    %v1559 = vpop.f32.mrf.mxu0
    %1560 = vmatprep.mubr.bf16.mxu0 0
    %1561 = vmatmul.mubr.bf16.gmra.mxu0 %v919
    %v1562 = vpop.f32.mrf.mxu0
    %v1563 = vadd.f32 %v235, %v1562
    %v1564 = vpop.f32.mrf.mxu0
    %v1565 = vpop.f32.mrf.mxu0
    %v1566 = vadd.f32 %v235, %v1565
    %v1567 = vpop.f32.mrf.mxu0
    %1568 = vmatprep.mubr.bf16.mxu0 0
    %1569 = vmatmul.mubr.bf16.gmra.mxu0 %v922
    %v1570 = vpop.f32.mrf.mxu0
    %v1571 = vadd.f32 %v235, %v1570
    %v1572 = vpop.f32.mrf.mxu0
    %v1573 = vpop.f32.mrf.mxu0
    %v1574 = vadd.f32 %v235, %v1573
    %v1575 = vpop.f32.mrf.mxu0
    %1576 = vmatprep.mubr.bf16.mxu0 0
    %1577 = vmatmul.mubr.bf16.gmra.mxu0 %v925
    %v1578 = vpop.f32.mrf.mxu0
    %v1579 = vadd.f32 %v235, %v1578
    %v1580 = vpop.f32.mrf.mxu0
    %v1581 = vpop.f32.mrf.mxu0
    %v1582 = vadd.f32 %v235, %v1581
    %v1583 = vpop.f32.mrf.mxu0
    %1584 = vmatprep.mubr.bf16.mxu0 0
    %1585 = vmatmul.mubr.bf16.gmra.mxu0 %v928
    %v1586 = vpop.f32.mrf.mxu0
    %v1587 = vadd.f32 %v235, %v1586
    %v1588 = vpop.f32.mrf.mxu0
    %v1589 = vpop.f32.mrf.mxu0
    %v1590 = vadd.f32 %v235, %v1589
    %v1591 = vpop.f32.mrf.mxu0
    %1592 = vmatprep.mubr.bf16.mxu0 0
    %1593 = vmatmul.mubr.bf16.gmra.mxu0 %v931
    %v1594 = vpop.f32.mrf.mxu0
    %v1595 = vadd.f32 %v235, %v1594
    %v1596 = vpop.f32.mrf.mxu0
    %v1597 = vpop.f32.mrf.mxu0
    %v1598 = vadd.f32 %v235, %v1597
    %v1599 = vpop.f32.mrf.mxu0
    %1600 = vmatprep.mubr.bf16.mxu0 0
    %1601 = vmatmul.mubr.bf16.gmra.mxu0 %v934
    %v1602 = vpop.f32.mrf.mxu0
    %v1603 = vadd.f32 %v235, %v1602
    %v1604 = vpop.f32.mrf.mxu0
    %v1605 = vpop.f32.mrf.mxu0
    %v1606 = vadd.f32 %v235, %v1605
    %v1607 = vpop.f32.mrf.mxu0
    %1608 = vmatprep.mubr.bf16.mxu0 0
    %1609 = vmatmul.mubr.bf16.gmra.mxu0 %v937
    %v1610 = vpop.f32.mrf.mxu0
    %v1611 = vadd.f32 %v235, %v1610
    %v1612 = vpop.f32.mrf.mxu0
    %v1613 = vpop.f32.mrf.mxu0
    %v1614 = vadd.f32 %v235, %v1613
    %v1615 = vpop.f32.mrf.mxu0
    %1616 = vmatprep.mubr.bf16.mxu0 0
    %1617 = vmatmul.mubr.bf16.gmra.mxu0 %v940
    %v1618 = vpop.f32.mrf.mxu0
    %v1619 = vadd.f32 %v235, %v1618
    %v1620 = vpop.f32.mrf.mxu0
    %v1621 = vpop.f32.mrf.mxu0
    %v1622 = vadd.f32 %v235, %v1621
    %v1623 = vpop.f32.mrf.mxu0
    %1624 = vmatprep.mubr.bf16.mxu0 0
    %1625 = vmatmul.mubr.bf16.gmra.mxu0 %v943
    %v1626 = vpop.f32.mrf.mxu0
    %v1627 = vadd.f32 %v235, %v1626
    %v1628 = vpop.f32.mrf.mxu0
    %v1629 = vpop.f32.mrf.mxu0
    %v1630 = vadd.f32 %v235, %v1629
    %v1631 = vpop.f32.mrf.mxu0
    %1632 = vmatprep.mubr.bf16.mxu0 0
    %1633 = vmatmul.mubr.bf16.gmra.mxu0 %v946
    %v1634 = vpop.f32.mrf.mxu0
    %v1635 = vadd.f32 %v235, %v1634
    %v1636 = vpop.f32.mrf.mxu0
    %v1637 = vpop.f32.mrf.mxu0
    %v1638 = vadd.f32 %v235, %v1637
    %v1639 = vpop.f32.mrf.mxu0
    %1640 = vmatprep.mubr.bf16.mxu0 0
    %1641 = vmatmul.mubr.bf16.gmra.mxu0 %v949
    %v1642 = vpop.f32.mrf.mxu0
    %v1643 = vadd.f32 %v235, %v1642
    %v1644 = vpop.f32.mrf.mxu0
    %v1645 = vpop.f32.mrf.mxu0
    %v1646 = vadd.f32 %v235, %v1645
    %v1647 = vpop.f32.mrf.mxu0
    %1648 = vmatprep.mubr.bf16.mxu0 0
    %1649 = vmatmul.mubr.bf16.gmra.mxu0 %v952
    %v1650 = vpop.f32.mrf.mxu0
    %v1651 = vadd.f32 %v235, %v1650
    %v1652 = vpop.f32.mrf.mxu0
    %v1653 = vpop.f32.mrf.mxu0
    %v1654 = vadd.f32 %v235, %v1653
    %v1655 = vpop.f32.mrf.mxu0
    %1656 = vmatprep.mubr.bf16.mxu0 0
    %1657 = vmatmul.mubr.bf16.gmra.mxu0 %v955
    %v1658 = vpop.f32.mrf.mxu0
    %v1659 = vadd.f32 %v235, %v1658
    %v1660 = vpop.f32.mrf.mxu0
    %v1661 = vpop.f32.mrf.mxu0
    %v1662 = vadd.f32 %v235, %v1661
    %v1663 = vpop.f32.mrf.mxu0
    %1664 = vmatprep.mubr.bf16.mxu0 0
    %1665 = vmatmul.mubr.bf16.gmra.mxu0 %v958
    %v1666 = vpop.f32.mrf.mxu0
    %v1667 = vadd.f32 %v235, %v1666
    %v1668 = vpop.f32.mrf.mxu0
    %v1669 = vpop.f32.mrf.mxu0
    %v1670 = vadd.f32 %v235, %v1669
    %v1671 = vpop.f32.mrf.mxu0
    %1672 = vmatprep.mubr.bf16.mxu0 0
    %1673 = vmatmul.mubr.bf16.gmra.mxu0 %v961
    %v1674 = vpop.f32.mrf.mxu0
    %v1675 = vadd.f32 %v235, %v1674
    %v1676 = vpop.f32.mrf.mxu0
    %v1677 = vpop.f32.mrf.mxu0
    %v1678 = vadd.f32 %v235, %v1677
    %v1679 = vpop.f32.mrf.mxu0
    %1680 = vmatprep.mubr.bf16.mxu0 0
    %1681 = vmatmul.mubr.bf16.gmra.mxu0 %v964
    %v1682 = vpop.f32.mrf.mxu0
    %v1683 = vadd.f32 %v235, %v1682
    %v1684 = vpop.f32.mrf.mxu0
    %v1685 = vpop.f32.mrf.mxu0
    %v1686 = vadd.f32 %v235, %v1685
    %v1687 = vpop.f32.mrf.mxu0
    %1688 = vmatprep.mubr.bf16.mxu0 0
    %1689 = vmatmul.mubr.bf16.gmra.mxu0 %v967
    %v1690 = vpop.f32.mrf.mxu0
    %v1691 = vadd.f32 %v235, %v1690
    %v1692 = vpop.f32.mrf.mxu0
    %v1693 = vpop.f32.mrf.mxu0
    %v1694 = vadd.f32 %v235, %v1693
    %v1695 = vpop.f32.mrf.mxu0
    %1696 = vmatprep.mubr.bf16.mxu0 0
    %1697 = vmatmul.mubr.bf16.gmra.mxu0 %v970
    %v1698 = vpop.f32.mrf.mxu0
    %v1699 = vadd.f32 %v235, %v1698
    %v1700 = vpop.f32.mrf.mxu0
    %v1701 = vpop.f32.mrf.mxu0
    %v1702 = vadd.f32 %v235, %v1701
    %v1703 = vpop.f32.mrf.mxu0
    %1704 = vmatprep.mubr.bf16.mxu0 0
    %1705 = vmatmul.mubr.bf16.gmra.mxu0 %v973
    %v1706 = vpop.f32.mrf.mxu0
    %v1707 = vadd.f32 %v235, %v1706
    %v1708 = vpop.f32.mrf.mxu0
    %v1709 = vpop.f32.mrf.mxu0
    %v1710 = vadd.f32 %v235, %v1709
    %v1711 = vpop.f32.mrf.mxu0
    %1712 = vmatprep.mubr.bf16.mxu0 0
    %1713 = vmatmul.mubr.bf16.gmra.mxu0 %v976
    %v1714 = vpop.f32.mrf.mxu0
    %v1715 = vadd.f32 %v235, %v1714
    %v1716 = vpop.f32.mrf.mxu0
    %v1717 = vpop.f32.mrf.mxu0
    %v1718 = vadd.f32 %v235, %v1717
    %v1719 = vpop.f32.mrf.mxu0
    %1720 = vmatprep.mubr.bf16.mxu0 0
    %1721 = vmatmul.mubr.bf16.gmra.mxu0 %v979
    %v1722 = vpop.f32.mrf.mxu0
    %v1723 = vadd.f32 %v235, %v1722
    %v1724 = vpop.f32.mrf.mxu0
    %v1725 = vpop.f32.mrf.mxu0
    %v1726 = vadd.f32 %v235, %v1725
    %v1727 = vpop.f32.mrf.mxu0
    %1728 = vmatprep.mubr.bf16.mxu0 0
    %1729 = vmatmul.mubr.bf16.gmra.mxu0 %v982
    %v1730 = vpop.f32.mrf.mxu0
    %v1731 = vadd.f32 %v235, %v1730
    %v1732 = vpop.f32.mrf.mxu0
    %v1733 = vpop.f32.mrf.mxu0
    %v1734 = vadd.f32 %v235, %v1733
    %v1735 = vpop.f32.mrf.mxu0
    %1736 = vmatprep.mubr.bf16.mxu0 0
    %1737 = vmatmul.mubr.bf16.gmra.mxu0 %v985
    %v1738 = vpop.f32.mrf.mxu0
    %v1739 = vadd.f32 %v235, %v1738
    %v1740 = vpop.f32.mrf.mxu0
    %v1741 = vpop.f32.mrf.mxu0
    %v1742 = vadd.f32 %v235, %v1741
    %v1743 = vpop.f32.mrf.mxu0
    %1744 = vmatprep.mubr.bf16.mxu0 0
    %1745 = vmatmul.mubr.bf16.gmra.mxu0 %v988
    %v1746 = vpop.f32.mrf.mxu0
    %v1747 = vadd.f32 %v235, %v1746
    %v1748 = vpop.f32.mrf.mxu0
    %v1749 = vpop.f32.mrf.mxu0
    %v1750 = vadd.f32 %v235, %v1749
    %v1751 = vpop.f32.mrf.mxu0
    %1752 = vmatprep.mubr.bf16.mxu0 0
    %1753 = vmatmul.mubr.bf16.gmra.mxu0 %v991
    %v1754 = vpop.f32.mrf.mxu0
    %v1755 = vadd.f32 %v235, %v1754
    %v1756 = vpop.f32.mrf.mxu0
    %v1757 = vpop.f32.mrf.mxu0
    %v1758 = vadd.f32 %v235, %v1757
    %v1759 = vpop.f32.mrf.mxu0
    %1760 = vmatprep.mubr.bf16.mxu0 0
    %1761 = vmatmul.mubr.bf16.gmra.mxu0 %v994
    %v1762 = vpop.f32.mrf.mxu0
    %v1763 = vadd.f32 %v235, %v1762
    %v1764 = vpop.f32.mrf.mxu0
    %v1765 = vpop.f32.mrf.mxu0
    %v1766 = vadd.f32 %v235, %v1765
    %v1767 = vpop.f32.mrf.mxu0
    %1768 = vmatprep.mubr.bf16.mxu0 0
    %1769 = vmatmul.mubr.bf16.gmra.mxu0 %v997
    %v1770 = vpop.f32.mrf.mxu0
    %v1771 = vadd.f32 %v235, %v1770
    %v1772 = vpop.f32.mrf.mxu0
    %v1773 = vpop.f32.mrf.mxu0
    %v1774 = vadd.f32 %v235, %v1773
    %v1775 = vpop.f32.mrf.mxu0
    %1776 = vmatprep.mubr.bf16.mxu0 0
    %1777 = vmatmul.mubr.bf16.gmra.mxu0 %v1000
    %v1778 = vpop.f32.mrf.mxu0
    %v1779 = vadd.f32 %v235, %v1778
    %v1780 = vpop.f32.mrf.mxu0
    %v1781 = vpop.f32.mrf.mxu0
    %v1782 = vadd.f32 %v235, %v1781
    %v1783 = vpop.f32.mrf.mxu0
    %1784 = vmatprep.mubr.bf16.mxu0 0
    %1785 = vmatmul.mubr.bf16.gmra.mxu0 %v1003
    %v1786 = vpop.f32.mrf.mxu0
    %v1787 = vadd.f32 %v235, %v1786
    %v1788 = vpop.f32.mrf.mxu0
    %v1789 = vpop.f32.mrf.mxu0
    %v1790 = vadd.f32 %v235, %v1789
    %v1791 = vpop.f32.mrf.mxu0
    %1792 = vmatprep.mubr.bf16.mxu0 0
    %1793 = vmatmul.mubr.bf16.gmra.mxu0 %v1006
    %v1794 = vpop.f32.mrf.mxu0
    %v1795 = vadd.f32 %v235, %v1794
    %v1796 = vpop.f32.mrf.mxu0
    %v1797 = vpop.f32.mrf.mxu0
    %v1798 = vadd.f32 %v235, %v1797
    %v1799 = vpop.f32.mrf.mxu0
    %1800 = vmatprep.mubr.bf16.mxu0 0
    %1801 = vmatmul.mubr.bf16.gmra.mxu0 %v1009
    %v1802 = vpop.f32.mrf.mxu0
    %v1803 = vadd.f32 %v235, %v1802
    %v1804 = vpop.f32.mrf.mxu0
    %v1805 = vpop.f32.mrf.mxu0
    %v1806 = vadd.f32 %v235, %v1805
    %v1807 = vpop.f32.mrf.mxu0
    %1808 = vmatprep.mubr.bf16.mxu0 0
    %1809 = vmatmul.mubr.bf16.gmra.mxu0 %v1012
    %v1810 = vpop.f32.mrf.mxu0
    %v1811 = vadd.f32 %v235, %v1810
    %v1812 = vpop.f32.mrf.mxu0
    %v1813 = vpop.f32.mrf.mxu0
    %v1814 = vadd.f32 %v235, %v1813
    %v1815 = vpop.f32.mrf.mxu0
    %1816 = vmatprep.mubr.bf16.mxu0 0
    %1817 = vmatmul.mubr.bf16.gmra.mxu0 %v1015
    %v1818 = vpop.f32.mrf.mxu0
    %v1819 = vadd.f32 %v235, %v1818
    %v1820 = vpop.f32.mrf.mxu0
    %v1821 = vpop.f32.mrf.mxu0
    %v1822 = vadd.f32 %v235, %v1821
    %v1823 = vpop.f32.mrf.mxu0
    %1824 = vdwg.mxu0
    %v1825 = vmax.f32 %v1059, %v1155
    %v1826 = vmax.f32 %v1062, %v1158
    %v1827 = vmax.f32 %v1067, %v1163
    %v1828 = vmax.f32 %v1070, %v1166
    %v1829 = vmax.f32 %v1075, %v1171
    %v1830 = vmax.f32 %v1078, %v1174
    %v1831 = vmax.f32 %v1083, %v1179
    %v1832 = vmax.f32 %v1086, %v1182
    %v1833 = vmax.f32 %v1091, %v1187
    %v1834 = vmax.f32 %v1094, %v1190
    %v1835 = vmax.f32 %v1099, %v1195
    %v1836 = vmax.f32 %v1102, %v1198
    %v1837 = vmax.f32 %v1107, %v1203
    %v1838 = vmax.f32 %v1110, %v1206
    %v1839 = vmax.f32 %v1115, %v1211
    %v1840 = vmax.f32 %v1118, %v1214
    %v1841 = vmax.f32 %v1123, %v1219
    %v1842 = vmax.f32 %v1126, %v1222
    %v1843 = vmax.f32 %v1131, %v1227
    %v1844 = vmax.f32 %v1134, %v1230
    %v1845 = vmax.f32 %v1139, %v1235
    %v1846 = vmax.f32 %v1142, %v1238
    %v1847 = vmax.f32 %v1147, %v1243
    %v1848 = vmax.f32 %v1150, %v1246
    %v1849 = vmax.f32 %v1443, %v1539
    %v1850 = vmax.f32 %v1446, %v1542
    %v1851 = vmax.f32 %v1451, %v1547
    %v1852 = vmax.f32 %v1454, %v1550
    %v1853 = vmax.f32 %v1459, %v1555
    %v1854 = vmax.f32 %v1462, %v1558
    %v1855 = vmax.f32 %v1467, %v1563
    %v1856 = vmax.f32 %v1470, %v1566
    %v1857 = vmax.f32 %v1475, %v1571
    %v1858 = vmax.f32 %v1478, %v1574
    %v1859 = vmax.f32 %v1483, %v1579
    %v1860 = vmax.f32 %v1486, %v1582
    %v1861 = vmax.f32 %v1491, %v1587
    %v1862 = vmax.f32 %v1494, %v1590
    %v1863 = vmax.f32 %v1499, %v1595
    %v1864 = vmax.f32 %v1502, %v1598
    %v1865 = vmax.f32 %v1507, %v1603
    %v1866 = vmax.f32 %v1510, %v1606
    %v1867 = vmax.f32 %v1515, %v1611
    %v1868 = vmax.f32 %v1518, %v1614
    %v1869 = vmax.f32 %v1523, %v1619
    %v1870 = vmax.f32 %v1526, %v1622
    %v1871 = vmax.f32 %v1531, %v1627
    %v1872 = vmax.f32 %v1534, %v1630
    %v1873 = vmax.f32 %v1251, %v1347
    %v1874 = vmax.f32 %v1254, %v1350
    %v1875 = vmax.f32 %v1259, %v1355
    %v1876 = vmax.f32 %v1262, %v1358
    %v1877 = vmax.f32 %v1267, %v1363
    %v1878 = vmax.f32 %v1270, %v1366
    %v1879 = vmax.f32 %v1275, %v1371
    %v1880 = vmax.f32 %v1278, %v1374
    %v1881 = vmax.f32 %v1283, %v1379
    %v1882 = vmax.f32 %v1286, %v1382
    %v1883 = vmax.f32 %v1291, %v1387
    %v1884 = vmax.f32 %v1294, %v1390
    %v1885 = vmax.f32 %v1299, %v1395
    %v1886 = vmax.f32 %v1302, %v1398
    %v1887 = vmax.f32 %v1307, %v1403
    %v1888 = vmax.f32 %v1310, %v1406
    %v1889 = vmax.f32 %v1315, %v1411
    %v1890 = vmax.f32 %v1318, %v1414
    %v1891 = vmax.f32 %v1323, %v1419
    %v1892 = vmax.f32 %v1326, %v1422
    %v1893 = vmax.f32 %v1331, %v1427
    %v1894 = vmax.f32 %v1334, %v1430
    %v1895 = vmax.f32 %v1339, %v1435
    %v1896 = vmax.f32 %v1342, %v1438
    %v1897 = vmax.f32 %v1635, %v1731
    %v1898 = vmax.f32 %v1638, %v1734
    %v1899 = vmax.f32 %v1643, %v1739
    %v1900 = vmax.f32 %v1646, %v1742
    %v1901 = vmax.f32 %v1651, %v1747
    %v1902 = vmax.f32 %v1654, %v1750
    %v1903 = vmax.f32 %v1659, %v1755
    %v1904 = vmax.f32 %v1662, %v1758
    %v1905 = vmax.f32 %v1667, %v1763
    %v1906 = vmax.f32 %v1670, %v1766
    %v1907 = vmax.f32 %v1675, %v1771
    %v1908 = vmax.f32 %v1678, %v1774
    %v1909 = vmax.f32 %v1683, %v1779
    %v1910 = vmax.f32 %v1686, %v1782
    %v1911 = vmax.f32 %v1691, %v1787
    %v1912 = vmax.f32 %v1694, %v1790
    %v1913 = vmax.f32 %v1699, %v1795
    %v1914 = vmax.f32 %v1702, %v1798
    %v1915 = vmax.f32 %v1707, %v1803
    %v1916 = vmax.f32 %v1710, %v1806
    %v1917 = vmax.f32 %v1715, %v1811
    %v1918 = vmax.f32 %v1718, %v1814
    %v1919 = vmax.f32 %v1723, %v1819
    %v1920 = vmax.f32 %v1726, %v1822
    %v1921 = vmax.f32 %v1825, %v1873
    %v1922 = vmax.f32 %v1826, %v1874
    %v1923 = vmax.f32 %v1827, %v1875
    %v1924 = vmax.f32 %v1828, %v1876
    %v1925 = vmax.f32 %v1829, %v1877
    %v1926 = vmax.f32 %v1830, %v1878
    %v1927 = vmax.f32 %v1831, %v1879
    %v1928 = vmax.f32 %v1832, %v1880
    %v1929 = vmax.f32 %v1833, %v1881
    %v1930 = vmax.f32 %v1834, %v1882
    %v1931 = vmax.f32 %v1835, %v1883
    %v1932 = vmax.f32 %v1836, %v1884
    %v1933 = vmax.f32 %v1837, %v1885
    %v1934 = vmax.f32 %v1838, %v1886
    %v1935 = vmax.f32 %v1839, %v1887
    %v1936 = vmax.f32 %v1840, %v1888
    %v1937 = vmax.f32 %v1841, %v1889
    %v1938 = vmax.f32 %v1842, %v1890
    %v1939 = vmax.f32 %v1843, %v1891
    %v1940 = vmax.f32 %v1844, %v1892
    %v1941 = vmax.f32 %v1845, %v1893
    %v1942 = vmax.f32 %v1846, %v1894
    %v1943 = vmax.f32 %v1847, %v1895
    %v1944 = vmax.f32 %v1848, %v1896
    %v1945 = vmax.f32 %v1849, %v1897
    %v1946 = vmax.f32 %v1850, %v1898
    %v1947 = vmax.f32 %v1851, %v1899
    %v1948 = vmax.f32 %v1852, %v1900
    %v1949 = vmax.f32 %v1853, %v1901
    %v1950 = vmax.f32 %v1854, %v1902
    %v1951 = vmax.f32 %v1855, %v1903
    %v1952 = vmax.f32 %v1856, %v1904
    %v1953 = vmax.f32 %v1857, %v1905
    %v1954 = vmax.f32 %v1858, %v1906
    %v1955 = vmax.f32 %v1859, %v1907
    %v1956 = vmax.f32 %v1860, %v1908
    %v1957 = vmax.f32 %v1861, %v1909
    %v1958 = vmax.f32 %v1862, %v1910
    %v1959 = vmax.f32 %v1863, %v1911
    %v1960 = vmax.f32 %v1864, %v1912
    %v1961 = vmax.f32 %v1865, %v1913
    %v1962 = vmax.f32 %v1866, %v1914
    %v1963 = vmax.f32 %v1867, %v1915
    %v1964 = vmax.f32 %v1868, %v1916
    %v1965 = vmax.f32 %v1869, %v1917
    %v1966 = vmax.f32 %v1870, %v1918
    %v1967 = vmax.f32 %v1871, %v1919
    %v1968 = vmax.f32 %v1872, %v1920
    %v1969 = vmax.f32 %v1921, 0.0
    %v1970 = vmax.f32 %v1922, 0.0
    %v1971 = vmax.f32 %v1923, 0.0
    %v1972 = vmax.f32 %v1924, 0.0
    %v1973 = vmax.f32 %v1925, 0.0
    %v1974 = vmax.f32 %v1926, 0.0
    %v1975 = vmax.f32 %v1927, 0.0
    %v1976 = vmax.f32 %v1928, 0.0
    %v1977 = vmax.f32 %v1929, 0.0
    %v1978 = vmax.f32 %v1930, 0.0
    %v1979 = vmax.f32 %v1931, 0.0
    %v1980 = vmax.f32 %v1932, 0.0
    %v1981 = vmax.f32 %v1933, 0.0
    %v1982 = vmax.f32 %v1934, 0.0
    %v1983 = vmax.f32 %v1935, 0.0
    %v1984 = vmax.f32 %v1936, 0.0
    %v1985 = vmax.f32 %v1937, 0.0
    %v1986 = vmax.f32 %v1938, 0.0
    %v1987 = vmax.f32 %v1939, 0.0
    %v1988 = vmax.f32 %v1940, 0.0
    %v1989 = vmax.f32 %v1941, 0.0
    %v1990 = vmax.f32 %v1942, 0.0
    %v1991 = vmax.f32 %v1943, 0.0
    %v1992 = vmax.f32 %v1944, 0.0
    %v1993 = vmax.f32 %v1945, 0.0
    %v1994 = vmax.f32 %v1946, 0.0
    %v1995 = vmax.f32 %v1947, 0.0
    %v1996 = vmax.f32 %v1948, 0.0
    %v1997 = vmax.f32 %v1949, 0.0
    %v1998 = vmax.f32 %v1950, 0.0
    %v1999 = vmax.f32 %v1951, 0.0
    %v2000 = vmax.f32 %v1952, 0.0
    %v2001 = vmax.f32 %v1953, 0.0
    %v2002 = vmax.f32 %v1954, 0.0
    %v2003 = vmax.f32 %v1955, 0.0
    %v2004 = vmax.f32 %v1956, 0.0
    %v2005 = vmax.f32 %v1957, 0.0
    %v2006 = vmax.f32 %v1958, 0.0
    %v2007 = vmax.f32 %v1959, 0.0
    %v2008 = vmax.f32 %v1960, 0.0
    %v2009 = vmax.f32 %v1961, 0.0
    %v2010 = vmax.f32 %v1962, 0.0
    %v2011 = vmax.f32 %v1963, 0.0
    %v2012 = vmax.f32 %v1964, 0.0
    %v2013 = vmax.f32 %v1965, 0.0
    %v2014 = vmax.f32 %v1966, 0.0
    %v2015 = vmax.f32 %v1967, 0.0
    %v2016 = vmax.f32 %v1968, 0.0
    %vm2049 = vcmask 1046528
    %v2050 = vrot.slane %v1969, 1
    %v2051 = vrot.slane %v1970, 1
    %v2052 = vsel %vm2049, %v2050, %v2051
    %v2053 = vrot.slane %v1971, 1
    %v2054 = vrot.slane %v1972, 1
    %v2055 = vsel %vm2049, %v2053, %v2054
    %v2056 = vrot.slane %v1973, 1
    %v2057 = vrot.slane %v1974, 1
    %v2058 = vsel %vm2049, %v2056, %v2057
    %v2059 = vrot.slane %v1975, 1
    %v2060 = vrot.slane %v1976, 1
    %v2061 = vsel %vm2049, %v2059, %v2060
    %v2062 = vrot.slane %v1977, 1
    %v2063 = vrot.slane %v1978, 1
    %v2064 = vsel %vm2049, %v2062, %v2063
    %v2065 = vrot.slane %v1979, 1
    %v2066 = vrot.slane %v1980, 1
    %v2067 = vsel %vm2049, %v2065, %v2066
    %v2068 = vrot.slane %v1981, 1
    %v2069 = vrot.slane %v1982, 1
    %v2070 = vsel %vm2049, %v2068, %v2069
    %v2071 = vrot.slane %v1983, 1
    %v2072 = vrot.slane %v1984, 1
    %v2073 = vsel %vm2049, %v2071, %v2072
    %v2074 = vrot.slane %v1993, 1
    %v2075 = vrot.slane %v1994, 1
    %v2076 = vsel %vm2049, %v2074, %v2075
    %v2077 = vrot.slane %v1995, 1
    %v2078 = vrot.slane %v1996, 1
    %v2079 = vsel %vm2049, %v2077, %v2078
    %v2080 = vrot.slane %v1997, 1
    %v2081 = vrot.slane %v1998, 1
    %v2082 = vsel %vm2049, %v2080, %v2081
    %v2083 = vrot.slane %v1999, 1
    %v2084 = vrot.slane %v2000, 1
    %v2085 = vsel %vm2049, %v2083, %v2084
    %v2086 = vrot.slane %v2001, 1
    %v2087 = vrot.slane %v2002, 1
    %v2088 = vsel %vm2049, %v2086, %v2087
    %v2089 = vrot.slane %v2003, 1
    %v2090 = vrot.slane %v2004, 1
    %v2091 = vsel %vm2049, %v2089, %v2090
    %v2092 = vrot.slane %v2005, 1
    %v2093 = vrot.slane %v2006, 1
    %v2094 = vsel %vm2049, %v2092, %v2093
    %v2095 = vrot.slane %v2007, 1
    %v2096 = vrot.slane %v2008, 1
    %v2097 = vsel %vm2049, %v2095, %v2096
    %vm2098 = vcmask 1045504
    %v2099 = vrot.slane %v1969, 2
    %v2100 = vrot.slane %v1970, 2
    %v2101 = vsel %vm2098, %v2099, %v2100
    %v2102 = vrot.slane %v1971, 2
    %v2103 = vrot.slane %v1972, 2
    %v2104 = vsel %vm2098, %v2102, %v2103
    %v2105 = vrot.slane %v1973, 2
    %v2106 = vrot.slane %v1974, 2
    %v2107 = vsel %vm2098, %v2105, %v2106
    %v2108 = vrot.slane %v1975, 2
    %v2109 = vrot.slane %v1976, 2
    %v2110 = vsel %vm2098, %v2108, %v2109
    %v2111 = vrot.slane %v1977, 2
    %v2112 = vrot.slane %v1978, 2
    %v2113 = vsel %vm2098, %v2111, %v2112
    %v2114 = vrot.slane %v1979, 2
    %v2115 = vrot.slane %v1980, 2
    %v2116 = vsel %vm2098, %v2114, %v2115
    %v2117 = vrot.slane %v1981, 2
    %v2118 = vrot.slane %v1982, 2
    %v2119 = vsel %vm2098, %v2117, %v2118
    %v2120 = vrot.slane %v1983, 2
    %v2121 = vrot.slane %v1984, 2
    %v2122 = vsel %vm2098, %v2120, %v2121
    %v2123 = vrot.slane %v1993, 2
    %v2124 = vrot.slane %v1994, 2
    %v2125 = vsel %vm2098, %v2123, %v2124
    %v2126 = vrot.slane %v1995, 2
    %v2127 = vrot.slane %v1996, 2
    %v2128 = vsel %vm2098, %v2126, %v2127
    %v2129 = vrot.slane %v1997, 2
    %v2130 = vrot.slane %v1998, 2
    %v2131 = vsel %vm2098, %v2129, %v2130
    %v2132 = vrot.slane %v1999, 2
    %v2133 = vrot.slane %v2000, 2
    %v2134 = vsel %vm2098, %v2132, %v2133
    %v2135 = vrot.slane %v2001, 2
    %v2136 = vrot.slane %v2002, 2
    %v2137 = vsel %vm2098, %v2135, %v2136
    %v2138 = vrot.slane %v2003, 2
    %v2139 = vrot.slane %v2004, 2
    %v2140 = vsel %vm2098, %v2138, %v2139
    %v2141 = vrot.slane %v2005, 2
    %v2142 = vrot.slane %v2006, 2
    %v2143 = vsel %vm2098, %v2141, %v2142
    %v2144 = vrot.slane %v2007, 2
    %v2145 = vrot.slane %v2008, 2
    %v2146 = vsel %vm2098, %v2144, %v2145
    %v2147 = vrot.slane %v1969, 3
    %v2148 = vrot.slane %v1970, 3
    %v2149 = vsel %vm1018, %v2147, %v2148
    %v2150 = vrot.slane %v1971, 3
    %v2151 = vrot.slane %v1972, 3
    %v2152 = vsel %vm1018, %v2150, %v2151
    %v2153 = vrot.slane %v1973, 3
    %v2154 = vrot.slane %v1974, 3
    %v2155 = vsel %vm1018, %v2153, %v2154
    %v2156 = vrot.slane %v1975, 3
    %v2157 = vrot.slane %v1976, 3
    %v2158 = vsel %vm1018, %v2156, %v2157
    %v2159 = vrot.slane %v1977, 3
    %v2160 = vrot.slane %v1978, 3
    %v2161 = vsel %vm1018, %v2159, %v2160
    %v2162 = vrot.slane %v1979, 3
    %v2163 = vrot.slane %v1980, 3
    %v2164 = vsel %vm1018, %v2162, %v2163
    %v2165 = vrot.slane %v1981, 3
    %v2166 = vrot.slane %v1982, 3
    %v2167 = vsel %vm1018, %v2165, %v2166
    %v2168 = vrot.slane %v1983, 3
    %v2169 = vrot.slane %v1984, 3
    %v2170 = vsel %vm1018, %v2168, %v2169
    %v2171 = vrot.slane %v1993, 3
    %v2172 = vrot.slane %v1994, 3
    %v2173 = vsel %vm1018, %v2171, %v2172
    %v2174 = vrot.slane %v1995, 3
    %v2175 = vrot.slane %v1996, 3
    %v2176 = vsel %vm1018, %v2174, %v2175
    %v2177 = vrot.slane %v1997, 3
    %v2178 = vrot.slane %v1998, 3
    %v2179 = vsel %vm1018, %v2177, %v2178
    %v2180 = vrot.slane %v1999, 3
    %v2181 = vrot.slane %v2000, 3
    %v2182 = vsel %vm1018, %v2180, %v2181
    %v2183 = vrot.slane %v2001, 3
    %v2184 = vrot.slane %v2002, 3
    %v2185 = vsel %vm1018, %v2183, %v2184
    %v2186 = vrot.slane %v2003, 3
    %v2187 = vrot.slane %v2004, 3
    %v2188 = vsel %vm1018, %v2186, %v2187
    %v2189 = vrot.slane %v2005, 3
    %v2190 = vrot.slane %v2006, 3
    %v2191 = vsel %vm1018, %v2189, %v2190
    %v2192 = vrot.slane %v2007, 3
    %v2193 = vrot.slane %v2008, 3
    %v2194 = vsel %vm1018, %v2192, %v2193
    %v2195 = vrot.slane %v1969, 4
    %v2196 = vrot.slane %v1970, 4
    %v2197 = vsel %vm1017, %v2195, %v2196
    %v2198 = vrot.slane %v1971, 4
    %v2199 = vrot.slane %v1972, 4
    %v2200 = vsel %vm1017, %v2198, %v2199
    %v2201 = vrot.slane %v1973, 4
    %v2202 = vrot.slane %v1974, 4
    %v2203 = vsel %vm1017, %v2201, %v2202
    %v2204 = vrot.slane %v1975, 4
    %v2205 = vrot.slane %v1976, 4
    %v2206 = vsel %vm1017, %v2204, %v2205
    %v2207 = vrot.slane %v1977, 4
    %v2208 = vrot.slane %v1978, 4
    %v2209 = vsel %vm1017, %v2207, %v2208
    %v2210 = vrot.slane %v1979, 4
    %v2211 = vrot.slane %v1980, 4
    %v2212 = vsel %vm1017, %v2210, %v2211
    %v2213 = vrot.slane %v1981, 4
    %v2214 = vrot.slane %v1982, 4
    %v2215 = vsel %vm1017, %v2213, %v2214
    %v2216 = vrot.slane %v1983, 4
    %v2217 = vrot.slane %v1984, 4
    %v2218 = vsel %vm1017, %v2216, %v2217
    %v2219 = vrot.slane %v1993, 4
    %v2220 = vrot.slane %v1994, 4
    %v2221 = vsel %vm1017, %v2219, %v2220
    %v2222 = vrot.slane %v1995, 4
    %v2223 = vrot.slane %v1996, 4
    %v2224 = vsel %vm1017, %v2222, %v2223
    %v2225 = vrot.slane %v1997, 4
    %v2226 = vrot.slane %v1998, 4
    %v2227 = vsel %vm1017, %v2225, %v2226
    %v2228 = vrot.slane %v1999, 4
    %v2229 = vrot.slane %v2000, 4
    %v2230 = vsel %vm1017, %v2228, %v2229
    %v2231 = vrot.slane %v2001, 4
    %v2232 = vrot.slane %v2002, 4
    %v2233 = vsel %vm1017, %v2231, %v2232
    %v2234 = vrot.slane %v2003, 4
    %v2235 = vrot.slane %v2004, 4
    %v2236 = vsel %vm1017, %v2234, %v2235
    %v2237 = vrot.slane %v2005, 4
    %v2238 = vrot.slane %v2006, 4
    %v2239 = vsel %vm1017, %v2237, %v2238
    %v2240 = vrot.slane %v2007, 4
    %v2241 = vrot.slane %v2008, 4
    %v2242 = vsel %vm1017, %v2240, %v2241
    %v2247 = vrot.slane %v1985, 1
    %v2248 = vrot.slane %v1986, 1
    %v2249 = vsel %vm2049, %v2247, %v2248
    %v2250 = vrot.slane %v2009, 1
    %v2251 = vrot.slane %v2010, 1
    %v2252 = vsel %vm2049, %v2250, %v2251
    %v2253 = vrot.slane %v1985, 2
    %v2254 = vrot.slane %v1986, 2
    %v2255 = vsel %vm2098, %v2253, %v2254
    %v2256 = vrot.slane %v2009, 2
    %v2257 = vrot.slane %v2010, 2
    %v2258 = vsel %vm2098, %v2256, %v2257
    %v2259 = vrot.slane %v1985, 3
    %v2260 = vrot.slane %v1986, 3
    %v2261 = vsel %vm1018, %v2259, %v2260
    %v2262 = vrot.slane %v2009, 3
    %v2263 = vrot.slane %v2010, 3
    %v2264 = vsel %vm1018, %v2262, %v2263
    %v2265 = vrot.slane %v1985, 4
    %v2266 = vrot.slane %v1986, 4
    %v2267 = vsel %vm1017, %v2265, %v2266
    %v2268 = vrot.slane %v2009, 4
    %v2269 = vrot.slane %v2010, 4
    %v2270 = vsel %vm1017, %v2268, %v2269
    %v2275 = vrot.slane %v1987, 1
    %v2276 = vrot.slane %v1988, 1
    %v2277 = vsel %vm2049, %v2275, %v2276
    %v2278 = vrot.slane %v2011, 1
    %v2279 = vrot.slane %v2012, 1
    %v2280 = vsel %vm2049, %v2278, %v2279
    %v2281 = vrot.slane %v1987, 2
    %v2282 = vrot.slane %v1988, 2
    %v2283 = vsel %vm2098, %v2281, %v2282
    %v2284 = vrot.slane %v2011, 2
    %v2285 = vrot.slane %v2012, 2
    %v2286 = vsel %vm2098, %v2284, %v2285
    %v2287 = vrot.slane %v1987, 3
    %v2288 = vrot.slane %v1988, 3
    %v2289 = vsel %vm1018, %v2287, %v2288
    %v2290 = vrot.slane %v2011, 3
    %v2291 = vrot.slane %v2012, 3
    %v2292 = vsel %vm1018, %v2290, %v2291
    %v2293 = vrot.slane %v1987, 4
    %v2294 = vrot.slane %v1988, 4
    %v2295 = vsel %vm1017, %v2293, %v2294
    %v2296 = vrot.slane %v2011, 4
    %v2297 = vrot.slane %v2012, 4
    %v2298 = vsel %vm1017, %v2296, %v2297
    %v2303 = vrot.slane %v1989, 1
    %v2304 = vrot.slane %v1990, 1
    %v2305 = vsel %vm2049, %v2303, %v2304
    %v2306 = vrot.slane %v2013, 1
    %v2307 = vrot.slane %v2014, 1
    %v2308 = vsel %vm2049, %v2306, %v2307
    %v2325 = vrot.slane %v1989, 2
    %v2326 = vrot.slane %v1990, 2
    %v2327 = vsel %vm2098, %v2325, %v2326
    %v2328 = vrot.slane %v2013, 2
    %v2329 = vrot.slane %v2014, 2
    %v2330 = vsel %vm2098, %v2328, %v2329
    %v2331 = vrot.slane %v1989, 3
    %v2332 = vrot.slane %v1990, 3
    %v2333 = vsel %vm1018, %v2331, %v2332
    %v2334 = vrot.slane %v2013, 3
    %v2335 = vrot.slane %v2014, 3
    %v2336 = vsel %vm1018, %v2334, %v2335
    %v2337 = vrot.slane %v1989, 4
    %v2338 = vrot.slane %v1990, 4
    %v2339 = vsel %vm1017, %v2337, %v2338
    %v2340 = vrot.slane %v2013, 4
    %v2341 = vrot.slane %v2014, 4
    %v2342 = vsel %vm1017, %v2340, %v2341
    %v2347 = vrot.slane %v1991, 1
    %v2348 = vrot.slane %v1992, 1
    %v2349 = vsel %vm2049, %v2347, %v2348
    %v2350 = vrot.slane %v2015, 1
    %v2351 = vrot.slane %v2016, 1
    %v2352 = vsel %vm2049, %v2350, %v2351
    %v2353 = vrot.slane %v1991, 2
    %v2354 = vrot.slane %v1992, 2
    %v2355 = vsel %vm2098, %v2353, %v2354
    %v2356 = vrot.slane %v2015, 2
    %v2357 = vrot.slane %v2016, 2
    %v2358 = vsel %vm2098, %v2356, %v2357
    %v2359 = vrot.slane %v1991, 3
    %v2360 = vrot.slane %v1992, 3
    %v2361 = vsel %vm1018, %v2359, %v2360
    %v2362 = vrot.slane %v2015, 3
    %v2363 = vrot.slane %v2016, 3
    %v2364 = vsel %vm1018, %v2362, %v2363
    %v2365 = vrot.slane %v1991, 4
    %v2366 = vrot.slane %v1992, 4
    %v2367 = vsel %vm1017, %v2365, %v2366
    %v2368 = vrot.slane %v2015, 4
    %v2369 = vrot.slane %v2016, 4
    %v2370 = vsel %vm1017, %v2368, %v2369
    %2371 = vrot.lane.b32.xlu0 %v2052, 10
    %v2372 = vpop.permute.xlu0 %2371
    %2373 = vrot.lane.b32.xlu0 %v2055, 10
    %v2374 = vpop.permute.xlu0 %2373
    %2375 = vrot.lane.b32.xlu0 %v2058, 10
    %v2376 = vpop.permute.xlu0 %2375
    %2377 = vrot.lane.b32.xlu0 %v2061, 10
    %v2378 = vpop.permute.xlu0 %2377
    %2379 = vrot.lane.b32.xlu0 %v2064, 10
    %v2380 = vpop.permute.xlu0 %2379
    %2381 = vrot.lane.b32.xlu0 %v2067, 10
    %v2382 = vpop.permute.xlu0 %2381
    %2383 = vrot.lane.b32.xlu0 %v2070, 10
    %v2384 = vpop.permute.xlu0 %2383
    %2385 = vrot.lane.b32.xlu0 %v2073, 10
    %v2386 = vpop.permute.xlu0 %2385
    %2387 = vrot.lane.b32.xlu0 %v2076, 10
    %v2388 = vpop.permute.xlu0 %2387
    %2389 = vrot.lane.b32.xlu0 %v2079, 10
    %v2390 = vpop.permute.xlu0 %2389
    %2391 = vrot.lane.b32.xlu0 %v2082, 10
    %v2392 = vpop.permute.xlu0 %2391
    %2393 = vrot.lane.b32.xlu0 %v2085, 10
    %v2394 = vpop.permute.xlu0 %2393
    %2395 = vrot.lane.b32.xlu0 %v2088, 10
    %v2396 = vpop.permute.xlu0 %2395
    %2397 = vrot.lane.b32.xlu0 %v2091, 10
    %v2398 = vpop.permute.xlu0 %2397
    %2399 = vrot.lane.b32.xlu0 %v2094, 10
    %v2400 = vpop.permute.xlu0 %2399
    %2401 = vrot.lane.b32.xlu0 %v2097, 10
    %v2402 = vpop.permute.xlu0 %2401
    %2419 = vrot.lane.b32.xlu0 %v2101, 20
    %v2420 = vpop.permute.xlu0 %2419
    %2421 = vrot.lane.b32.xlu0 %v2104, 20
    %v2422 = vpop.permute.xlu0 %2421
    %2423 = vrot.lane.b32.xlu0 %v2107, 20
    %v2424 = vpop.permute.xlu0 %2423
    %2425 = vrot.lane.b32.xlu0 %v2110, 20
    %v2426 = vpop.permute.xlu0 %2425
    %2427 = vrot.lane.b32.xlu0 %v2113, 20
    %v2428 = vpop.permute.xlu0 %2427
    %2429 = vrot.lane.b32.xlu0 %v2116, 20
    %v2430 = vpop.permute.xlu0 %2429
    %2431 = vrot.lane.b32.xlu0 %v2119, 20
    %v2432 = vpop.permute.xlu0 %2431
    %2433 = vrot.lane.b32.xlu0 %v2122, 20
    %v2434 = vpop.permute.xlu0 %2433
    %2435 = vrot.lane.b32.xlu0 %v2125, 20
    %v2436 = vpop.permute.xlu0 %2435
    %2437 = vrot.lane.b32.xlu0 %v2128, 20
    %v2438 = vpop.permute.xlu0 %2437
    %2439 = vrot.lane.b32.xlu0 %v2131, 20
    %v2440 = vpop.permute.xlu0 %2439
    %2441 = vrot.lane.b32.xlu0 %v2134, 20
    %v2442 = vpop.permute.xlu0 %2441
    %2443 = vrot.lane.b32.xlu0 %v2137, 20
    %v2444 = vpop.permute.xlu0 %2443
    %2445 = vrot.lane.b32.xlu0 %v2140, 20
    %v2446 = vpop.permute.xlu0 %2445
    %2447 = vrot.lane.b32.xlu0 %v2143, 20
    %v2448 = vpop.permute.xlu0 %2447
    %2449 = vrot.lane.b32.xlu0 %v2146, 20
    %v2450 = vpop.permute.xlu0 %2449
    %2467 = vrot.lane.b32.xlu0 %v2149, 30
    %v2468 = vpop.permute.xlu0 %2467
    %2469 = vrot.lane.b32.xlu0 %v2152, 30
    %v2470 = vpop.permute.xlu0 %2469
    %2471 = vrot.lane.b32.xlu0 %v2155, 30
    %v2472 = vpop.permute.xlu0 %2471
    %2473 = vrot.lane.b32.xlu0 %v2158, 30
    %v2474 = vpop.permute.xlu0 %2473
    %2475 = vrot.lane.b32.xlu0 %v2161, 30
    %v2476 = vpop.permute.xlu0 %2475
    %2477 = vrot.lane.b32.xlu0 %v2164, 30
    %v2478 = vpop.permute.xlu0 %2477
    %2479 = vrot.lane.b32.xlu0 %v2167, 30
    %v2480 = vpop.permute.xlu0 %2479
    %2481 = vrot.lane.b32.xlu0 %v2170, 30
    %v2482 = vpop.permute.xlu0 %2481
    %2483 = vrot.lane.b32.xlu0 %v2173, 30
    %v2484 = vpop.permute.xlu0 %2483
    %2485 = vrot.lane.b32.xlu0 %v2176, 30
    %v2486 = vpop.permute.xlu0 %2485
    %2487 = vrot.lane.b32.xlu0 %v2179, 30
    %v2488 = vpop.permute.xlu0 %2487
    %2489 = vrot.lane.b32.xlu0 %v2182, 30
    %v2490 = vpop.permute.xlu0 %2489
    %2491 = vrot.lane.b32.xlu0 %v2185, 30
    %v2492 = vpop.permute.xlu0 %2491
    %2493 = vrot.lane.b32.xlu0 %v2188, 30
    %v2494 = vpop.permute.xlu0 %2493
    %2495 = vrot.lane.b32.xlu0 %v2191, 30
    %v2496 = vpop.permute.xlu0 %2495
    %2497 = vrot.lane.b32.xlu0 %v2194, 30
    %v2498 = vpop.permute.xlu0 %2497
    %2515 = vrot.lane.b32.xlu0 %v2197, 40
    %v2516 = vpop.permute.xlu0 %2515
    %2517 = vrot.lane.b32.xlu0 %v2200, 40
    %v2518 = vpop.permute.xlu0 %2517
    %2519 = vrot.lane.b32.xlu0 %v2203, 40
    %v2520 = vpop.permute.xlu0 %2519
    %2521 = vrot.lane.b32.xlu0 %v2206, 40
    %v2522 = vpop.permute.xlu0 %2521
    %2523 = vrot.lane.b32.xlu0 %v2209, 40
    %v2524 = vpop.permute.xlu0 %2523
    %2525 = vrot.lane.b32.xlu0 %v2212, 40
    %v2526 = vpop.permute.xlu0 %2525
    %2527 = vrot.lane.b32.xlu0 %v2215, 40
    %v2528 = vpop.permute.xlu0 %2527
    %2529 = vrot.lane.b32.xlu0 %v2218, 40
    %v2530 = vpop.permute.xlu0 %2529
    %2531 = vrot.lane.b32.xlu0 %v2221, 40
    %v2532 = vpop.permute.xlu0 %2531
    %2533 = vrot.lane.b32.xlu0 %v2224, 40
    %v2534 = vpop.permute.xlu0 %2533
    %2535 = vrot.lane.b32.xlu0 %v2227, 40
    %v2536 = vpop.permute.xlu0 %2535
    %2537 = vrot.lane.b32.xlu0 %v2230, 40
    %v2538 = vpop.permute.xlu0 %2537
    %2539 = vrot.lane.b32.xlu0 %v2233, 40
    %v2540 = vpop.permute.xlu0 %2539
    %2541 = vrot.lane.b32.xlu0 %v2236, 40
    %v2542 = vpop.permute.xlu0 %2541
    %2543 = vrot.lane.b32.xlu0 %v2239, 40
    %v2544 = vpop.permute.xlu0 %2543
    %2545 = vrot.lane.b32.xlu0 %v2242, 40
    %v2546 = vpop.permute.xlu0 %2545
    %2563 = vrot.lane.b32.xlu0 %v1971, 50
    %v2564 = vpop.permute.xlu0 %2563
    %2565 = vrot.lane.b32.xlu0 %v1973, 50
    %v2566 = vpop.permute.xlu0 %2565
    %2567 = vrot.lane.b32.xlu0 %v1975, 50
    %v2568 = vpop.permute.xlu0 %2567
    %2569 = vrot.lane.b32.xlu0 %v1977, 50
    %v2570 = vpop.permute.xlu0 %2569
    %2571 = vrot.lane.b32.xlu0 %v1979, 50
    %v2572 = vpop.permute.xlu0 %2571
    %2573 = vrot.lane.b32.xlu0 %v1981, 50
    %v2574 = vpop.permute.xlu0 %2573
    %2575 = vrot.lane.b32.xlu0 %v1983, 50
    %v2576 = vpop.permute.xlu0 %2575
    %2577 = vrot.lane.b32.xlu0 %v1985, 50
    %v2578 = vpop.permute.xlu0 %2577
    %2579 = vrot.lane.b32.xlu0 %v1995, 50
    %v2580 = vpop.permute.xlu0 %2579
    %2581 = vrot.lane.b32.xlu0 %v1997, 50
    %v2582 = vpop.permute.xlu0 %2581
    %2583 = vrot.lane.b32.xlu0 %v1999, 50
    %v2584 = vpop.permute.xlu0 %2583
    %2585 = vrot.lane.b32.xlu0 %v2001, 50
    %v2586 = vpop.permute.xlu0 %2585
    %2587 = vrot.lane.b32.xlu0 %v2003, 50
    %v2588 = vpop.permute.xlu0 %2587
    %2589 = vrot.lane.b32.xlu0 %v2005, 50
    %v2590 = vpop.permute.xlu0 %2589
    %2591 = vrot.lane.b32.xlu0 %v2007, 50
    %v2592 = vpop.permute.xlu0 %2591
    %2593 = vrot.lane.b32.xlu0 %v2009, 50
    %v2594 = vpop.permute.xlu0 %2593
    %2611 = vrot.lane.b32.xlu0 %v2055, 60
    %v2612 = vpop.permute.xlu0 %2611
    %2613 = vrot.lane.b32.xlu0 %v2058, 60
    %v2614 = vpop.permute.xlu0 %2613
    %2615 = vrot.lane.b32.xlu0 %v2061, 60
    %v2616 = vpop.permute.xlu0 %2615
    %2617 = vrot.lane.b32.xlu0 %v2064, 60
    %v2618 = vpop.permute.xlu0 %2617
    %2619 = vrot.lane.b32.xlu0 %v2067, 60
    %v2620 = vpop.permute.xlu0 %2619
    %2621 = vrot.lane.b32.xlu0 %v2070, 60
    %v2622 = vpop.permute.xlu0 %2621
    %2623 = vrot.lane.b32.xlu0 %v2073, 60
    %v2624 = vpop.permute.xlu0 %2623
    %2625 = vrot.lane.b32.xlu0 %v2249, 60
    %v2626 = vpop.permute.xlu0 %2625
    %2627 = vrot.lane.b32.xlu0 %v2079, 60
    %v2628 = vpop.permute.xlu0 %2627
    %2629 = vrot.lane.b32.xlu0 %v2082, 60
    %v2630 = vpop.permute.xlu0 %2629
    %2631 = vrot.lane.b32.xlu0 %v2085, 60
    %v2632 = vpop.permute.xlu0 %2631
    %2633 = vrot.lane.b32.xlu0 %v2088, 60
    %v2634 = vpop.permute.xlu0 %2633
    %2635 = vrot.lane.b32.xlu0 %v2091, 60
    %v2636 = vpop.permute.xlu0 %2635
    %2637 = vrot.lane.b32.xlu0 %v2094, 60
    %v2638 = vpop.permute.xlu0 %2637
    %2639 = vrot.lane.b32.xlu0 %v2097, 60
    %v2640 = vpop.permute.xlu0 %2639
    %2641 = vrot.lane.b32.xlu0 %v2252, 60
    %v2642 = vpop.permute.xlu0 %2641
    %2659 = vrot.lane.b32.xlu0 %v2104, 70
    %v2660 = vpop.permute.xlu0 %2659
    %2661 = vrot.lane.b32.xlu0 %v2107, 70
    %v2662 = vpop.permute.xlu0 %2661
    %2663 = vrot.lane.b32.xlu0 %v2110, 70
    %v2664 = vpop.permute.xlu0 %2663
    %2665 = vrot.lane.b32.xlu0 %v2113, 70
    %v2666 = vpop.permute.xlu0 %2665
    %2667 = vrot.lane.b32.xlu0 %v2116, 70
    %v2668 = vpop.permute.xlu0 %2667
    %2669 = vrot.lane.b32.xlu0 %v2119, 70
    %v2670 = vpop.permute.xlu0 %2669
    %2671 = vrot.lane.b32.xlu0 %v2122, 70
    %v2672 = vpop.permute.xlu0 %2671
    %2673 = vrot.lane.b32.xlu0 %v2255, 70
    %v2674 = vpop.permute.xlu0 %2673
    %2675 = vrot.lane.b32.xlu0 %v2128, 70
    %v2676 = vpop.permute.xlu0 %2675
    %2677 = vrot.lane.b32.xlu0 %v2131, 70
    %v2678 = vpop.permute.xlu0 %2677
    %2679 = vrot.lane.b32.xlu0 %v2134, 70
    %v2680 = vpop.permute.xlu0 %2679
    %2681 = vrot.lane.b32.xlu0 %v2137, 70
    %v2682 = vpop.permute.xlu0 %2681
    %2683 = vrot.lane.b32.xlu0 %v2140, 70
    %v2684 = vpop.permute.xlu0 %2683
    %2685 = vrot.lane.b32.xlu0 %v2143, 70
    %v2686 = vpop.permute.xlu0 %2685
    %2687 = vrot.lane.b32.xlu0 %v2146, 70
    %v2688 = vpop.permute.xlu0 %2687
    %2689 = vrot.lane.b32.xlu0 %v2258, 70
    %v2690 = vpop.permute.xlu0 %2689
    %2707 = vrot.lane.b32.xlu0 %v2152, 80
    %v2708 = vpop.permute.xlu0 %2707
    %2709 = vrot.lane.b32.xlu0 %v2155, 80
    %v2710 = vpop.permute.xlu0 %2709
    %2711 = vrot.lane.b32.xlu0 %v2158, 80
    %v2712 = vpop.permute.xlu0 %2711
    %2713 = vrot.lane.b32.xlu0 %v2161, 80
    %v2714 = vpop.permute.xlu0 %2713
    %2715 = vrot.lane.b32.xlu0 %v2164, 80
    %v2716 = vpop.permute.xlu0 %2715
    %2717 = vrot.lane.b32.xlu0 %v2167, 80
    %v2718 = vpop.permute.xlu0 %2717
    %2719 = vrot.lane.b32.xlu0 %v2170, 80
    %v2720 = vpop.permute.xlu0 %2719
    %2721 = vrot.lane.b32.xlu0 %v2261, 80
    %v2722 = vpop.permute.xlu0 %2721
    %2723 = vrot.lane.b32.xlu0 %v2176, 80
    %v2724 = vpop.permute.xlu0 %2723
    %2725 = vrot.lane.b32.xlu0 %v2179, 80
    %v2726 = vpop.permute.xlu0 %2725
    %2727 = vrot.lane.b32.xlu0 %v2182, 80
    %v2728 = vpop.permute.xlu0 %2727
    %2729 = vrot.lane.b32.xlu0 %v2185, 80
    %v2730 = vpop.permute.xlu0 %2729
    %2731 = vrot.lane.b32.xlu0 %v2188, 80
    %v2732 = vpop.permute.xlu0 %2731
    %2733 = vrot.lane.b32.xlu0 %v2191, 80
    %v2734 = vpop.permute.xlu0 %2733
    %2735 = vrot.lane.b32.xlu0 %v2194, 80
    %v2736 = vpop.permute.xlu0 %2735
    %2737 = vrot.lane.b32.xlu0 %v2264, 80
    %v2738 = vpop.permute.xlu0 %2737
    %2755 = vrot.lane.b32.xlu0 %v2200, 90
    %v2756 = vpop.permute.xlu0 %2755
    %2757 = vrot.lane.b32.xlu0 %v2203, 90
    %v2758 = vpop.permute.xlu0 %2757
    %2759 = vrot.lane.b32.xlu0 %v2206, 90
    %v2760 = vpop.permute.xlu0 %2759
    %2761 = vrot.lane.b32.xlu0 %v2209, 90
    %v2762 = vpop.permute.xlu0 %2761
    %2763 = vrot.lane.b32.xlu0 %v2212, 90
    %v2764 = vpop.permute.xlu0 %2763
    %2765 = vrot.lane.b32.xlu0 %v2215, 90
    %v2766 = vpop.permute.xlu0 %2765
    %2767 = vrot.lane.b32.xlu0 %v2218, 90
    %v2768 = vpop.permute.xlu0 %2767
    %2769 = vrot.lane.b32.xlu0 %v2267, 90
    %v2770 = vpop.permute.xlu0 %2769
    %2771 = vrot.lane.b32.xlu0 %v2224, 90
    %v2772 = vpop.permute.xlu0 %2771
    %2773 = vrot.lane.b32.xlu0 %v2227, 90
    %v2774 = vpop.permute.xlu0 %2773
    %2775 = vrot.lane.b32.xlu0 %v2230, 90
    %v2776 = vpop.permute.xlu0 %2775
    %2777 = vrot.lane.b32.xlu0 %v2233, 90
    %v2778 = vpop.permute.xlu0 %2777
    %2779 = vrot.lane.b32.xlu0 %v2236, 90
    %v2780 = vpop.permute.xlu0 %2779
    %2781 = vrot.lane.b32.xlu0 %v2239, 90
    %v2782 = vpop.permute.xlu0 %2781
    %2783 = vrot.lane.b32.xlu0 %v2242, 90
    %v2784 = vpop.permute.xlu0 %2783
    %2785 = vrot.lane.b32.xlu0 %v2270, 90
    %v2786 = vpop.permute.xlu0 %2785
    %2803 = vrot.lane.b32.xlu0 %v1973, 100
    %v2804 = vpop.permute.xlu0 %2803
    %2805 = vrot.lane.b32.xlu0 %v1975, 100
    %v2806 = vpop.permute.xlu0 %2805
    %2807 = vrot.lane.b32.xlu0 %v1977, 100
    %v2808 = vpop.permute.xlu0 %2807
    %2809 = vrot.lane.b32.xlu0 %v1979, 100
    %v2810 = vpop.permute.xlu0 %2809
    %2811 = vrot.lane.b32.xlu0 %v1981, 100
    %v2812 = vpop.permute.xlu0 %2811
    %2813 = vrot.lane.b32.xlu0 %v1983, 100
    %v2814 = vpop.permute.xlu0 %2813
    %2815 = vrot.lane.b32.xlu0 %v1985, 100
    %v2816 = vpop.permute.xlu0 %2815
    %2817 = vrot.lane.b32.xlu0 %v1987, 100
    %v2818 = vpop.permute.xlu0 %2817
    %2819 = vrot.lane.b32.xlu0 %v1997, 100
    %v2820 = vpop.permute.xlu0 %2819
    %2821 = vrot.lane.b32.xlu0 %v1999, 100
    %v2822 = vpop.permute.xlu0 %2821
    %2823 = vrot.lane.b32.xlu0 %v2001, 100
    %v2824 = vpop.permute.xlu0 %2823
    %2825 = vrot.lane.b32.xlu0 %v2003, 100
    %v2826 = vpop.permute.xlu0 %2825
    %2827 = vrot.lane.b32.xlu0 %v2005, 100
    %v2828 = vpop.permute.xlu0 %2827
    %2829 = vrot.lane.b32.xlu0 %v2007, 100
    %v2830 = vpop.permute.xlu0 %2829
    %2831 = vrot.lane.b32.xlu0 %v2009, 100
    %v2832 = vpop.permute.xlu0 %2831
    %2833 = vrot.lane.b32.xlu0 %v2011, 100
    %v2834 = vpop.permute.xlu0 %2833
    %2851 = vrot.lane.b32.xlu0 %v2058, 110
    %v2852 = vpop.permute.xlu0 %2851
    %2853 = vrot.lane.b32.xlu0 %v2061, 110
    %v2854 = vpop.permute.xlu0 %2853
    %2855 = vrot.lane.b32.xlu0 %v2064, 110
    %v2856 = vpop.permute.xlu0 %2855
    %2857 = vrot.lane.b32.xlu0 %v2067, 110
    %v2858 = vpop.permute.xlu0 %2857
    %2859 = vrot.lane.b32.xlu0 %v2070, 110
    %v2860 = vpop.permute.xlu0 %2859
    %2861 = vrot.lane.b32.xlu0 %v2073, 110
    %v2862 = vpop.permute.xlu0 %2861
    %2863 = vrot.lane.b32.xlu0 %v2249, 110
    %v2864 = vpop.permute.xlu0 %2863
    %2865 = vrot.lane.b32.xlu0 %v2277, 110
    %v2866 = vpop.permute.xlu0 %2865
    %2867 = vrot.lane.b32.xlu0 %v2082, 110
    %v2868 = vpop.permute.xlu0 %2867
    %2869 = vrot.lane.b32.xlu0 %v2085, 110
    %v2870 = vpop.permute.xlu0 %2869
    %2871 = vrot.lane.b32.xlu0 %v2088, 110
    %v2872 = vpop.permute.xlu0 %2871
    %2873 = vrot.lane.b32.xlu0 %v2091, 110
    %v2874 = vpop.permute.xlu0 %2873
    %2875 = vrot.lane.b32.xlu0 %v2094, 110
    %v2876 = vpop.permute.xlu0 %2875
    %2877 = vrot.lane.b32.xlu0 %v2097, 110
    %v2878 = vpop.permute.xlu0 %2877
    %2879 = vrot.lane.b32.xlu0 %v2252, 110
    %v2880 = vpop.permute.xlu0 %2879
    %2881 = vrot.lane.b32.xlu0 %v2280, 110
    %v2882 = vpop.permute.xlu0 %2881
    %2899 = vrot.lane.b32.xlu0 %v2107, 120
    %v2900 = vpop.permute.xlu0 %2899
    %2901 = vrot.lane.b32.xlu0 %v2110, 120
    %v2902 = vpop.permute.xlu0 %2901
    %2903 = vrot.lane.b32.xlu0 %v2113, 120
    %v2904 = vpop.permute.xlu0 %2903
    %2905 = vrot.lane.b32.xlu0 %v2116, 120
    %v2906 = vpop.permute.xlu0 %2905
    %2907 = vrot.lane.b32.xlu0 %v2119, 120
    %v2908 = vpop.permute.xlu0 %2907
    %2909 = vrot.lane.b32.xlu0 %v2122, 120
    %v2910 = vpop.permute.xlu0 %2909
    %2911 = vrot.lane.b32.xlu0 %v2255, 120
    %v2912 = vpop.permute.xlu0 %2911
    %2913 = vrot.lane.b32.xlu0 %v2283, 120
    %v2914 = vpop.permute.xlu0 %2913
    %2915 = vrot.lane.b32.xlu0 %v2131, 120
    %v2916 = vpop.permute.xlu0 %2915
    %2917 = vrot.lane.b32.xlu0 %v2134, 120
    %v2918 = vpop.permute.xlu0 %2917
    %2919 = vrot.lane.b32.xlu0 %v2137, 120
    %v2920 = vpop.permute.xlu0 %2919
    %2921 = vrot.lane.b32.xlu0 %v2140, 120
    %v2922 = vpop.permute.xlu0 %2921
    %2923 = vrot.lane.b32.xlu0 %v2143, 120
    %v2924 = vpop.permute.xlu0 %2923
    %2925 = vrot.lane.b32.xlu0 %v2146, 120
    %v2926 = vpop.permute.xlu0 %2925
    %2927 = vrot.lane.b32.xlu0 %v2258, 120
    %v2928 = vpop.permute.xlu0 %2927
    %2929 = vrot.lane.b32.xlu0 %v2286, 120
    %v2930 = vpop.permute.xlu0 %2929
    %2947 = vrot.lane.b32.xlu0 %v2155, 2
    %v2948 = vpop.permute.xlu0 %2947
    %2949 = vrot.lane.b32.xlu0 %v2158, 2
    %v2950 = vpop.permute.xlu0 %2949
    %2951 = vrot.lane.b32.xlu0 %v2161, 2
    %v2952 = vpop.permute.xlu0 %2951
    %2953 = vrot.lane.b32.xlu0 %v2164, 2
    %v2954 = vpop.permute.xlu0 %2953
    %2955 = vrot.lane.b32.xlu0 %v2167, 2
    %v2956 = vpop.permute.xlu0 %2955
    %2957 = vrot.lane.b32.xlu0 %v2170, 2
    %v2958 = vpop.permute.xlu0 %2957
    %2959 = vrot.lane.b32.xlu0 %v2261, 2
    %v2960 = vpop.permute.xlu0 %2959
    %2961 = vrot.lane.b32.xlu0 %v2289, 2
    %v2962 = vpop.permute.xlu0 %2961
    %2963 = vrot.lane.b32.xlu0 %v2179, 2
    %v2964 = vpop.permute.xlu0 %2963
    %2965 = vrot.lane.b32.xlu0 %v2182, 2
    %v2966 = vpop.permute.xlu0 %2965
    %2967 = vrot.lane.b32.xlu0 %v2185, 2
    %v2968 = vpop.permute.xlu0 %2967
    %2969 = vrot.lane.b32.xlu0 %v2188, 2
    %v2970 = vpop.permute.xlu0 %2969
    %2971 = vrot.lane.b32.xlu0 %v2191, 2
    %v2972 = vpop.permute.xlu0 %2971
    %2973 = vrot.lane.b32.xlu0 %v2194, 2
    %v2974 = vpop.permute.xlu0 %2973
    %2975 = vrot.lane.b32.xlu0 %v2264, 2
    %v2976 = vpop.permute.xlu0 %2975
    %2977 = vrot.lane.b32.xlu0 %v2292, 2
    %v2978 = vpop.permute.xlu0 %2977
    %2995 = vrot.lane.b32.xlu0 %v2203, 12
    %v2996 = vpop.permute.xlu0 %2995
    %2997 = vrot.lane.b32.xlu0 %v2206, 12
    %v2998 = vpop.permute.xlu0 %2997
    %2999 = vrot.lane.b32.xlu0 %v2209, 12
    %v3000 = vpop.permute.xlu0 %2999
    %3001 = vrot.lane.b32.xlu0 %v2212, 12
    %v3002 = vpop.permute.xlu0 %3001
    %3003 = vrot.lane.b32.xlu0 %v2215, 12
    %v3004 = vpop.permute.xlu0 %3003
    %3005 = vrot.lane.b32.xlu0 %v2218, 12
    %v3006 = vpop.permute.xlu0 %3005
    %3007 = vrot.lane.b32.xlu0 %v2267, 12
    %v3008 = vpop.permute.xlu0 %3007
    %3009 = vrot.lane.b32.xlu0 %v2295, 12
    %v3010 = vpop.permute.xlu0 %3009
    %3011 = vrot.lane.b32.xlu0 %v2227, 12
    %v3012 = vpop.permute.xlu0 %3011
    %3013 = vrot.lane.b32.xlu0 %v2230, 12
    %v3014 = vpop.permute.xlu0 %3013
    %3015 = vrot.lane.b32.xlu0 %v2233, 12
    %v3016 = vpop.permute.xlu0 %3015
    %3017 = vrot.lane.b32.xlu0 %v2236, 12
    %v3018 = vpop.permute.xlu0 %3017
    %3019 = vrot.lane.b32.xlu0 %v2239, 12
    %v3020 = vpop.permute.xlu0 %3019
    %3021 = vrot.lane.b32.xlu0 %v2242, 12
    %v3022 = vpop.permute.xlu0 %3021
    %3023 = vrot.lane.b32.xlu0 %v2270, 12
    %v3024 = vpop.permute.xlu0 %3023
    %3025 = vrot.lane.b32.xlu0 %v2298, 12
    %v3026 = vpop.permute.xlu0 %3025
    %3043 = vrot.lane.b32.xlu0 %v1975, 22
    %v3044 = vpop.permute.xlu0 %3043
    %3045 = vrot.lane.b32.xlu0 %v1977, 22
    %v3046 = vpop.permute.xlu0 %3045
    %3047 = vrot.lane.b32.xlu0 %v1979, 22
    %v3048 = vpop.permute.xlu0 %3047
    %3049 = vrot.lane.b32.xlu0 %v1981, 22
    %v3050 = vpop.permute.xlu0 %3049
    %3051 = vrot.lane.b32.xlu0 %v1983, 22
    %v3052 = vpop.permute.xlu0 %3051
    %3053 = vrot.lane.b32.xlu0 %v1985, 22
    %v3054 = vpop.permute.xlu0 %3053
    %3055 = vrot.lane.b32.xlu0 %v1987, 22
    %v3056 = vpop.permute.xlu0 %3055
    %3057 = vrot.lane.b32.xlu0 %v1989, 22
    %v3058 = vpop.permute.xlu0 %3057
    %3059 = vrot.lane.b32.xlu0 %v1999, 22
    %v3060 = vpop.permute.xlu0 %3059
    %3061 = vrot.lane.b32.xlu0 %v2001, 22
    %v3062 = vpop.permute.xlu0 %3061
    %3063 = vrot.lane.b32.xlu0 %v2003, 22
    %v3064 = vpop.permute.xlu0 %3063
    %3065 = vrot.lane.b32.xlu0 %v2005, 22
    %v3066 = vpop.permute.xlu0 %3065
    %3067 = vrot.lane.b32.xlu0 %v2007, 22
    %v3068 = vpop.permute.xlu0 %3067
    %3069 = vrot.lane.b32.xlu0 %v2009, 22
    %v3070 = vpop.permute.xlu0 %3069
    %3071 = vrot.lane.b32.xlu0 %v2011, 22
    %v3072 = vpop.permute.xlu0 %3071
    %3073 = vrot.lane.b32.xlu0 %v2013, 22
    %v3074 = vpop.permute.xlu0 %3073
    %vm3091 = vcmask 80896
    %v3092 = vsel %vm3091, %v1969, %v2372
    %v3093 = vsel %vm3091, %v1971, %v2374
    %v3094 = vsel %vm3091, %v1973, %v2376
    %v3095 = vsel %vm3091, %v1975, %v2378
    %v3096 = vsel %vm3091, %v1977, %v2380
    %v3097 = vsel %vm3091, %v1979, %v2382
    %v3098 = vsel %vm3091, %v1981, %v2384
    %v3099 = vsel %vm3091, %v1983, %v2386
    %v3100 = vsel %vm3091, %v1993, %v2388
    %v3101 = vsel %vm3091, %v1995, %v2390
    %v3102 = vsel %vm3091, %v1997, %v2392
    %v3103 = vsel %vm3091, %v1999, %v2394
    %v3104 = vsel %vm3091, %v2001, %v2396
    %v3105 = vsel %vm3091, %v2003, %v2398
    %v3106 = vsel %vm3091, %v2005, %v2400
    %v3107 = vsel %vm3091, %v2007, %v2402
    %vm3108 = vcmask 162816
    %v3109 = vsel %vm3108, %v3092, %v2420
    %v3110 = vsel %vm3108, %v3093, %v2422
    %v3111 = vsel %vm3108, %v3094, %v2424
    %v3112 = vsel %vm3108, %v3095, %v2426
    %v3113 = vsel %vm3108, %v3096, %v2428
    %v3114 = vsel %vm3108, %v3097, %v2430
    %v3115 = vsel %vm3108, %v3098, %v2432
    %v3116 = vsel %vm3108, %v3099, %v2434
    %v3117 = vsel %vm3108, %v3100, %v2436
    %v3118 = vsel %vm3108, %v3101, %v2438
    %v3119 = vsel %vm3108, %v3102, %v2440
    %v3120 = vsel %vm3108, %v3103, %v2442
    %v3121 = vsel %vm3108, %v3104, %v2444
    %v3122 = vsel %vm3108, %v3105, %v2446
    %v3123 = vsel %vm3108, %v3106, %v2448
    %v3124 = vsel %vm3108, %v3107, %v2450
    %vm3125 = vcmask 244736
    %v3126 = vsel %vm3125, %v3109, %v2468
    %v3127 = vsel %vm3125, %v3110, %v2470
    %v3128 = vsel %vm3125, %v3111, %v2472
    %v3129 = vsel %vm3125, %v3112, %v2474
    %v3130 = vsel %vm3125, %v3113, %v2476
    %v3131 = vsel %vm3125, %v3114, %v2478
    %v3132 = vsel %vm3125, %v3115, %v2480
    %v3133 = vsel %vm3125, %v3116, %v2482
    %v3134 = vsel %vm3125, %v3117, %v2484
    %v3135 = vsel %vm3125, %v3118, %v2486
    %v3136 = vsel %vm3125, %v3119, %v2488
    %v3137 = vsel %vm3125, %v3120, %v2490
    %v3138 = vsel %vm3125, %v3121, %v2492
    %v3139 = vsel %vm3125, %v3122, %v2494
    %v3140 = vsel %vm3125, %v3123, %v2496
    %v3141 = vsel %vm3125, %v3124, %v2498
    %vm3142 = vcmask 326656
    %v3143 = vsel %vm3142, %v3126, %v2516
    %v3144 = vsel %vm3142, %v3127, %v2518
    %v3145 = vsel %vm3142, %v3128, %v2520
    %v3146 = vsel %vm3142, %v3129, %v2522
    %v3147 = vsel %vm3142, %v3130, %v2524
    %v3148 = vsel %vm3142, %v3131, %v2526
    %v3149 = vsel %vm3142, %v3132, %v2528
    %v3150 = vsel %vm3142, %v3133, %v2530
    %v3151 = vsel %vm3142, %v3134, %v2532
    %v3152 = vsel %vm3142, %v3135, %v2534
    %v3153 = vsel %vm3142, %v3136, %v2536
    %v3154 = vsel %vm3142, %v3137, %v2538
    %v3155 = vsel %vm3142, %v3138, %v2540
    %v3156 = vsel %vm3142, %v3139, %v2542
    %v3157 = vsel %vm3142, %v3140, %v2544
    %v3158 = vsel %vm3142, %v3141, %v2546
    %vm3159 = vcmask 408576
    %v3160 = vsel %vm3159, %v3143, %v2564
    %v3161 = vsel %vm3159, %v3144, %v2566
    %v3162 = vsel %vm3159, %v3145, %v2568
    %v3163 = vsel %vm3159, %v3146, %v2570
    %v3164 = vsel %vm3159, %v3147, %v2572
    %v3165 = vsel %vm3159, %v3148, %v2574
    %v3166 = vsel %vm3159, %v3149, %v2576
    %v3167 = vsel %vm3159, %v3150, %v2578
    %v3168 = vsel %vm3159, %v3151, %v2580
    %v3169 = vsel %vm3159, %v3152, %v2582
    %v3170 = vsel %vm3159, %v3153, %v2584
    %v3171 = vsel %vm3159, %v3154, %v2586
    %v3172 = vsel %vm3159, %v3155, %v2588
    %v3173 = vsel %vm3159, %v3156, %v2590
    %v3174 = vsel %vm3159, %v3157, %v2592
    %v3175 = vsel %vm3159, %v3158, %v2594
    %vm3176 = vcmask 490496
    %v3177 = vsel %vm3176, %v3160, %v2612
    %v3178 = vsel %vm3176, %v3161, %v2614
    %v3179 = vsel %vm3176, %v3162, %v2616
    %v3180 = vsel %vm3176, %v3163, %v2618
    %v3181 = vsel %vm3176, %v3164, %v2620
    %v3182 = vsel %vm3176, %v3165, %v2622
    %v3183 = vsel %vm3176, %v3166, %v2624
    %v3184 = vsel %vm3176, %v3167, %v2626
    %v3185 = vsel %vm3176, %v3168, %v2628
    %v3186 = vsel %vm3176, %v3169, %v2630
    %v3187 = vsel %vm3176, %v3170, %v2632
    %v3188 = vsel %vm3176, %v3171, %v2634
    %v3189 = vsel %vm3176, %v3172, %v2636
    %v3190 = vsel %vm3176, %v3173, %v2638
    %v3191 = vsel %vm3176, %v3174, %v2640
    %v3192 = vsel %vm3176, %v3175, %v2642
    %vm3193 = vcmask 572416
    %v3194 = vsel %vm3193, %v3177, %v2660
    %v3195 = vsel %vm3193, %v3178, %v2662
    %v3196 = vsel %vm3193, %v3179, %v2664
    %v3197 = vsel %vm3193, %v3180, %v2666
    %v3198 = vsel %vm3193, %v3181, %v2668
    %v3199 = vsel %vm3193, %v3182, %v2670
    %v3200 = vsel %vm3193, %v3183, %v2672
    %v3201 = vsel %vm3193, %v3184, %v2674
    %v3202 = vsel %vm3193, %v3185, %v2676
    %v3203 = vsel %vm3193, %v3186, %v2678
    %v3204 = vsel %vm3193, %v3187, %v2680
    %v3205 = vsel %vm3193, %v3188, %v2682
    %v3206 = vsel %vm3193, %v3189, %v2684
    %v3207 = vsel %vm3193, %v3190, %v2686
    %v3208 = vsel %vm3193, %v3191, %v2688
    %v3209 = vsel %vm3193, %v3192, %v2690
    %vm3210 = vcmask 654336
    %v3211 = vsel %vm3210, %v3194, %v2708
    %v3212 = vsel %vm3210, %v3195, %v2710
    %v3213 = vsel %vm3210, %v3196, %v2712
    %v3214 = vsel %vm3210, %v3197, %v2714
    %v3215 = vsel %vm3210, %v3198, %v2716
    %v3216 = vsel %vm3210, %v3199, %v2718
    %v3217 = vsel %vm3210, %v3200, %v2720
    %v3218 = vsel %vm3210, %v3201, %v2722
    %v3219 = vsel %vm3210, %v3202, %v2724
    %v3220 = vsel %vm3210, %v3203, %v2726
    %v3221 = vsel %vm3210, %v3204, %v2728
    %v3222 = vsel %vm3210, %v3205, %v2730
    %v3223 = vsel %vm3210, %v3206, %v2732
    %v3224 = vsel %vm3210, %v3207, %v2734
    %v3225 = vsel %vm3210, %v3208, %v2736
    %v3226 = vsel %vm3210, %v3209, %v2738
    %vm3227 = vcmask 736256
    %v3228 = vsel %vm3227, %v3211, %v2756
    %v3229 = vsel %vm3227, %v3212, %v2758
    %v3230 = vsel %vm3227, %v3213, %v2760
    %v3231 = vsel %vm3227, %v3214, %v2762
    %v3232 = vsel %vm3227, %v3215, %v2764
    %v3233 = vsel %vm3227, %v3216, %v2766
    %v3234 = vsel %vm3227, %v3217, %v2768
    %v3235 = vsel %vm3227, %v3218, %v2770
    %v3236 = vsel %vm3227, %v3219, %v2772
    %v3237 = vsel %vm3227, %v3220, %v2774
    %v3238 = vsel %vm3227, %v3221, %v2776
    %v3239 = vsel %vm3227, %v3222, %v2778
    %v3240 = vsel %vm3227, %v3223, %v2780
    %v3241 = vsel %vm3227, %v3224, %v2782
    %v3242 = vsel %vm3227, %v3225, %v2784
    %v3243 = vsel %vm3227, %v3226, %v2786
    %vm3244 = vcmask 818176
    %v3245 = vsel %vm3244, %v3228, %v2804
    %v3246 = vsel %vm3244, %v3229, %v2806
    %v3247 = vsel %vm3244, %v3230, %v2808
    %v3248 = vsel %vm3244, %v3231, %v2810
    %v3249 = vsel %vm3244, %v3232, %v2812
    %v3250 = vsel %vm3244, %v3233, %v2814
    %v3251 = vsel %vm3244, %v3234, %v2816
    %v3252 = vsel %vm3244, %v3235, %v2818
    %v3253 = vsel %vm3244, %v3236, %v2820
    %v3254 = vsel %vm3244, %v3237, %v2822
    %v3255 = vsel %vm3244, %v3238, %v2824
    %v3256 = vsel %vm3244, %v3239, %v2826
    %v3257 = vsel %vm3244, %v3240, %v2828
    %v3258 = vsel %vm3244, %v3241, %v2830
    %v3259 = vsel %vm3244, %v3242, %v2832
    %v3260 = vsel %vm3244, %v3243, %v2834
    %vm3261 = vcmask 900096
    %v3262 = vsel %vm3261, %v3245, %v2852
    %v3263 = vsel %vm3261, %v3246, %v2854
    %v3264 = vsel %vm3261, %v3247, %v2856
    %v3265 = vsel %vm3261, %v3248, %v2858
    %v3266 = vsel %vm3261, %v3249, %v2860
    %v3267 = vsel %vm3261, %v3250, %v2862
    %v3268 = vsel %vm3261, %v3251, %v2864
    %v3269 = vsel %vm3261, %v3252, %v2866
    %v3270 = vsel %vm3261, %v3253, %v2868
    %v3271 = vsel %vm3261, %v3254, %v2870
    %v3272 = vsel %vm3261, %v3255, %v2872
    %v3273 = vsel %vm3261, %v3256, %v2874
    %v3274 = vsel %vm3261, %v3257, %v2876
    %v3275 = vsel %vm3261, %v3258, %v2878
    %v3276 = vsel %vm3261, %v3259, %v2880
    %v3277 = vsel %vm3261, %v3260, %v2882
    %vm3278 = vcmask 982016
    %v3279 = vsel %vm3278, %v3262, %v2900
    %v3280 = vsel %vm3278, %v3263, %v2902
    %v3281 = vsel %vm3278, %v3264, %v2904
    %v3282 = vsel %vm3278, %v3265, %v2906
    %v3283 = vsel %vm3278, %v3266, %v2908
    %v3284 = vsel %vm3278, %v3267, %v2910
    %v3285 = vsel %vm3278, %v3268, %v2912
    %v3286 = vsel %vm3278, %v3269, %v2914
    %v3287 = vsel %vm3278, %v3270, %v2916
    %v3288 = vsel %vm3278, %v3271, %v2918
    %v3289 = vsel %vm3278, %v3272, %v2920
    %v3290 = vsel %vm3278, %v3273, %v2922
    %v3291 = vsel %vm3278, %v3274, %v2924
    %v3292 = vsel %vm3278, %v3275, %v2926
    %v3293 = vsel %vm3278, %v3276, %v2928
    %v3294 = vsel %vm3278, %v3277, %v2930
    %vm3295 = vcmask 15360
    %v3296 = vsel %vm3295, %v2900, %v2948
    %v3297 = vsel %vm3295, %v2902, %v2950
    %v3298 = vsel %vm3295, %v2904, %v2952
    %v3299 = vsel %vm3295, %v2906, %v2954
    %v3300 = vsel %vm3295, %v2908, %v2956
    %v3301 = vsel %vm3295, %v2910, %v2958
    %v3302 = vsel %vm3295, %v2912, %v2960
    %v3303 = vsel %vm3295, %v2914, %v2962
    %v3304 = vsel %vm3295, %v2916, %v2964
    %v3305 = vsel %vm3295, %v2918, %v2966
    %v3306 = vsel %vm3295, %v2920, %v2968
    %v3307 = vsel %vm3295, %v2922, %v2970
    %v3308 = vsel %vm3295, %v2924, %v2972
    %v3309 = vsel %vm3295, %v2926, %v2974
    %v3310 = vsel %vm3295, %v2928, %v2976
    %v3311 = vsel %vm3295, %v2930, %v2978
    %vm3312 = vcmask 97280
    %v3313 = vsel %vm3312, %v3296, %v2996
    %v3314 = vsel %vm3312, %v3297, %v2998
    %v3315 = vsel %vm3312, %v3298, %v3000
    %v3316 = vsel %vm3312, %v3299, %v3002
    %v3317 = vsel %vm3312, %v3300, %v3004
    %v3318 = vsel %vm3312, %v3301, %v3006
    %v3319 = vsel %vm3312, %v3302, %v3008
    %v3320 = vsel %vm3312, %v3303, %v3010
    %v3321 = vsel %vm3312, %v3304, %v3012
    %v3322 = vsel %vm3312, %v3305, %v3014
    %v3323 = vsel %vm3312, %v3306, %v3016
    %v3324 = vsel %vm3312, %v3307, %v3018
    %v3325 = vsel %vm3312, %v3308, %v3020
    %v3326 = vsel %vm3312, %v3309, %v3022
    %v3327 = vsel %vm3312, %v3310, %v3024
    %v3328 = vsel %vm3312, %v3311, %v3026
    %vm3329 = vcmask 179200
    %v3330 = vsel %vm3329, %v3313, %v3044
    %v3331 = vsel %vm3329, %v3314, %v3046
    %v3332 = vsel %vm3329, %v3315, %v3048
    %v3333 = vsel %vm3329, %v3316, %v3050
    %v3334 = vsel %vm3329, %v3317, %v3052
    %v3335 = vsel %vm3329, %v3318, %v3054
    %v3336 = vsel %vm3329, %v3319, %v3056
    %v3337 = vsel %vm3329, %v3320, %v3058
    %v3338 = vsel %vm3329, %v3321, %v3060
    %v3339 = vsel %vm3329, %v3322, %v3062
    %v3340 = vsel %vm3329, %v3323, %v3064
    %v3341 = vsel %vm3329, %v3324, %v3066
    %v3342 = vsel %vm3329, %v3325, %v3068
    %v3343 = vsel %vm3329, %v3326, %v3070
    %v3344 = vsel %vm3329, %v3327, %v3072
    %v3345 = vsel %vm3329, %v3328, %v3074
    %3346 = vrot.lane.b32.xlu0 %v2110, 10
    %v3347 = vpop.permute.xlu0 %3346
    %3348 = vrot.lane.b32.xlu0 %v2113, 10
    %v3349 = vpop.permute.xlu0 %3348
    %3350 = vrot.lane.b32.xlu0 %v2116, 10
    %v3351 = vpop.permute.xlu0 %3350
    %3352 = vrot.lane.b32.xlu0 %v2119, 10
    %v3353 = vpop.permute.xlu0 %3352
    %3354 = vrot.lane.b32.xlu0 %v2122, 10
    %v3355 = vpop.permute.xlu0 %3354
    %3356 = vrot.lane.b32.xlu0 %v2255, 10
    %v3357 = vpop.permute.xlu0 %3356
    %3358 = vrot.lane.b32.xlu0 %v2283, 10
    %v3359 = vpop.permute.xlu0 %3358
    %3360 = vrot.lane.b32.xlu0 %v2327, 10
    %v3361 = vpop.permute.xlu0 %3360
    %3362 = vrot.lane.b32.xlu0 %v2134, 10
    %v3363 = vpop.permute.xlu0 %3362
    %3364 = vrot.lane.b32.xlu0 %v2137, 10
    %v3365 = vpop.permute.xlu0 %3364
    %3366 = vrot.lane.b32.xlu0 %v2140, 10
    %v3367 = vpop.permute.xlu0 %3366
    %3368 = vrot.lane.b32.xlu0 %v2143, 10
    %v3369 = vpop.permute.xlu0 %3368
    %3370 = vrot.lane.b32.xlu0 %v2146, 10
    %v3371 = vpop.permute.xlu0 %3370
    %3372 = vrot.lane.b32.xlu0 %v2258, 10
    %v3373 = vpop.permute.xlu0 %3372
    %3374 = vrot.lane.b32.xlu0 %v2286, 10
    %v3375 = vpop.permute.xlu0 %3374
    %3376 = vrot.lane.b32.xlu0 %v2330, 10
    %v3377 = vpop.permute.xlu0 %3376
    %3394 = vrot.lane.b32.xlu0 %v2158, 20
    %v3395 = vpop.permute.xlu0 %3394
    %3396 = vrot.lane.b32.xlu0 %v2161, 20
    %v3397 = vpop.permute.xlu0 %3396
    %3398 = vrot.lane.b32.xlu0 %v2164, 20
    %v3399 = vpop.permute.xlu0 %3398
    %3400 = vrot.lane.b32.xlu0 %v2167, 20
    %v3401 = vpop.permute.xlu0 %3400
    %3402 = vrot.lane.b32.xlu0 %v2170, 20
    %v3403 = vpop.permute.xlu0 %3402
    %3404 = vrot.lane.b32.xlu0 %v2261, 20
    %v3405 = vpop.permute.xlu0 %3404
    %3406 = vrot.lane.b32.xlu0 %v2289, 20
    %v3407 = vpop.permute.xlu0 %3406
    %3408 = vrot.lane.b32.xlu0 %v2333, 20
    %v3409 = vpop.permute.xlu0 %3408
    %3410 = vrot.lane.b32.xlu0 %v2182, 20
    %v3411 = vpop.permute.xlu0 %3410
    %3412 = vrot.lane.b32.xlu0 %v2185, 20
    %v3413 = vpop.permute.xlu0 %3412
    %3414 = vrot.lane.b32.xlu0 %v2188, 20
    %v3415 = vpop.permute.xlu0 %3414
    %3416 = vrot.lane.b32.xlu0 %v2191, 20
    %v3417 = vpop.permute.xlu0 %3416
    %3418 = vrot.lane.b32.xlu0 %v2194, 20
    %v3419 = vpop.permute.xlu0 %3418
    %3420 = vrot.lane.b32.xlu0 %v2264, 20
    %v3421 = vpop.permute.xlu0 %3420
    %3422 = vrot.lane.b32.xlu0 %v2292, 20
    %v3423 = vpop.permute.xlu0 %3422
    %3424 = vrot.lane.b32.xlu0 %v2336, 20
    %v3425 = vpop.permute.xlu0 %3424
    %3442 = vrot.lane.b32.xlu0 %v2206, 30
    %v3443 = vpop.permute.xlu0 %3442
    %3444 = vrot.lane.b32.xlu0 %v2209, 30
    %v3445 = vpop.permute.xlu0 %3444
    %3446 = vrot.lane.b32.xlu0 %v2212, 30
    %v3447 = vpop.permute.xlu0 %3446
    %3448 = vrot.lane.b32.xlu0 %v2215, 30
    %v3449 = vpop.permute.xlu0 %3448
    %3450 = vrot.lane.b32.xlu0 %v2218, 30
    %v3451 = vpop.permute.xlu0 %3450
    %3452 = vrot.lane.b32.xlu0 %v2267, 30
    %v3453 = vpop.permute.xlu0 %3452
    %3454 = vrot.lane.b32.xlu0 %v2295, 30
    %v3455 = vpop.permute.xlu0 %3454
    %3456 = vrot.lane.b32.xlu0 %v2339, 30
    %v3457 = vpop.permute.xlu0 %3456
    %3458 = vrot.lane.b32.xlu0 %v2230, 30
    %v3459 = vpop.permute.xlu0 %3458
    %3460 = vrot.lane.b32.xlu0 %v2233, 30
    %v3461 = vpop.permute.xlu0 %3460
    %3462 = vrot.lane.b32.xlu0 %v2236, 30
    %v3463 = vpop.permute.xlu0 %3462
    %3464 = vrot.lane.b32.xlu0 %v2239, 30
    %v3465 = vpop.permute.xlu0 %3464
    %3466 = vrot.lane.b32.xlu0 %v2242, 30
    %v3467 = vpop.permute.xlu0 %3466
    %3468 = vrot.lane.b32.xlu0 %v2270, 30
    %v3469 = vpop.permute.xlu0 %3468
    %3470 = vrot.lane.b32.xlu0 %v2298, 30
    %v3471 = vpop.permute.xlu0 %3470
    %3472 = vrot.lane.b32.xlu0 %v2342, 30
    %v3473 = vpop.permute.xlu0 %3472
    %3490 = vrot.lane.b32.xlu0 %v1977, 40
    %v3491 = vpop.permute.xlu0 %3490
    %3492 = vrot.lane.b32.xlu0 %v1979, 40
    %v3493 = vpop.permute.xlu0 %3492
    %3494 = vrot.lane.b32.xlu0 %v1981, 40
    %v3495 = vpop.permute.xlu0 %3494
    %3496 = vrot.lane.b32.xlu0 %v1983, 40
    %v3497 = vpop.permute.xlu0 %3496
    %3498 = vrot.lane.b32.xlu0 %v1985, 40
    %v3499 = vpop.permute.xlu0 %3498
    %3500 = vrot.lane.b32.xlu0 %v1987, 40
    %v3501 = vpop.permute.xlu0 %3500
    %3502 = vrot.lane.b32.xlu0 %v1989, 40
    %v3503 = vpop.permute.xlu0 %3502
    %3504 = vrot.lane.b32.xlu0 %v1991, 40
    %v3505 = vpop.permute.xlu0 %3504
    %3506 = vrot.lane.b32.xlu0 %v2001, 40
    %v3507 = vpop.permute.xlu0 %3506
    %3508 = vrot.lane.b32.xlu0 %v2003, 40
    %v3509 = vpop.permute.xlu0 %3508
    %3510 = vrot.lane.b32.xlu0 %v2005, 40
    %v3511 = vpop.permute.xlu0 %3510
    %3512 = vrot.lane.b32.xlu0 %v2007, 40
    %v3513 = vpop.permute.xlu0 %3512
    %3514 = vrot.lane.b32.xlu0 %v2009, 40
    %v3515 = vpop.permute.xlu0 %3514
    %3516 = vrot.lane.b32.xlu0 %v2011, 40
    %v3517 = vpop.permute.xlu0 %3516
    %3518 = vrot.lane.b32.xlu0 %v2013, 40
    %v3519 = vpop.permute.xlu0 %3518
    %3520 = vrot.lane.b32.xlu0 %v2015, 40
    %v3521 = vpop.permute.xlu0 %3520
    %3538 = vrot.lane.b32.xlu0 %v2064, 50
    %v3539 = vpop.permute.xlu0 %3538
    %3540 = vrot.lane.b32.xlu0 %v2067, 50
    %v3541 = vpop.permute.xlu0 %3540
    %3542 = vrot.lane.b32.xlu0 %v2070, 50
    %v3543 = vpop.permute.xlu0 %3542
    %3544 = vrot.lane.b32.xlu0 %v2073, 50
    %v3545 = vpop.permute.xlu0 %3544
    %3546 = vrot.lane.b32.xlu0 %v2249, 50
    %v3547 = vpop.permute.xlu0 %3546
    %3548 = vrot.lane.b32.xlu0 %v2277, 50
    %v3549 = vpop.permute.xlu0 %3548
    %3550 = vrot.lane.b32.xlu0 %v2305, 50
    %v3551 = vpop.permute.xlu0 %3550
    %3552 = vrot.lane.b32.xlu0 %v2349, 50
    %v3553 = vpop.permute.xlu0 %3552
    %3554 = vrot.lane.b32.xlu0 %v2088, 50
    %v3555 = vpop.permute.xlu0 %3554
    %3556 = vrot.lane.b32.xlu0 %v2091, 50
    %v3557 = vpop.permute.xlu0 %3556
    %3558 = vrot.lane.b32.xlu0 %v2094, 50
    %v3559 = vpop.permute.xlu0 %3558
    %3560 = vrot.lane.b32.xlu0 %v2097, 50
    %v3561 = vpop.permute.xlu0 %3560
    %3562 = vrot.lane.b32.xlu0 %v2252, 50
    %v3563 = vpop.permute.xlu0 %3562
    %3564 = vrot.lane.b32.xlu0 %v2280, 50
    %v3565 = vpop.permute.xlu0 %3564
    %3566 = vrot.lane.b32.xlu0 %v2308, 50
    %v3567 = vpop.permute.xlu0 %3566
    %3568 = vrot.lane.b32.xlu0 %v2352, 50
    %v3569 = vpop.permute.xlu0 %3568
    %3586 = vrot.lane.b32.xlu0 %v2113, 60
    %v3587 = vpop.permute.xlu0 %3586
    %3588 = vrot.lane.b32.xlu0 %v2116, 60
    %v3589 = vpop.permute.xlu0 %3588
    %3590 = vrot.lane.b32.xlu0 %v2119, 60
    %v3591 = vpop.permute.xlu0 %3590
    %3592 = vrot.lane.b32.xlu0 %v2122, 60
    %v3593 = vpop.permute.xlu0 %3592
    %3594 = vrot.lane.b32.xlu0 %v2255, 60
    %v3595 = vpop.permute.xlu0 %3594
    %3596 = vrot.lane.b32.xlu0 %v2283, 60
    %v3597 = vpop.permute.xlu0 %3596
    %3598 = vrot.lane.b32.xlu0 %v2327, 60
    %v3599 = vpop.permute.xlu0 %3598
    %3600 = vrot.lane.b32.xlu0 %v2355, 60
    %v3601 = vpop.permute.xlu0 %3600
    %3602 = vrot.lane.b32.xlu0 %v2137, 60
    %v3603 = vpop.permute.xlu0 %3602
    %3604 = vrot.lane.b32.xlu0 %v2140, 60
    %v3605 = vpop.permute.xlu0 %3604
    %3606 = vrot.lane.b32.xlu0 %v2143, 60
    %v3607 = vpop.permute.xlu0 %3606
    %3608 = vrot.lane.b32.xlu0 %v2146, 60
    %v3609 = vpop.permute.xlu0 %3608
    %3610 = vrot.lane.b32.xlu0 %v2258, 60
    %v3611 = vpop.permute.xlu0 %3610
    %3612 = vrot.lane.b32.xlu0 %v2286, 60
    %v3613 = vpop.permute.xlu0 %3612
    %3614 = vrot.lane.b32.xlu0 %v2330, 60
    %v3615 = vpop.permute.xlu0 %3614
    %3616 = vrot.lane.b32.xlu0 %v2358, 60
    %v3617 = vpop.permute.xlu0 %3616
    %3634 = vrot.lane.b32.xlu0 %v2161, 70
    %v3635 = vpop.permute.xlu0 %3634
    %3636 = vrot.lane.b32.xlu0 %v2164, 70
    %v3637 = vpop.permute.xlu0 %3636
    %3638 = vrot.lane.b32.xlu0 %v2167, 70
    %v3639 = vpop.permute.xlu0 %3638
    %3640 = vrot.lane.b32.xlu0 %v2170, 70
    %v3641 = vpop.permute.xlu0 %3640
    %3642 = vrot.lane.b32.xlu0 %v2261, 70
    %v3643 = vpop.permute.xlu0 %3642
    %3644 = vrot.lane.b32.xlu0 %v2289, 70
    %v3645 = vpop.permute.xlu0 %3644
    %3646 = vrot.lane.b32.xlu0 %v2333, 70
    %v3647 = vpop.permute.xlu0 %3646
    %3648 = vrot.lane.b32.xlu0 %v2361, 70
    %v3649 = vpop.permute.xlu0 %3648
    %3650 = vrot.lane.b32.xlu0 %v2185, 70
    %v3651 = vpop.permute.xlu0 %3650
    %3652 = vrot.lane.b32.xlu0 %v2188, 70
    %v3653 = vpop.permute.xlu0 %3652
    %3654 = vrot.lane.b32.xlu0 %v2191, 70
    %v3655 = vpop.permute.xlu0 %3654
    %3656 = vrot.lane.b32.xlu0 %v2194, 70
    %v3657 = vpop.permute.xlu0 %3656
    %3658 = vrot.lane.b32.xlu0 %v2264, 70
    %v3659 = vpop.permute.xlu0 %3658
    %3660 = vrot.lane.b32.xlu0 %v2292, 70
    %v3661 = vpop.permute.xlu0 %3660
    %3662 = vrot.lane.b32.xlu0 %v2336, 70
    %v3663 = vpop.permute.xlu0 %3662
    %3664 = vrot.lane.b32.xlu0 %v2364, 70
    %v3665 = vpop.permute.xlu0 %3664
    %3682 = vrot.lane.b32.xlu0 %v2209, 80
    %v3683 = vpop.permute.xlu0 %3682
    %3684 = vrot.lane.b32.xlu0 %v2212, 80
    %v3685 = vpop.permute.xlu0 %3684
    %3686 = vrot.lane.b32.xlu0 %v2215, 80
    %v3687 = vpop.permute.xlu0 %3686
    %3688 = vrot.lane.b32.xlu0 %v2218, 80
    %v3689 = vpop.permute.xlu0 %3688
    %3690 = vrot.lane.b32.xlu0 %v2267, 80
    %v3691 = vpop.permute.xlu0 %3690
    %3692 = vrot.lane.b32.xlu0 %v2295, 80
    %v3693 = vpop.permute.xlu0 %3692
    %3694 = vrot.lane.b32.xlu0 %v2339, 80
    %v3695 = vpop.permute.xlu0 %3694
    %3696 = vrot.lane.b32.xlu0 %v2367, 80
    %v3697 = vpop.permute.xlu0 %3696
    %3698 = vrot.lane.b32.xlu0 %v2233, 80
    %v3699 = vpop.permute.xlu0 %3698
    %3700 = vrot.lane.b32.xlu0 %v2236, 80
    %v3701 = vpop.permute.xlu0 %3700
    %3702 = vrot.lane.b32.xlu0 %v2239, 80
    %v3703 = vpop.permute.xlu0 %3702
    %3704 = vrot.lane.b32.xlu0 %v2242, 80
    %v3705 = vpop.permute.xlu0 %3704
    %3706 = vrot.lane.b32.xlu0 %v2270, 80
    %v3707 = vpop.permute.xlu0 %3706
    %3708 = vrot.lane.b32.xlu0 %v2298, 80
    %v3709 = vpop.permute.xlu0 %3708
    %3710 = vrot.lane.b32.xlu0 %v2342, 80
    %v3711 = vpop.permute.xlu0 %3710
    %3712 = vrot.lane.b32.xlu0 %v2370, 80
    %v3713 = vpop.permute.xlu0 %3712
    %v3730 = vsel %vm3091, %v2061, %v3347
    %v3731 = vsel %vm3091, %v2064, %v3349
    %v3732 = vsel %vm3091, %v2067, %v3351
    %v3733 = vsel %vm3091, %v2070, %v3353
    %v3734 = vsel %vm3091, %v2073, %v3355
    %v3735 = vsel %vm3091, %v2249, %v3357
    %v3736 = vsel %vm3091, %v2277, %v3359
    %v3737 = vsel %vm3091, %v2305, %v3361
    %v3738 = vsel %vm3091, %v2085, %v3363
    %v3739 = vsel %vm3091, %v2088, %v3365
    %v3740 = vsel %vm3091, %v2091, %v3367
    %v3741 = vsel %vm3091, %v2094, %v3369
    %v3742 = vsel %vm3091, %v2097, %v3371
    %v3743 = vsel %vm3091, %v2252, %v3373
    %v3744 = vsel %vm3091, %v2280, %v3375
    %v3745 = vsel %vm3091, %v2308, %v3377
    %v3746 = vsel %vm3108, %v3730, %v3395
    %v3747 = vsel %vm3108, %v3731, %v3397
    %v3748 = vsel %vm3108, %v3732, %v3399
    %v3749 = vsel %vm3108, %v3733, %v3401
    %v3750 = vsel %vm3108, %v3734, %v3403
    %v3751 = vsel %vm3108, %v3735, %v3405
    %v3752 = vsel %vm3108, %v3736, %v3407
    %v3753 = vsel %vm3108, %v3737, %v3409
    %v3754 = vsel %vm3108, %v3738, %v3411
    %v3755 = vsel %vm3108, %v3739, %v3413
    %v3756 = vsel %vm3108, %v3740, %v3415
    %v3757 = vsel %vm3108, %v3741, %v3417
    %v3758 = vsel %vm3108, %v3742, %v3419
    %v3759 = vsel %vm3108, %v3743, %v3421
    %v3760 = vsel %vm3108, %v3744, %v3423
    %v3761 = vsel %vm3108, %v3745, %v3425
    %v3762 = vsel %vm3125, %v3746, %v3443
    %v3763 = vsel %vm3125, %v3747, %v3445
    %v3764 = vsel %vm3125, %v3748, %v3447
    %v3765 = vsel %vm3125, %v3749, %v3449
    %v3766 = vsel %vm3125, %v3750, %v3451
    %v3767 = vsel %vm3125, %v3751, %v3453
    %v3768 = vsel %vm3125, %v3752, %v3455
    %v3769 = vsel %vm3125, %v3753, %v3457
    %v3770 = vsel %vm3125, %v3754, %v3459
    %v3771 = vsel %vm3125, %v3755, %v3461
    %v3772 = vsel %vm3125, %v3756, %v3463
    %v3773 = vsel %vm3125, %v3757, %v3465
    %v3774 = vsel %vm3125, %v3758, %v3467
    %v3775 = vsel %vm3125, %v3759, %v3469
    %v3776 = vsel %vm3125, %v3760, %v3471
    %v3777 = vsel %vm3125, %v3761, %v3473
    %v3778 = vsel %vm3142, %v3762, %v3491
    %v3779 = vsel %vm3142, %v3763, %v3493
    %v3780 = vsel %vm3142, %v3764, %v3495
    %v3781 = vsel %vm3142, %v3765, %v3497
    %v3782 = vsel %vm3142, %v3766, %v3499
    %v3783 = vsel %vm3142, %v3767, %v3501
    %v3784 = vsel %vm3142, %v3768, %v3503
    %v3785 = vsel %vm3142, %v3769, %v3505
    %v3786 = vsel %vm3142, %v3770, %v3507
    %v3787 = vsel %vm3142, %v3771, %v3509
    %v3788 = vsel %vm3142, %v3772, %v3511
    %v3789 = vsel %vm3142, %v3773, %v3513
    %v3790 = vsel %vm3142, %v3774, %v3515
    %v3791 = vsel %vm3142, %v3775, %v3517
    %v3792 = vsel %vm3142, %v3776, %v3519
    %v3793 = vsel %vm3142, %v3777, %v3521
    %v3794 = vsel %vm3159, %v3778, %v3539
    %v3795 = vsel %vm3159, %v3779, %v3541
    %v3796 = vsel %vm3159, %v3780, %v3543
    %v3797 = vsel %vm3159, %v3781, %v3545
    %v3798 = vsel %vm3159, %v3782, %v3547
    %v3799 = vsel %vm3159, %v3783, %v3549
    %v3800 = vsel %vm3159, %v3784, %v3551
    %v3801 = vsel %vm3159, %v3785, %v3553
    %v3802 = vsel %vm3159, %v3786, %v3555
    %v3803 = vsel %vm3159, %v3787, %v3557
    %v3804 = vsel %vm3159, %v3788, %v3559
    %v3805 = vsel %vm3159, %v3789, %v3561
    %v3806 = vsel %vm3159, %v3790, %v3563
    %v3807 = vsel %vm3159, %v3791, %v3565
    %v3808 = vsel %vm3159, %v3792, %v3567
    %v3809 = vsel %vm3159, %v3793, %v3569
    %v3810 = vsel %vm3176, %v3794, %v3587
    %v3811 = vsel %vm3176, %v3795, %v3589
    %v3812 = vsel %vm3176, %v3796, %v3591
    %v3813 = vsel %vm3176, %v3797, %v3593
    %v3814 = vsel %vm3176, %v3798, %v3595
    %v3815 = vsel %vm3176, %v3799, %v3597
    %v3816 = vsel %vm3176, %v3800, %v3599
    %v3817 = vsel %vm3176, %v3801, %v3601
    %v3818 = vsel %vm3176, %v3802, %v3603
    %v3819 = vsel %vm3176, %v3803, %v3605
    %v3820 = vsel %vm3176, %v3804, %v3607
    %v3821 = vsel %vm3176, %v3805, %v3609
    %v3822 = vsel %vm3176, %v3806, %v3611
    %v3823 = vsel %vm3176, %v3807, %v3613
    %v3824 = vsel %vm3176, %v3808, %v3615
    %v3825 = vsel %vm3176, %v3809, %v3617
    %v3826 = vsel %vm3193, %v3810, %v3635
    %v3827 = vsel %vm3193, %v3811, %v3637
    %v3828 = vsel %vm3193, %v3812, %v3639
    %v3829 = vsel %vm3193, %v3813, %v3641
    %v3830 = vsel %vm3193, %v3814, %v3643
    %v3831 = vsel %vm3193, %v3815, %v3645
    %v3832 = vsel %vm3193, %v3816, %v3647
    %v3833 = vsel %vm3193, %v3817, %v3649
    %v3834 = vsel %vm3193, %v3818, %v3651
    %v3835 = vsel %vm3193, %v3819, %v3653
    %v3836 = vsel %vm3193, %v3820, %v3655
    %v3837 = vsel %vm3193, %v3821, %v3657
    %v3838 = vsel %vm3193, %v3822, %v3659
    %v3839 = vsel %vm3193, %v3823, %v3661
    %v3840 = vsel %vm3193, %v3824, %v3663
    %v3841 = vsel %vm3193, %v3825, %v3665
    %v3842 = vsel %vm3210, %v3826, %v3683
    %v3843 = vsel %vm3210, %v3827, %v3685
    %v3844 = vsel %vm3210, %v3828, %v3687
    %v3845 = vsel %vm3210, %v3829, %v3689
    %v3846 = vsel %vm3210, %v3830, %v3691
    %v3847 = vsel %vm3210, %v3831, %v3693
    %v3848 = vsel %vm3210, %v3832, %v3695
    %v3849 = vsel %vm3210, %v3833, %v3697
    %v3850 = vsel %vm3210, %v3834, %v3699
    %v3851 = vsel %vm3210, %v3835, %v3701
    %v3852 = vsel %vm3210, %v3836, %v3703
    %v3853 = vsel %vm3210, %v3837, %v3705
    %v3854 = vsel %vm3210, %v3838, %v3707
    %v3855 = vsel %vm3210, %v3839, %v3709
    %v3856 = vsel %vm3210, %v3840, %v3711
    %v3857 = vsel %vm3210, %v3841, %v3713
    %3874 = vrot.lane.b32.xlu0 %v3842, 32
    %v3875 = vpop.permute.xlu0 %3874
    %3876 = vrot.lane.b32.xlu0 %v3843, 32
    %v3877 = vpop.permute.xlu0 %3876
    %3878 = vrot.lane.b32.xlu0 %v3844, 32
    %v3879 = vpop.permute.xlu0 %3878
    %3880 = vrot.lane.b32.xlu0 %v3845, 32
    %v3881 = vpop.permute.xlu0 %3880
    %3882 = vrot.lane.b32.xlu0 %v3846, 32
    %v3883 = vpop.permute.xlu0 %3882
    %3884 = vrot.lane.b32.xlu0 %v3847, 32
    %v3885 = vpop.permute.xlu0 %3884
    %3886 = vrot.lane.b32.xlu0 %v3848, 32
    %v3887 = vpop.permute.xlu0 %3886
    %3888 = vrot.lane.b32.xlu0 %v3849, 32
    %v3889 = vpop.permute.xlu0 %3888
    %3890 = vrot.lane.b32.xlu0 %v3850, 32
    %v3891 = vpop.permute.xlu0 %3890
    %3892 = vrot.lane.b32.xlu0 %v3851, 32
    %v3893 = vpop.permute.xlu0 %3892
    %3894 = vrot.lane.b32.xlu0 %v3852, 32
    %v3895 = vpop.permute.xlu0 %3894
    %3896 = vrot.lane.b32.xlu0 %v3853, 32
    %v3897 = vpop.permute.xlu0 %3896
    %3898 = vrot.lane.b32.xlu0 %v3854, 32
    %v3899 = vpop.permute.xlu0 %3898
    %3900 = vrot.lane.b32.xlu0 %v3855, 32
    %v3901 = vpop.permute.xlu0 %3900
    %3902 = vrot.lane.b32.xlu0 %v3856, 32
    %v3903 = vpop.permute.xlu0 %3902
    %3904 = vrot.lane.b32.xlu0 %v3857, 32
    %v3905 = vpop.permute.xlu0 %3904
    %vm3922 = vcmask 261120
    %v3923 = vsel %vm3922, %v3330, %v3875
    %v3924 = vsel %vm3922, %v3331, %v3877
    %v3925 = vsel %vm3922, %v3332, %v3879
    %v3926 = vsel %vm3922, %v3333, %v3881
    %v3927 = vsel %vm3922, %v3334, %v3883
    %v3928 = vsel %vm3922, %v3335, %v3885
    %v3929 = vsel %vm3922, %v3336, %v3887
    %v3930 = vsel %vm3922, %v3337, %v3889
    %v3931 = vsel %vm3922, %v3338, %v3891
    %v3932 = vsel %vm3922, %v3339, %v3893
    %v3933 = vsel %vm3922, %v3340, %v3895
    %v3934 = vsel %vm3922, %v3341, %v3897
    %v3935 = vsel %vm3922, %v3342, %v3899
    %v3936 = vsel %vm3922, %v3343, %v3901
    %v3937 = vsel %vm3922, %v3344, %v3903
    %v3938 = vsel %vm3922, %v3345, %v3905
    %v3939 = vld [vmem:[%s3] sm:$0xff]
    %v3940 = vld [vmem:[%s3 + $0x8] sm:$0xff]
    %v3941 = vld [vmem:[%s3 + $0x10] sm:$0xff]
    %v3942 = vld [vmem:[%s3 + $0x18] sm:$0xff]
    %v3943 = vld [vmem:[%s3 + $0x20] sm:$0xff]
    %v3944 = vld [vmem:[%s3 + $0x28] sm:$0xff]
    %v3945 = vld [vmem:[%s3 + $0x30] sm:$0xff]
    %v3946 = vld [vmem:[%s3 + $0x38] sm:$0xff]
    %v3947 = vld [vmem:[%s3 + $0x40] sm:$0xff]
    %v3948 = vld [vmem:[%s3 + $0x48] sm:$0xff]
    %v3949 = vld [vmem:[%s3 + $0x50] sm:$0xff]
    %v3950 = vld [vmem:[%s3 + $0x58] sm:$0xff]
    %v3951 = vld [vmem:[%s3 + $0x60] sm:$0xff]
    %v3952 = vld [vmem:[%s3 + $0x68] sm:$0xff]
    %v3953 = vld [vmem:[%s3 + $0x70] sm:$0xff]
    %v3954 = vld [vmem:[%s3 + $0x78] sm:$0xff]
    %v3955 = vld [vmem:[%s3 + $0x80] sm:$0xff]
    %v3956 = vld [vmem:[%s3 + $0x88] sm:$0xff]
    %v3957 = vld [vmem:[%s3 + $0x90] sm:$0xff]
    %v3958 = vld [vmem:[%s3 + $0x98] sm:$0xff]
    %v3959 = vld [vmem:[%s3 + $0xa0] sm:$0xff]
    %v3960 = vld [vmem:[%s3 + $0xa8] sm:$0xff]
    %v3961 = vld [vmem:[%s3 + $0xb0] sm:$0xff]
    %v3962 = vld [vmem:[%s3 + $0xb8] sm:$0xff]
    %v3963 = vld [vmem:[%s3 + $0xc0] sm:$0xff]
    %v3964 = vld [vmem:[%s3 + $0xc8] sm:$0xff]
    %v3965 = vld [vmem:[%s3 + $0xd0] sm:$0xff]
    %v3966 = vld [vmem:[%s3 + $0xd8] sm:$0xff]
    %v3967 = vld [vmem:[%s3 + $0xe0] sm:$0xff]
    %v3968 = vld [vmem:[%s3 + $0xe8] sm:$0xff]
    %v3969 = vld [vmem:[%s3 + $0xf0] sm:$0xff]
    %v3970 = vld [vmem:[%s3 + $0xf8] sm:$0x3]
    %v3971 = vld [vmem:[%s4] sm:$0x1]
    %v3973 = vlaneseq
    %v3974 = vshrl.u32 %v3973, 7
    %v3975 = vsub.s32 0, %v3974
    %v3976 = vrot.slane %v3971, %v3975
    %vm3978 = vcmask 998400
    %v3980 = vsel %vm3978, %v3923, 0
    %v3983 = vsel %vm3978, %v3924, 0
    %v3986 = vsel %vm3978, %v3925, 0
    %v3989 = vsel %vm3978, %v3926, 0
    %v3992 = vsel %vm3978, %v3927, 0
    %v3995 = vsel %vm3978, %v3928, 0
    %v3998 = vsel %vm3978, %v3929, 0
    %v4001 = vsel %vm3978, %v3930, 0
    %v4004 = vsel %vm3978, %v3931, 0
    %v4007 = vsel %vm3978, %v3932, 0
    %v4010 = vsel %vm3978, %v3933, 0
    %v4013 = vsel %vm3978, %v3934, 0
    %v4016 = vsel %vm3978, %v3935, 0
    %v4019 = vsel %vm3978, %v3936, 0
    %v4022 = vsel %vm3978, %v3937, 0
    %v4025 = vsel %vm3978, %v3938, 0
    %vm4027 = vcmask 1041408
    %v4029 = vsel %vm4027, %v3970, 0
    %4031 = vmatprep.subr.mxu0 0.0
    %4032 = vmatpush1.msra.mxu0 %v3954
    %4033 = vmatprep.subr.mxu0 0.0
    %4034 = vmatpush1.msra.mxu0 %v3953
    %4035 = vmatprep.subr.mxu0 0.0
    %4036 = vmatpush1.msra.mxu0 %v3952
    %4037 = vmatprep.subr.mxu0 0.0
    %4038 = vmatpush1.msra.mxu0 %v3951
    %4039 = vmatprep.subr.mxu0 0.0
    %4040 = vmatpush1.msra.mxu0 %v3950
    %4041 = vmatprep.subr.mxu0 0.0
    %4042 = vmatpush1.msra.mxu0 %v3949
    %4043 = vmatprep.subr.mxu0 0.0
    %4044 = vmatpush1.msra.mxu0 %v3948
    %4045 = vmatprep.subr.mxu0 0.0
    %4046 = vmatpush1.msra.mxu0 %v3947
    %4047 = vmatprep.subr.mxu0 0.0
    %4048 = vmatpush1.msra.mxu0 %v3946
    %4049 = vmatprep.subr.mxu0 0.0
    %4050 = vmatpush1.msra.mxu0 %v3945
    %4051 = vmatprep.subr.mxu0 0.0
    %4052 = vmatpush1.msra.mxu0 %v3944
    %4053 = vmatprep.subr.mxu0 0.0
    %4054 = vmatpush1.msra.mxu0 %v3943
    %4055 = vmatprep.subr.mxu0 0.0
    %4056 = vmatpush1.msra.mxu0 %v3942
    %4057 = vmatprep.subr.mxu0 0.0
    %4058 = vmatpush1.msra.mxu0 %v3941
    %4059 = vmatprep.subr.mxu0 0.0
    %4060 = vmatpush1.msra.mxu0 %v3940
    %4061 = vmatprep.subr.mxu0 0.0
    %4062 = vmatpush1.msra.mxu0 %v3939
    %4063 = vmatprep.subr.mxu0 0.0
    %4064 = vmatpush2.msra.mxu0 %v4029
    %4065 = vmatprep.subr.mxu0 0.0
    %4066 = vmatpush2.msra.mxu0 %v3969
    %4067 = vmatprep.subr.mxu0 0.0
    %4068 = vmatpush2.msra.mxu0 %v3968
    %4069 = vmatprep.subr.mxu0 0.0
    %4070 = vmatpush2.msra.mxu0 %v3967
    %4071 = vmatprep.subr.mxu0 0.0
    %4072 = vmatpush2.msra.mxu0 %v3966
    %4073 = vmatprep.subr.mxu0 0.0
    %4074 = vmatpush2.msra.mxu0 %v3965
    %4075 = vmatprep.subr.mxu0 0.0
    %4076 = vmatpush2.msra.mxu0 %v3964
    %4077 = vmatprep.subr.mxu0 0.0
    %4078 = vmatpush2.msra.mxu0 %v3963
    %4079 = vmatprep.subr.mxu0 0.0
    %4080 = vmatpush2.msra.mxu0 %v3962
    %4081 = vmatprep.subr.mxu0 0.0
    %4082 = vmatpush2.msra.mxu0 %v3961
    %4083 = vmatprep.subr.mxu0 0.0
    %4084 = vmatpush2.msra.mxu0 %v3960
    %4085 = vmatprep.subr.mxu0 0.0
    %4086 = vmatpush2.msra.mxu0 %v3959
    %4087 = vmatprep.subr.mxu0 0.0
    %4088 = vmatpush2.msra.mxu0 %v3958
    %4089 = vmatprep.subr.mxu0 0.0
    %4090 = vmatpush2.msra.mxu0 %v3957
    %4091 = vmatprep.subr.mxu0 0.0
    %4092 = vmatpush2.msra.mxu0 %v3956
    %4093 = vmatprep.subr.mxu0 0.0
    %4094 = vmatpush2.msra.mxu0 %v3955
    %4095 = vmatprep.mubr.f32.mxu0 %v3980
    %4096 = vmatmul.mubr.f32.gmra.mxu0 %v3279
    %v4097 = vpop.f32.mrf.mxu0
    %v4098 = vadd.f32 %v3976, %v4097
    %v4099 = vpop.f32.mrf.mxu0
    %4100 = vmatprep.mubr.f32.mxu0 %v3983
    %4101 = vmatmul.mubr.f32.gmra.mxu0 %v3280
    %v4102 = vpop.f32.mrf.mxu0
    %v4103 = vadd.f32 %v3976, %v4102
    %v4104 = vpop.f32.mrf.mxu0
    %4105 = vmatprep.mubr.f32.mxu0 %v3986
    %4106 = vmatmul.mubr.f32.gmra.mxu0 %v3281
    %v4107 = vpop.f32.mrf.mxu0
    %v4108 = vadd.f32 %v3976, %v4107
    %v4109 = vpop.f32.mrf.mxu0
    %4110 = vmatprep.mubr.f32.mxu0 %v3989
    %4111 = vmatmul.mubr.f32.gmra.mxu0 %v3282
    %v4112 = vpop.f32.mrf.mxu0
    %v4113 = vadd.f32 %v3976, %v4112
    %v4114 = vpop.f32.mrf.mxu0
    %4115 = vmatprep.mubr.f32.mxu0 %v3992
    %4116 = vmatmul.mubr.f32.gmra.mxu0 %v3283
    %v4117 = vpop.f32.mrf.mxu0
    %v4118 = vadd.f32 %v3976, %v4117
    %v4119 = vpop.f32.mrf.mxu0
    %4120 = vmatprep.mubr.f32.mxu0 %v3995
    %4121 = vmatmul.mubr.f32.gmra.mxu0 %v3284
    %v4122 = vpop.f32.mrf.mxu0
    %v4123 = vadd.f32 %v3976, %v4122
    %v4124 = vpop.f32.mrf.mxu0
    %4125 = vmatprep.mubr.f32.mxu0 %v3998
    %4126 = vmatmul.mubr.f32.gmra.mxu0 %v3285
    %v4127 = vpop.f32.mrf.mxu0
    %v4128 = vadd.f32 %v3976, %v4127
    %v4129 = vpop.f32.mrf.mxu0
    %4130 = vmatprep.mubr.f32.mxu0 %v4001
    %4131 = vmatmul.mubr.f32.gmra.mxu0 %v3286
    %v4132 = vpop.f32.mrf.mxu0
    %v4133 = vadd.f32 %v3976, %v4132
    %v4134 = vpop.f32.mrf.mxu0
    %4135 = vmatprep.mubr.f32.mxu0 %v4004
    %4136 = vmatmul.mubr.f32.gmra.mxu0 %v3287
    %v4137 = vpop.f32.mrf.mxu0
    %v4138 = vadd.f32 %v3976, %v4137
    %v4139 = vpop.f32.mrf.mxu0
    %4140 = vmatprep.mubr.f32.mxu0 %v4007
    %4141 = vmatmul.mubr.f32.gmra.mxu0 %v3288
    %v4142 = vpop.f32.mrf.mxu0
    %v4143 = vadd.f32 %v3976, %v4142
    %v4144 = vpop.f32.mrf.mxu0
    %4145 = vmatprep.mubr.f32.mxu0 %v4010
    %4146 = vmatmul.mubr.f32.gmra.mxu0 %v3289
    %v4147 = vpop.f32.mrf.mxu0
    %v4148 = vadd.f32 %v3976, %v4147
    %v4149 = vpop.f32.mrf.mxu0
    %4150 = vmatprep.mubr.f32.mxu0 %v4013
    %4151 = vmatmul.mubr.f32.gmra.mxu0 %v3290
    %v4152 = vpop.f32.mrf.mxu0
    %v4153 = vadd.f32 %v3976, %v4152
    %v4154 = vpop.f32.mrf.mxu0
    %4155 = vmatprep.mubr.f32.mxu0 %v4016
    %4156 = vmatmul.mubr.f32.gmra.mxu0 %v3291
    %v4157 = vpop.f32.mrf.mxu0
    %v4158 = vadd.f32 %v3976, %v4157
    %v4159 = vpop.f32.mrf.mxu0
    %4160 = vmatprep.mubr.f32.mxu0 %v4019
    %4161 = vmatmul.mubr.f32.gmra.mxu0 %v3292
    %v4162 = vpop.f32.mrf.mxu0
    %v4163 = vadd.f32 %v3976, %v4162
    %v4164 = vpop.f32.mrf.mxu0
    %4165 = vmatprep.mubr.f32.mxu0 %v4022
    %4166 = vmatmul.mubr.f32.gmra.mxu0 %v3293
    %v4167 = vpop.f32.mrf.mxu0
    %v4168 = vadd.f32 %v3976, %v4167
    %v4169 = vpop.f32.mrf.mxu0
    %4170 = vmatprep.mubr.f32.mxu0 %v4025
    %4171 = vmatmul.mubr.f32.gmra.mxu0 %v3294
    %v4172 = vpop.f32.mrf.mxu0
    %v4173 = vadd.f32 %v3976, %v4172
    %v4174 = vpop.f32.mrf.mxu0
    %4175 = vdwg.mxu0
    %v4176 = vmax.f32 %v4098, %v4103
    %v4177 = vmax.f32 %v4108, %v4113
    %v4178 = vmax.f32 %v4118, %v4123
    %v4179 = vmax.f32 %v4128, %v4133
    %v4180 = vmax.f32 %v4138, %v4143
    %v4181 = vmax.f32 %v4148, %v4153
    %v4182 = vmax.f32 %v4158, %v4163
    %v4183 = vmax.f32 %v4168, %v4173
    %v4186 = vrot.slane %v4176, 1
    %v4187 = vrot.slane %v4180, 1
    %v4190 = vmax.f32 %v4176, %v4186
    %v4191 = vmax.f32 %v4180, %v4187
    %v4194 = vrot.slane %v4177, 1
    %v4195 = vrot.slane %v4181, 1
    %v4198 = vmax.f32 %v4177, %v4194
    %v4199 = vmax.f32 %v4181, %v4195
    %v4202 = vrot.slane %v4178, 1
    %v4203 = vrot.slane %v4182, 1
    %v4206 = vmax.f32 %v4178, %v4202
    %v4207 = vmax.f32 %v4182, %v4203
    %v4210 = vrot.slane %v4179, 1
    %v4211 = vrot.slane %v4183, 1
    %v4214 = vmax.f32 %v4179, %v4210
    %v4215 = vmax.f32 %v4183, %v4211
    %v4218 = vrot.slane %v4191, 7
    %vm4219 = vcmask 1041409
    %v4220 = vsel %vm4219, %v4218, %v4190
    %v4222 = vrot.slane %v4190, 2
    %v4223 = vrot.slane %v4191, 1
    %v4224 = vsel %vm4219, %v4223, %v4222
    %4225 = vrot.lane.b32.xlu0 %v4224, 20
    %v4226 = vpop.permute.xlu0 %4225
    %v4228 = vrot.slane %v4190, 4
    %v4229 = vrot.slane %v4191, 3
    %v4230 = vsel %vm4219, %v4229, %v4228
    %4231 = vrot.lane.b32.xlu0 %v4230, 40
    %v4232 = vpop.permute.xlu0 %4231
    %v4234 = vrot.slane %v4190, 6
    %v4235 = vrot.slane %v4191, 5
    %v4236 = vsel %vm4219, %v4235, %v4234
    %4237 = vrot.lane.b32.xlu0 %v4236, 60
    %v4238 = vpop.permute.xlu0 %4237
    %v4242 = vrot.slane %v4199, 7
    %v4243 = vsel %vm4219, %v4242, %v4198
    %4244 = vrot.lane.b32.xlu0 %v4243, 80
    %v4245 = vpop.permute.xlu0 %4244
    %v4247 = vrot.slane %v4198, 2
    %v4248 = vrot.slane %v4199, 1
    %v4249 = vsel %vm4219, %v4248, %v4247
    %4250 = vrot.lane.b32.xlu0 %v4249, 100
    %v4251 = vpop.permute.xlu0 %4250
    %v4253 = vrot.slane %v4198, 4
    %v4254 = vrot.slane %v4199, 3
    %v4255 = vsel %vm4219, %v4254, %v4253
    %4256 = vrot.lane.b32.xlu0 %v4255, 120
    %v4257 = vpop.permute.xlu0 %4256
    %v4259 = vrot.slane %v4198, 6
    %v4260 = vrot.slane %v4199, 5
    %v4261 = vsel %vm4219, %v4260, %v4259
    %4262 = vrot.lane.b32.xlu0 %v4261, 12
    %v4263 = vpop.permute.xlu0 %4262
    %v4267 = vrot.slane %v4207, 7
    %v4268 = vsel %vm4219, %v4267, %v4206
    %4269 = vrot.lane.b32.xlu0 %v4268, 32
    %v4270 = vpop.permute.xlu0 %4269
    %v4272 = vrot.slane %v4206, 2
    %v4273 = vrot.slane %v4207, 1
    %v4274 = vsel %vm4219, %v4273, %v4272
    %4275 = vrot.lane.b32.xlu0 %v4274, 52
    %v4276 = vpop.permute.xlu0 %4275
    %v4278 = vrot.slane %v4206, 4
    %v4279 = vrot.slane %v4207, 3
    %v4280 = vsel %vm4219, %v4279, %v4278
    %4281 = vrot.lane.b32.xlu0 %v4280, 72
    %v4282 = vpop.permute.xlu0 %4281
    %v4284 = vrot.slane %v4206, 6
    %v4285 = vrot.slane %v4207, 5
    %v4286 = vsel %vm4219, %v4285, %v4284
    %4287 = vrot.lane.b32.xlu0 %v4286, 92
    %v4288 = vpop.permute.xlu0 %4287
    %v4292 = vrot.slane %v4215, 7
    %v4293 = vsel %vm4219, %v4292, %v4214
    %4294 = vrot.lane.b32.xlu0 %v4293, 112
    %v4295 = vpop.permute.xlu0 %4294
    %v4297 = vrot.slane %v4214, 2
    %v4298 = vrot.slane %v4215, 1
    %v4299 = vsel %vm4219, %v4298, %v4297
    %4300 = vrot.lane.b32.xlu0 %v4299, 4
    %v4301 = vpop.permute.xlu0 %4300
    %v4303 = vrot.slane %v4214, 4
    %v4304 = vrot.slane %v4215, 3
    %v4305 = vsel %vm4219, %v4304, %v4303
    %4306 = vrot.lane.b32.xlu0 %v4305, 24
    %v4307 = vpop.permute.xlu0 %4306
    %v4309 = vrot.slane %v4214, 6
    %v4310 = vrot.slane %v4215, 5
    %v4311 = vsel %vm4219, %v4310, %v4309
    %4312 = vrot.lane.b32.xlu0 %v4311, 44
    %v4313 = vpop.permute.xlu0 %4312
    %v4315 = vsel %vm3108, %v4220, %v4226
    %v4316 = vsel %vm3142, %v4315, %v4232
    %v4317 = vsel %vm3176, %v4316, %v4238
    %v4318 = vsel %vm3210, %v4317, %v4245
    %v4319 = vsel %vm3244, %v4318, %v4251
    %v4320 = vsel %vm3278, %v4319, %v4257
    %v4321 = vsel %vm3312, %v4257, %v4263
    %v4322 = vsel %vm3922, %v4321, %v4270
    %vm4323 = vcmask 424960
    %v4324 = vsel %vm4323, %v4322, %v4276
    %vm4325 = vcmask 588800
    %v4326 = vsel %vm4325, %v4324, %v4282
    %vm4327 = vcmask 752640
    %v4328 = vsel %vm4327, %v4326, %v4288
    %vm4329 = vcmask 916480
    %v4330 = vsel %vm4329, %v4328, %v4295
    %vm4331 = vcmask 31744
    %v4332 = vsel %vm4331, %v4295, %v4301
    %vm4333 = vcmask 195584
    %v4334 = vsel %vm4333, %v4332, %v4307
    %vm4335 = vcmask 359424
    %v4336 = vsel %vm4335, %v4334, %v4313
    %v4337 = vmax.f32 %v4320, 0.0
    %v4338 = vmax.f32 %v4330, 0.0
    %v4339 = vmax.f32 %v4336, 0.0
    %v4340 = vld [vmem:[%s5] sm:$0xff]
    %v4341 = vld [vmem:[%s5 + $0x8] sm:$0xff]
    %v4342 = vld [vmem:[%s5 + $0x10] sm:$0xff]
    %v4343 = vld [vmem:[%s5 + $0x18] sm:$0xff]
    %v4344 = vld [vmem:[%s5 + $0x20] sm:$0xff]
    %v4345 = vld [vmem:[%s5 + $0x28] sm:$0xff]
    %v4346 = vld [vmem:[%s5 + $0x30] sm:$0xff]
    %v4347 = vld [vmem:[%s5 + $0x38] sm:$0xff]
    %v4348 = vld [vmem:[%s5 + $0x40] sm:$0xff]
    %v4349 = vld [vmem:[%s5 + $0x48] sm:$0xff]
    %v4350 = vld [vmem:[%s5 + $0x50] sm:$0xff]
    %v4351 = vld [vmem:[%s5 + $0x58] sm:$0xff]
    %v4352 = vld [vmem:[%s5 + $0x60] sm:$0xff]
    %v4353 = vld [vmem:[%s5 + $0x68] sm:$0xff]
    %v4354 = vld [vmem:[%s5 + $0x70] sm:$0xff]
    %v4355 = vld [vmem:[%s5 + $0x78] sm:$0xff]
    %v4356 = vld [vmem:[%s5 + $0x80] sm:$0xff]
    %v4357 = vld [vmem:[%s5 + $0x88] sm:$0xff]
    %v4358 = vld [vmem:[%s5 + $0x90] sm:$0xff]
    %v4359 = vld [vmem:[%s5 + $0x98] sm:$0xff]
    %v4360 = vld [vmem:[%s5 + $0xa0] sm:$0xff]
    %v4361 = vld [vmem:[%s5 + $0xa8] sm:$0xff]
    %v4362 = vld [vmem:[%s5 + $0xb0] sm:$0xff]
    %v4363 = vld [vmem:[%s5 + $0xb8] sm:$0xff]
    %v4364 = vld [vmem:[%s5 + $0xc0] sm:$0xff]
    %v4365 = vld [vmem:[%s5 + $0xc8] sm:$0xff]
    %v4366 = vld [vmem:[%s5 + $0xd0] sm:$0xff]
    %v4367 = vld [vmem:[%s5 + $0xd8] sm:$0xff]
    %v4368 = vld [vmem:[%s5 + $0xe0] sm:$0xff]
    %v4369 = vld [vmem:[%s5 + $0xe8] sm:$0xff]
    %v4370 = vld [vmem:[%s5 + $0xf0] sm:$0xff]
    %v4371 = vld [vmem:[%s5 + $0xf8] sm:$0xff]
    %v4372 = vld [vmem:[%s5 + $0x100] sm:$0xff]
    %v4373 = vld [vmem:[%s5 + $0x108] sm:$0xff]
    %v4374 = vld [vmem:[%s5 + $0x110] sm:$0xff]
    %v4375 = vld [vmem:[%s5 + $0x118] sm:$0xff]
    %v4376 = vld [vmem:[%s5 + $0x120] sm:$0xff]
    %v4377 = vld [vmem:[%s5 + $0x128] sm:$0xff]
    %v4378 = vld [vmem:[%s5 + $0x130] sm:$0xff]
    %v4379 = vld [vmem:[%s5 + $0x138] sm:$0xff]
    %v4380 = vld [vmem:[%s6] sm:$0x1]
    %v4382 = vlaneseq
    %v4383 = vshrl.u32 %v4382, 7
    %v4384 = vsub.s32 0, %v4383
    %v4385 = vrot.slane %v4380, %v4384
    %vm4387 = vcmask 523264
    %v4389 = vsel %vm4387, %v4339, 0
    %4391 = vmatprep.subr.mxu0 0.0
    %4392 = vmatpush1.msra.mxu0 %v4355
    %4393 = vmatprep.subr.mxu0 0.0
    %4394 = vmatpush1.msra.mxu0 %v4354
    %4395 = vmatprep.subr.mxu0 0.0
    %4396 = vmatpush1.msra.mxu0 %v4353
    %4397 = vmatprep.subr.mxu0 0.0
    %4398 = vmatpush1.msra.mxu0 %v4352
    %4399 = vmatprep.subr.mxu0 0.0
    %4400 = vmatpush1.msra.mxu0 %v4351
    %4401 = vmatprep.subr.mxu0 0.0
    %4402 = vmatpush1.msra.mxu0 %v4350
    %4403 = vmatprep.subr.mxu0 0.0
    %4404 = vmatpush1.msra.mxu0 %v4349
    %4405 = vmatprep.subr.mxu0 0.0
    %4406 = vmatpush1.msra.mxu0 %v4348
    %4407 = vmatprep.subr.mxu0 0.0
    %4408 = vmatpush1.msra.mxu0 %v4347
    %4409 = vmatprep.subr.mxu0 0.0
    %4410 = vmatpush1.msra.mxu0 %v4346
    %4411 = vmatprep.subr.mxu0 0.0
    %4412 = vmatpush1.msra.mxu0 %v4345
    %4413 = vmatprep.subr.mxu0 0.0
    %4414 = vmatpush1.msra.mxu0 %v4344
    %4415 = vmatprep.subr.mxu0 0.0
    %4416 = vmatpush1.msra.mxu0 %v4343
    %4417 = vmatprep.subr.mxu0 0.0
    %4418 = vmatpush1.msra.mxu0 %v4342
    %4419 = vmatprep.subr.mxu0 0.0
    %4420 = vmatpush1.msra.mxu0 %v4341
    %4421 = vmatprep.subr.mxu0 0.0
    %4422 = vmatpush1.msra.mxu0 %v4340
    %4423 = vmatprep.subr.mxu0 0.0
    %4424 = vmatpush2.msra.mxu0 %v4371
    %4425 = vmatprep.subr.mxu0 0.0
    %4426 = vmatpush2.msra.mxu0 %v4370
    %4427 = vmatprep.subr.mxu0 0.0
    %4428 = vmatpush2.msra.mxu0 %v4369
    %4429 = vmatprep.subr.mxu0 0.0
    %4430 = vmatpush2.msra.mxu0 %v4368
    %4431 = vmatprep.subr.mxu0 0.0
    %4432 = vmatpush2.msra.mxu0 %v4367
    %4433 = vmatprep.subr.mxu0 0.0
    %4434 = vmatpush2.msra.mxu0 %v4366
    %4435 = vmatprep.subr.mxu0 0.0
    %4436 = vmatpush2.msra.mxu0 %v4365
    %4437 = vmatprep.subr.mxu0 0.0
    %4438 = vmatpush2.msra.mxu0 %v4364
    %4439 = vmatprep.subr.mxu0 0.0
    %4440 = vmatpush2.msra.mxu0 %v4363
    %4441 = vmatprep.subr.mxu0 0.0
    %4442 = vmatpush2.msra.mxu0 %v4362
    %4443 = vmatprep.subr.mxu0 0.0
    %4444 = vmatpush2.msra.mxu0 %v4361
    %4445 = vmatprep.subr.mxu0 0.0
    %4446 = vmatpush2.msra.mxu0 %v4360
    %4447 = vmatprep.subr.mxu0 0.0
    %4448 = vmatpush2.msra.mxu0 %v4359
    %4449 = vmatprep.subr.mxu0 0.0
    %4450 = vmatpush2.msra.mxu0 %v4358
    %4451 = vmatprep.subr.mxu0 0.0
    %4452 = vmatpush2.msra.mxu0 %v4357
    %4453 = vmatprep.subr.mxu0 0.0
    %4454 = vmatpush2.msra.mxu0 %v4356
    %4455 = vmatprep.mubr.f32.mxu0 %v4338
    %4456 = vmatmul.mubr.f32.gmra.mxu0 %v4337
    %v4457 = vpop.f32.mrf.mxu0
    %v4458 = vadd.f32 %v4385, %v4457
    %v4459 = vpop.f32.mrf.mxu0
    %4460 = vdwg.mxu0
    %4461 = vmatprep.subr.mxu0 0.0
    %4462 = vmatpush1.msra.mxu0 0.0
    %4463 = vmatprep.subr.mxu0 0.0
    %4464 = vmatpush1.msra.mxu0 0.0
    %4465 = vmatprep.subr.mxu0 0.0
    %4466 = vmatpush1.msra.mxu0 0.0
    %4467 = vmatprep.subr.mxu0 0.0
    %4468 = vmatpush1.msra.mxu0 0.0
    %4469 = vmatprep.subr.mxu0 0.0
    %4470 = vmatpush1.msra.mxu0 0.0
    %4471 = vmatprep.subr.mxu0 0.0
    %4472 = vmatpush1.msra.mxu0 0.0
    %4473 = vmatprep.subr.mxu0 0.0
    %4474 = vmatpush1.msra.mxu0 0.0
    %4475 = vmatprep.subr.mxu0 0.0
    %4476 = vmatpush1.msra.mxu0 0.0
    %4477 = vmatprep.subr.mxu0 0.0
    %4478 = vmatpush1.msra.mxu0 %v4379
    %4479 = vmatprep.subr.mxu0 0.0
    %4480 = vmatpush1.msra.mxu0 %v4378
    %4481 = vmatprep.subr.mxu0 0.0
    %4482 = vmatpush1.msra.mxu0 %v4377
    %4483 = vmatprep.subr.mxu0 0.0
    %4484 = vmatpush1.msra.mxu0 %v4376
    %4485 = vmatprep.subr.mxu0 0.0
    %4486 = vmatpush1.msra.mxu0 %v4375
    %4487 = vmatprep.subr.mxu0 0.0
    %4488 = vmatpush1.msra.mxu0 %v4374
    %4489 = vmatprep.subr.mxu0 0.0
    %4490 = vmatpush1.msra.mxu0 %v4373
    %4491 = vmatprep.subr.mxu0 0.0
    %4492 = vmatpush1.msra.mxu0 %v4372
    %4493 = vmatprep.subr.mxu0 0.0
    %4494 = vmatpush2.msra.mxu0 0.0
    %4495 = vmatprep.subr.mxu0 0.0
    %4496 = vmatpush2.msra.mxu0 0.0
    %4497 = vmatprep.subr.mxu0 0.0
    %4498 = vmatpush2.msra.mxu0 0.0
    %4499 = vmatprep.subr.mxu0 0.0
    %4500 = vmatpush2.msra.mxu0 0.0
    %4501 = vmatprep.subr.mxu0 0.0
    %4502 = vmatpush2.msra.mxu0 0.0
    %4503 = vmatprep.subr.mxu0 0.0
    %4504 = vmatpush2.msra.mxu0 0.0
    %4505 = vmatprep.subr.mxu0 0.0
    %4506 = vmatpush2.msra.mxu0 0.0
    %4507 = vmatprep.subr.mxu0 0.0
    %4508 = vmatpush2.msra.mxu0 0.0
    %4509 = vmatprep.subr.mxu0 0.0
    %4510 = vmatpush2.msra.mxu0 0.0
    %4511 = vmatprep.subr.mxu0 0.0
    %4512 = vmatpush2.msra.mxu0 0.0
    %4513 = vmatprep.subr.mxu0 0.0
    %4514 = vmatpush2.msra.mxu0 0.0
    %4515 = vmatprep.subr.mxu0 0.0
    %4516 = vmatpush2.msra.mxu0 0.0
    %4517 = vmatprep.subr.mxu0 0.0
    %4518 = vmatpush2.msra.mxu0 0.0
    %4519 = vmatprep.subr.mxu0 0.0
    %4520 = vmatpush2.msra.mxu0 0.0
    %4521 = vmatprep.subr.mxu0 0.0
    %4522 = vmatpush2.msra.mxu0 0.0
    %4523 = vmatprep.subr.mxu0 0.0
    %4524 = vmatpush2.msra.mxu0 0.0
    %4525 = vmatprep.mubr.f32.mxu0 0.0
    %4526 = vmatmul.mubr.f32.gmra.mxu0 %v4389
    %v4527 = vpop.f32.mrf.mxu0
    %v4528 = vadd.f32 %v4458, %v4527
    %v4529 = vpop.f32.mrf.mxu0
    %4530 = vdwg.mxu0
    %v4531 = vmax.f32 %v4528, 0.0
    %v4532 = vld [vmem:[%s7] sm:$0xff]
    %v4533 = vld [vmem:[%s7 + $0x8] sm:$0xff]
    %v4534 = vld [vmem:[%s7 + $0x10] sm:$0xff]
    %v4535 = vld [vmem:[%s7 + $0x18] sm:$0xff]
    %v4536 = vld [vmem:[%s7 + $0x20] sm:$0xff]
    %v4537 = vld [vmem:[%s7 + $0x28] sm:$0xff]
    %v4538 = vld [vmem:[%s7 + $0x30] sm:$0x3]
    %v4539 = vld [vmem:[%s8] sm:$0x1]
    %v4541 = vlaneseq
    %v4542 = vshrl.u32 %v4541, 7
    %v4543 = vsub.s32 0, %v4542
    %v4544 = vrot.slane %v4539, %v4543
    %v4547 = vsel %vm3159, %v4531, 0
    %v4550 = vsel %vm4027, %v4538, 0
    %4552 = vmatprep.subr.mxu0 0.0
    %4553 = vmatpush1.msra.mxu0 0.0
    %4554 = vmatprep.subr.mxu0 0.0
    %4555 = vmatpush1.msra.mxu0 0.0
    %4556 = vmatprep.subr.mxu0 0.0
    %4557 = vmatpush1.msra.mxu0 0.0
    %4558 = vmatprep.subr.mxu0 0.0
    %4559 = vmatpush1.msra.mxu0 0.0
    %4560 = vmatprep.subr.mxu0 0.0
    %4561 = vmatpush1.msra.mxu0 0.0
    %4562 = vmatprep.subr.mxu0 0.0
    %4563 = vmatpush1.msra.mxu0 0.0
    %4564 = vmatprep.subr.mxu0 0.0
    %4565 = vmatpush1.msra.mxu0 0.0
    %4566 = vmatprep.subr.mxu0 0.0
    %4567 = vmatpush1.msra.mxu0 0.0
    %4568 = vmatprep.subr.mxu0 0.0
    %4569 = vmatpush1.msra.mxu0 0.0
    %4570 = vmatprep.subr.mxu0 0.0
    %4571 = vmatpush1.msra.mxu0 %v4550
    %4572 = vmatprep.subr.mxu0 0.0
    %4573 = vmatpush1.msra.mxu0 %v4537
    %4574 = vmatprep.subr.mxu0 0.0
    %4575 = vmatpush1.msra.mxu0 %v4536
    %4576 = vmatprep.subr.mxu0 0.0
    %4577 = vmatpush1.msra.mxu0 %v4535
    %4578 = vmatprep.subr.mxu0 0.0
    %4579 = vmatpush1.msra.mxu0 %v4534
    %4580 = vmatprep.subr.mxu0 0.0
    %4581 = vmatpush1.msra.mxu0 %v4533
    %4582 = vmatprep.subr.mxu0 0.0
    %4583 = vmatpush1.msra.mxu0 %v4532
    %4584 = vmatprep.subr.mxu0 0.0
    %4585 = vmatpush2.msra.mxu0 0.0
    %4586 = vmatprep.subr.mxu0 0.0
    %4587 = vmatpush2.msra.mxu0 0.0
    %4588 = vmatprep.subr.mxu0 0.0
    %4589 = vmatpush2.msra.mxu0 0.0
    %4590 = vmatprep.subr.mxu0 0.0
    %4591 = vmatpush2.msra.mxu0 0.0
    %4592 = vmatprep.subr.mxu0 0.0
    %4593 = vmatpush2.msra.mxu0 0.0
    %4594 = vmatprep.subr.mxu0 0.0
    %4595 = vmatpush2.msra.mxu0 0.0
    %4596 = vmatprep.subr.mxu0 0.0
    %4597 = vmatpush2.msra.mxu0 0.0
    %4598 = vmatprep.subr.mxu0 0.0
    %4599 = vmatpush2.msra.mxu0 0.0
    %4600 = vmatprep.subr.mxu0 0.0
    %4601 = vmatpush2.msra.mxu0 0.0
    %4602 = vmatprep.subr.mxu0 0.0
    %4603 = vmatpush2.msra.mxu0 0.0
    %4604 = vmatprep.subr.mxu0 0.0
    %4605 = vmatpush2.msra.mxu0 0.0
    %4606 = vmatprep.subr.mxu0 0.0
    %4607 = vmatpush2.msra.mxu0 0.0
    %4608 = vmatprep.subr.mxu0 0.0
    %4609 = vmatpush2.msra.mxu0 0.0
    %4610 = vmatprep.subr.mxu0 0.0
    %4611 = vmatpush2.msra.mxu0 0.0
    %4612 = vmatprep.subr.mxu0 0.0
    %4613 = vmatpush2.msra.mxu0 0.0
    %4614 = vmatprep.subr.mxu0 0.0
    %4615 = vmatpush2.msra.mxu0 0.0
    %4616 = vmatprep.mubr.f32.mxu0 0.0
    %4617 = vmatmul.mubr.f32.gmra.mxu0 %v4547
    %v4618 = vpop.f32.mrf.mxu0
    %v4619 = vadd.f32 %v4544, %v4618
    %v4620 = vpop.f32.mrf.mxu0
    %4621 = vdwg.mxu0
    %vm4622 = vcmask 74752
    %4623 = vst.msk [vmem:[#allocation2] sm:$0x3] %vm4622, %v4619
    // Predicated region
    $region38: #{net_forward.1} parent=1 // pred_check
      _
    $region39: #{net_forward.1} parent=1 // pred_check_branch
      %4625 = sbr.rel (0) target = $region41
    $region40: #{net_forward.1} parent=1 // pred_region
      %s4627 = ssub.s32 32, 32
      %4628 = vsyncadd [#allocation3], %s4627
      %s4630 = sshll.u32 [#allocation2], 4
      %s4631 = int_to_ptr.vmem [resolvable:$true] %s4630
      %4633 = dma.vmem_to_hbm [thread:$0]  %s4631, 32, %s9, [#allocation3]
    $region41: #{net_forward.1} parent=1 // pred_fallthru
      _
    // Predicated region
    $region42: #{net_forward.1} parent=1 // pred_check
      _
    $region43: #{net_forward.1} parent=1 // pred_check_branch
      %4635 = sbr.rel (0) target = $region45
    $region44: #{net_forward.1} parent=1 // pred_region
      %4636 = dma.done [#allocation3], 32
    $region45: #{net_forward.1} parent=1 // pred_fallthru
      _
    %4637 = vsyncpa [#allocation3], 1

</llo_original>
